<compile_context>
chip_gen: v7x
topology: tpu7x:2x2x1
jax: 0.10.0
libtpu: 0.0.40
codegen_flags: <defaults>
</compile_context>

<pallas_src>
import functools

import jax
import jax.numpy as jnp
from jax.experimental import pallas as pl
from jax.experimental.pallas import tpu as pltpu


def _round_up(x: int, m: int) -> int:
    return (x + m - 1) // m * m


# --------------------------------------------------------------------------------------
# Kernel A: per-meta-path score sums.  Grid = (core split, node tiles).
#   wsum[c, 0, m] = sum over this split's valid nodes of (tanh(z[m] @ w1 + b1) @ w2)
# --------------------------------------------------------------------------------------
def _score_kernel(z_ref, w1_ref, b1_ref, w2_ref, wsum_ref, *, n_valid, tile_n):
    c = pl.program_id(0)                      # core-split index ("parallel": v7x megacore)
    t = pl.program_id(1)                      # node-tile index within the split

    @pl.when(t == 0)
    def _init():
        wsum_ref[...] = jnp.zeros_like(wsum_ref)

    n_mp = z_ref.shape[0]
    w1 = w1_ref[...]                          # (D, H)  bf16, constant index map (no re-DMA)
    b1 = b1_ref[...]                          # (1, H)  f32
    w2 = w2_ref[...]                          # (1, H)  f32

    # Mask node rows past the true N: padded zero rows still give tanh(b1)@w2 != 0.
    base = (c * pl.num_programs(1) + t) * tile_n
    node = jax.lax.broadcasted_iota(jnp.int32, (tile_n, 1), 0) + base
    valid = (node < n_valid).astype(jnp.float32)                 # (tile_n, 1)

    lane = jax.lax.broadcasted_iota(jnp.int32, (1, 1, n_mp), 2)
    acc = jnp.zeros((1, 1, n_mp), jnp.float32)
    for m in range(n_mp):                                        # static unroll, M tiny
        # Linear(D,H): bf16 MXU operands, f32 accumulation.
        h = jnp.dot(z_ref[m], w1, preferred_element_type=jnp.float32)   # (tile_n, H)
        h = jnp.tanh(h + b1)                                             # EUP
        # Linear(H,1,bias=False) as VPU mul + lane reduction (no width-1 MXU matmul).
        s = jnp.sum(h * w2, axis=-1, keepdims=True)              # (tile_n, 1)
        total = jnp.sum(s * valid)                               # scalar partial sum
        acc = acc + jnp.where(lane == m, total, 0.0)
    wsum_ref[...] += acc


# --------------------------------------------------------------------------------------
# Kernel B: out[n, :] = sum_m beta[m] * z[m, n, :].  Grid over node tiles ("parallel").
# --------------------------------------------------------------------------------------
def _weighted_sum_kernel(beta_ref, z_ref, out_ref):
    n_mp = z_ref.shape[0]
    # beta lives in SMEM (M f32 scalars); z block is bf16, accumulate in f32.
    acc = beta_ref[0] * z_ref[0].astype(jnp.float32)
    for m in range(1, n_mp):                                     # M-1 VPU axpy's
        acc = acc + beta_ref[m] * z_ref[m].astype(jnp.float32)
    out_ref[...] = acc


# --------------------------------------------------------------------------------------
# Wrapper
# --------------------------------------------------------------------------------------
def semantic_attention(z, w1, b1, w2, *, tile_n=4096, n_split=2):
    """z: (N, M, D) f32; w1: (D, H); b1: (H,); w2: (H, 1).  Returns (N, D) f32."""
    N, M, D = z.shape
    H = w1.shape[1]

    # Tile sizing: as large as possible (per-grid-step overhead ~0.35us) while the
    # per-step working set (double-buffered bf16 z block + f32 h / output temporaries)
    # stays well inside scoped VMEM on all generations (v5e is the tightest).
    per_row_bytes = 4 * M * D + 8 * max(H, D)
    budget_rows = max(16, (10 << 20) // per_row_bytes)
    tile_n = min(tile_n, budget_rows, _round_up(pl.cdiv(N, n_split), 16))
    tile_n = max(16, (tile_n // 16) * 16)            # bf16 sublane packing
    n_pad = _round_up(N, tile_n * n_split)
    tiles_per_split = n_pad // (tile_n * n_split)
    n_tiles = n_pad // tile_n

    # Single padded/transposed bf16 copy of z, read by BOTH kernels: (M, n_pad, D).
    # Feature axis kept at the true D (no 128-pad); padded node rows are zero.
    z_t = jnp.transpose(z, (1, 0, 2)).astype(jnp.bfloat16)
    z_p = jnp.zeros((M, n_pad, D), jnp.bfloat16).at[:, :N, :].set(z_t)

    w1_b = w1.astype(jnp.bfloat16)                   # (D, H) bf16 MXU operand
    b1_r = b1.reshape(1, H).astype(jnp.float32)      # (1, H)
    w2_r = w2.reshape(1, H).astype(jnp.float32)      # Linear(H,1) weight as a row

    def _params(sem):
        return pltpu.CompilerParams(dimension_semantics=sem,
                                    vmem_limit_bytes=32 << 20)

    # Phase 1: partial per-meta-path score sums, one (1, M) row per core split.
    wsum = pl.pallas_call(
        functools.partial(_score_kernel, n_valid=N, tile_n=tile_n),
        out_shape=jax.ShapeDtypeStruct((n_split, 1, M), jnp.float32),
        grid=(n_split, tiles_per_split),
        in_specs=[
            pl.BlockSpec((M, tile_n, D),
                         lambda c, t: (0, c * tiles_per_split + t, 0)),
            pl.BlockSpec((D, H), lambda c, t: (0, 0)),
            pl.BlockSpec((1, H), lambda c, t: (0, 0)),
            pl.BlockSpec((1, H), lambda c, t: (0, 0)),
        ],
        out_specs=pl.BlockSpec((1, 1, M), lambda c, t: (c, 0, 0)),
        compiler_params=_params(("parallel", "arbitrary")),
    )(z_p, w1_b, b1_r, w2_r)

    # Phase 2 (tiny, off the hot path, exact f32): mean over nodes + softmax over M.
    w_mean = wsum.sum(axis=(0, 1)) / N               # (M,)
    beta = jax.nn.softmax(w_mean)                    # (M,)

    # Phase 3: beta-weighted sum over meta-paths; independent node tiles -> "parallel".
    out_p = pl.pallas_call(
        _weighted_sum_kernel,
        out_shape=jax.ShapeDtypeStruct((n_pad, D), jnp.float32),
        grid=(n_tiles,),
        in_specs=[
            pl.BlockSpec(memory_space=pltpu.MemorySpace.SMEM),   # beta: M f32 scalars
            pl.BlockSpec((M, tile_n, D), lambda t: (0, t, 0)),
        ],
        out_specs=pl.BlockSpec((tile_n, D), lambda t: (t, 0)),
        compiler_params=_params(("parallel",)),
    )(beta, z_p)

    return out_p[:N]


# --------------------------------------------------------------------------------------
# Pure-JAX reference mirroring the PyTorch forward (f32 throughout).
# --------------------------------------------------------------------------------------
def semantic_attention_ref(z, w1, b1, w2):
    s = jnp.tanh(jnp.einsum("nmd,dh->nmh", z, w1) + b1) @ w2    # (N, M, 1)
    w = s.mean(axis=0)                                          # (M, 1)
    beta = jax.nn.softmax(w, axis=0)                            # (M, 1)
    return (beta[None, :, :] * z).sum(axis=1)                   # (N, D)


if __name__ == "__main__":
    # Small shapes consistent with the module (hidden_size default 128); N deliberately
    # not a tile multiple so the row-masking / padding path is exercised.
    N, M, D, H = 300, 4, 64, 128

    key = jax.random.PRNGKey(0)
    kz, kw1, kb1, kw2 = jax.random.split(key, 4)
    z = jax.random.normal(kz, (N, M, D), dtype=jnp.float32)
    w1 = jax.random.normal(kw1, (D, H), dtype=jnp.float32) * 0.1
    b1 = jax.random.normal(kb1, (H,), dtype=jnp.float32) * 0.1
    w2 = jax.random.normal(kw2, (H, 1), dtype=jnp.float32) * 0.1

    fn = jax.jit(semantic_attention)
    out = jax.block_until_ready(fn(z, w1, b1, w2))
    ref = semantic_attention_ref(z, w1, b1, w2)

    assert out.shape == (N, D), out.shape
    # bf16 z (both passes) + bf16 w1 in the score pass => looser tolerance vs the pure-f32
    # reference; accumulation is f32 everywhere and the softmax is exact f32.
    err = float(jnp.max(jnp.abs(out - ref)))
    assert jnp.allclose(out, ref, atol=3e-2, rtol=3e-2), err
    print("KERNEL_OK")
</pallas_src>

<mosaic_0001>
module attributes {stable_mosaic.version = 11 : i64} {
  func.func @_score_kernel(%arg0: i32, %arg1: i32, %arg2: memref<4x160x64xbf16, #tpu.memory_space<vmem>>, %arg3: memref<64x128xbf16, #tpu.memory_space<vmem>>, %arg4: memref<1x128xf32, #tpu.memory_space<vmem>>, %arg5: memref<1x128xf32, #tpu.memory_space<vmem>>, %arg6: memref<1x1x4xf32, #tpu.memory_space<vmem>>) attributes {dimension_semantics = [#tpu.dimension_semantics<parallel>, #tpu.dimension_semantics<arbitrary>], iteration_bounds = array<i64: 2, 1>, scalar_prefetch = 0 : i64, scratch_operands = 0 : i64, tpu.core_type = #tpu.core_type<tc>, window_params = [{transform_indices = @transform_0, window_bounds = array<i64: 4, 160, 64>}, {pipeline_mode = #tpu.pipeline_mode<synchronous>, transform_indices = @transform_1, window_bounds = array<i64: 64, 128>}, {pipeline_mode = #tpu.pipeline_mode<synchronous>, transform_indices = @transform_2, window_bounds = array<i64: 1, 128>}, {pipeline_mode = #tpu.pipeline_mode<synchronous>, transform_indices = @transform_3, window_bounds = array<i64: 1, 128>}, {transform_indices = @transform_4, window_bounds = array<i64: 1, 1, 4>}]} {
    %c0_i32 = arith.constant 0 : i32
    %0 = arith.cmpi eq, %arg1, %c0_i32 : i32
    %1 = arith.extui %0 : i1 to i32
    %c0_i32_0 = arith.constant 0 : i32
    %2 = arith.cmpi ne, %1, %c0_i32_0 : i32
    scf.if %2 {
      %cst_39 = arith.constant 0.000000e+00 : f32
      %105 = vector.broadcast %cst_39 : f32 to vector<1x1x4xf32>
      %c0_40 = arith.constant 0 : index
      %c0_41 = arith.constant 0 : index
      %c0_42 = arith.constant 0 : index
      %106 = vector.load %arg6[%c0_40, %c0_41, %c0_42] : memref<1x1x4xf32, #tpu.memory_space<vmem>>, vector<1x1x4xf32>
      tpu.vector_store %arg6[%c0_40, %c0_41, %c0_42], %105 {strides = array<i32>} : memref<1x1x4xf32, #tpu.memory_space<vmem>>, vector<1x1x4xf32>,
    } else {
    }
    %c0 = arith.constant 0 : index
    %c0_1 = arith.constant 0 : index
    %3 = vector.load %arg3[%c0, %c0_1] : memref<64x128xbf16, #tpu.memory_space<vmem>>, vector<64x128xbf16>
    %c0_2 = arith.constant 0 : index
    %c0_3 = arith.constant 0 : index
    %4 = vector.load %arg4[%c0_2, %c0_3] : memref<1x128xf32, #tpu.memory_space<vmem>>, vector<1x128xf32>
    %c0_4 = arith.constant 0 : index
    %c0_5 = arith.constant 0 : index
    %5 = vector.load %arg5[%c0_4, %c0_5] : memref<1x128xf32, #tpu.memory_space<vmem>>, vector<1x128xf32>
    %c1_i32 = arith.constant 1 : i32
    %6 = arith.muli %arg0, %c1_i32 : i32
    %7 = arith.addi %6, %arg1 : i32
    %c160_i32 = arith.constant 160 : i32
    %8 = arith.muli %7, %c160_i32 : i32
    %9 = tpu.iota {dimensions = array<i32: 0>} : vector<160x1xi32>
    %10 = vector.broadcast %8 : i32 to vector<160x1xi32>
    %11 = arith.addi %9, %10 : vector<160x1xi32>
    %c300_i32 = arith.constant 300 : i32
    %12 = vector.broadcast %c300_i32 : i32 to vector<160x1xi32>
    %13 = arith.cmpi slt, %11, %12 : vector<160x1xi32>
    %14 = arith.extui %13 : vector<160x1xi1> to vector<160x1xi32>
    %15 = arith.sitofp %14 : vector<160x1xi32> to vector<160x1xf32>
    %16 = tpu.iota {dimensions = array<i32: 2>} : vector<1x1x4xi32>
    %cst = arith.constant 0.000000e+00 : f32
    %17 = vector.broadcast %cst : f32 to vector<1x1x4xf32>
    %c0_6 = arith.constant 0 : index
    %c0_7 = arith.constant 0 : index
    %c0_8 = arith.constant 0 : index
    %18 = vector.load %arg2[%c0_6, %c0_7, %c0_8] : memref<4x160x64xbf16, #tpu.memory_space<vmem>>, vector<1x160x64xbf16>
    %19 = vector.shape_cast %18 : vector<1x160x64xbf16> to vector<160x64xbf16>
    %cst_9 = arith.constant dense<0.000000e+00> : vector<160x128xf32>
    %20 = tpu.matmul %19, %3, %cst_9 {dimension_numbers = #tpu.dot_dimension_numbers<[1], [0], [0], [1], [0, 0, 1, 1], [], []>} : vector<160x64xbf16>, vector<64x128xbf16>, vector<160x128xf32> -> vector<160x128xf32>
    %21 = vector.broadcast %4 : vector<1x128xf32> to vector<160x128xf32>
    %22 = arith.addf %20, %21 : vector<160x128xf32>
    %23 = math.tanh %22 : vector<160x128xf32>
    %24 = vector.broadcast %5 : vector<1x128xf32> to vector<160x128xf32>
    %25 = arith.mulf %23, %24 : vector<160x128xf32>
    %cst_10 = arith.constant dense<0.000000e+00> : vector<160xf32>
    %26 = vector.multi_reduction <add>, %25, %cst_10 [1] : vector<160x128xf32> to vector<160xf32>
    %27 = vector.shape_cast %26 : vector<160xf32> to vector<160x1xf32>
    %28 = arith.mulf %27, %15 : vector<160x1xf32>
    %29 = vector.shape_cast %28 : vector<160x1xf32> to vector<1x160x1xf32>
    %cst_11 = arith.constant dense<0.000000e+00> : vector<1xf32>
    %30 = vector.multi_reduction <add>, %29, %cst_11 [1, 2] : vector<1x160x1xf32> to vector<1xf32>
    %31 = vector.shape_cast %30 : vector<1xf32> to vector<1x1x1xf32>
    %32 = vector.extract %31[0, 0, 0] : f32 from vector<1x1x1xf32>
    %c0_i32_12 = arith.constant 0 : i32
    %33 = vector.broadcast %c0_i32_12 : i32 to vector<1x1x4xi32>
    %34 = arith.cmpi eq, %16, %33 : vector<1x1x4xi32>
    %cst_13 = arith.constant 0.000000e+00 : f32
    %35 = vector.broadcast %32 : f32 to vector<1x1x4xf32>
    %36 = vector.broadcast %cst_13 : f32 to vector<1x1x4xf32>
    %37 = arith.select %34, %35, %36 : vector<1x1x4xi1>, vector<1x1x4xf32>
    %38 = arith.addf %17, %37 : vector<1x1x4xf32>
    %c1 = arith.constant 1 : index
    %c0_14 = arith.constant 0 : index
    %c0_15 = arith.constant 0 : index
    %39 = vector.load %arg2[%c1, %c0_14, %c0_15] : memref<4x160x64xbf16, #tpu.memory_space<vmem>>, vector<1x160x64xbf16>
    %40 = vector.shape_cast %39 : vector<1x160x64xbf16> to vector<160x64xbf16>
    %cst_16 = arith.constant dense<0.000000e+00> : vector<160x128xf32>
    %41 = tpu.matmul %40, %3, %cst_16 {dimension_numbers = #tpu.dot_dimension_numbers<[1], [0], [0], [1], [0, 0, 1, 1], [], []>} : vector<160x64xbf16>, vector<64x128xbf16>, vector<160x128xf32> -> vector<160x128xf32>
    %42 = vector.broadcast %4 : vector<1x128xf32> to vector<160x128xf32>
    %43 = arith.addf %41, %42 : vector<160x128xf32>
    %44 = math.tanh %43 : vector<160x128xf32>
    %45 = vector.broadcast %5 : vector<1x128xf32> to vector<160x128xf32>
    %46 = arith.mulf %44, %45 : vector<160x128xf32>
    %cst_17 = arith.constant dense<0.000000e+00> : vector<160xf32>
    %47 = vector.multi_reduction <add>, %46, %cst_17 [1] : vector<160x128xf32> to vector<160xf32>
    %48 = vector.shape_cast %47 : vector<160xf32> to vector<160x1xf32>
    %49 = arith.mulf %48, %15 : vector<160x1xf32>
    %50 = vector.shape_cast %49 : vector<160x1xf32> to vector<1x160x1xf32>
    %cst_18 = arith.constant dense<0.000000e+00> : vector<1xf32>
    %51 = vector.multi_reduction <add>, %50, %cst_18 [1, 2] : vector<1x160x1xf32> to vector<1xf32>
    %52 = vector.shape_cast %51 : vector<1xf32> to vector<1x1x1xf32>
    %53 = vector.extract %52[0, 0, 0] : f32 from vector<1x1x1xf32>
    %c1_i32_19 = arith.constant 1 : i32
    %54 = vector.broadcast %c1_i32_19 : i32 to vector<1x1x4xi32>
    %55 = arith.cmpi eq, %16, %54 : vector<1x1x4xi32>
    %cst_20 = arith.constant 0.000000e+00 : f32
    %56 = vector.broadcast %53 : f32 to vector<1x1x4xf32>
    %57 = vector.broadcast %cst_20 : f32 to vector<1x1x4xf32>
    %58 = arith.select %55, %56, %57 : vector<1x1x4xi1>, vector<1x1x4xf32>
    %59 = arith.addf %38, %58 : vector<1x1x4xf32>
    %c2 = arith.constant 2 : index
    %c0_21 = arith.constant 0 : index
    %c0_22 = arith.constant 0 : index
    %60 = vector.load %arg2[%c2, %c0_21, %c0_22] : memref<4x160x64xbf16, #tpu.memory_space<vmem>>, vector<1x160x64xbf16>
    %61 = vector.shape_cast %60 : vector<1x160x64xbf16> to vector<160x64xbf16>
    %cst_23 = arith.constant dense<0.000000e+00> : vector<160x128xf32>
    %62 = tpu.matmul %61, %3, %cst_23 {dimension_numbers = #tpu.dot_dimension_numbers<[1], [0], [0], [1], [0, 0, 1, 1], [], []>} : vector<160x64xbf16>, vector<64x128xbf16>, vector<160x128xf32> -> vector<160x128xf32>
    %63 = vector.broadcast %4 : vector<1x128xf32> to vector<160x128xf32>
    %64 = arith.addf %62, %63 : vector<160x128xf32>
    %65 = math.tanh %64 : vector<160x128xf32>
    %66 = vector.broadcast %5 : vector<1x128xf32> to vector<160x128xf32>
    %67 = arith.mulf %65, %66 : vector<160x128xf32>
    %cst_24 = arith.constant dense<0.000000e+00> : vector<160xf32>
    %68 = vector.multi_reduction <add>, %67, %cst_24 [1] : vector<160x128xf32> to vector<160xf32>
    %69 = vector.shape_cast %68 : vector<160xf32> to vector<160x1xf32>
    %70 = arith.mulf %69, %15 : vector<160x1xf32>
    %71 = vector.shape_cast %70 : vector<160x1xf32> to vector<1x160x1xf32>
    %cst_25 = arith.constant dense<0.000000e+00> : vector<1xf32>
    %72 = vector.multi_reduction <add>, %71, %cst_25 [1, 2] : vector<1x160x1xf32> to vector<1xf32>
    %73 = vector.shape_cast %72 : vector<1xf32> to vector<1x1x1xf32>
    %74 = vector.extract %73[0, 0, 0] : f32 from vector<1x1x1xf32>
    %c2_i32 = arith.constant 2 : i32
    %75 = vector.broadcast %c2_i32 : i32 to vector<1x1x4xi32>
    %76 = arith.cmpi eq, %16, %75 : vector<1x1x4xi32>
    %cst_26 = arith.constant 0.000000e+00 : f32
    %77 = vector.broadcast %74 : f32 to vector<1x1x4xf32>
    %78 = vector.broadcast %cst_26 : f32 to vector<1x1x4xf32>
    %79 = arith.select %76, %77, %78 : vector<1x1x4xi1>, vector<1x1x4xf32>
    %80 = arith.addf %59, %79 : vector<1x1x4xf32>
    %c3 = arith.constant 3 : index
    %c0_27 = arith.constant 0 : index
    %c0_28 = arith.constant 0 : index
    %81 = vector.load %arg2[%c3, %c0_27, %c0_28] : memref<4x160x64xbf16, #tpu.memory_space<vmem>>, vector<1x160x64xbf16>
    %82 = vector.shape_cast %81 : vector<1x160x64xbf16> to vector<160x64xbf16>
    %cst_29 = arith.constant dense<0.000000e+00> : vector<160x128xf32>
    %83 = tpu.matmul %82, %3, %cst_29 {dimension_numbers = #tpu.dot_dimension_numbers<[1], [0], [0], [1], [0, 0, 1, 1], [], []>} : vector<160x64xbf16>, vector<64x128xbf16>, vector<160x128xf32> -> vector<160x128xf32>
    %84 = vector.broadcast %4 : vector<1x128xf32> to vector<160x128xf32>
    %85 = arith.addf %83, %84 : vector<160x128xf32>
    %86 = math.tanh %85 : vector<160x128xf32>
    %87 = vector.broadcast %5 : vector<1x128xf32> to vector<160x128xf32>
    %88 = arith.mulf %86, %87 : vector<160x128xf32>
    %cst_30 = arith.constant dense<0.000000e+00> : vector<160xf32>
    %89 = vector.multi_reduction <add>, %88, %cst_30 [1] : vector<160x128xf32> to vector<160xf32>
    %90 = vector.shape_cast %89 : vector<160xf32> to vector<160x1xf32>
    %91 = arith.mulf %90, %15 : vector<160x1xf32>
    %92 = vector.shape_cast %91 : vector<160x1xf32> to vector<1x160x1xf32>
    %cst_31 = arith.constant dense<0.000000e+00> : vector<1xf32>
    %93 = vector.multi_reduction <add>, %92, %cst_31 [1, 2] : vector<1x160x1xf32> to vector<1xf32>
    %94 = vector.shape_cast %93 : vector<1xf32> to vector<1x1x1xf32>
    %95 = vector.extract %94[0, 0, 0] : f32 from vector<1x1x1xf32>
    %c3_i32 = arith.constant 3 : i32
    %96 = vector.broadcast %c3_i32 : i32 to vector<1x1x4xi32>
    %97 = arith.cmpi eq, %16, %96 : vector<1x1x4xi32>
    %cst_32 = arith.constant 0.000000e+00 : f32
    %98 = vector.broadcast %95 : f32 to vector<1x1x4xf32>
    %99 = vector.broadcast %cst_32 : f32 to vector<1x1x4xf32>
    %100 = arith.select %97, %98, %99 : vector<1x1x4xi1>, vector<1x1x4xf32>
    %101 = arith.addf %80, %100 : vector<1x1x4xf32>
    %c0_33 = arith.constant 0 : index
    %c0_34 = arith.constant 0 : index
    %c0_35 = arith.constant 0 : index
    %102 = vector.load %arg6[%c0_33, %c0_34, %c0_35] : memref<1x1x4xf32, #tpu.memory_space<vmem>>, vector<1x1x4xf32>
    %103 = arith.addf %102, %101 : vector<1x1x4xf32>
    %c0_36 = arith.constant 0 : index
    %c0_37 = arith.constant 0 : index
    %c0_38 = arith.constant 0 : index
    %104 = vector.load %arg6[%c0_36, %c0_37, %c0_38] : memref<1x1x4xf32, #tpu.memory_space<vmem>>, vector<1x1x4xf32>
    tpu.vector_store %arg6[%c0_36, %c0_37, %c0_38], %103 {strides = array<i32>} : memref<1x1x4xf32, #tpu.memory_space<vmem>>, vector<1x1x4xf32>,
    return
  }
  func.func @transform_0(%arg0: i32, %arg1: i32) -> (i32, i32, i32) {
    %c1_i32 = arith.constant 1 : i32
    %0 = arith.muli %arg0, %c1_i32 : i32
    %1 = arith.addi %0, %arg1 : i32
    %c0_i32 = arith.constant 0 : i32
    %c0_i32_0 = arith.constant 0 : i32
    %c0_i32_1 = arith.constant 0 : i32
    return %c0_i32, %1, %c0_i32_0 : i32, i32, i32
  }
  func.func @transform_1(%arg0: i32, %arg1: i32) -> (i32, i32) {
    %c0_i32 = arith.constant 0 : i32
    %c0_i32_0 = arith.constant 0 : i32
    %c0_i32_1 = arith.constant 0 : i32
    return %c0_i32, %c0_i32_0 : i32, i32
  }
  func.func @transform_2(%arg0: i32, %arg1: i32) -> (i32, i32) {
    %c0_i32 = arith.constant 0 : i32
    %c0_i32_0 = arith.constant 0 : i32
    %c0_i32_1 = arith.constant 0 : i32
    return %c0_i32, %c0_i32_0 : i32, i32
  }
  func.func @transform_3(%arg0: i32, %arg1: i32) -> (i32, i32) {
    %c0_i32 = arith.constant 0 : i32
    %c0_i32_0 = arith.constant 0 : i32
    %c0_i32_1 = arith.constant 0 : i32
    return %c0_i32, %c0_i32_0 : i32, i32
  }
  func.func @transform_4(%arg0: i32, %arg1: i32) -> (i32, i32, i32) {
    %c0_i32 = arith.constant 0 : i32
    %c0_i32_0 = arith.constant 0 : i32
    %c0_i32_1 = arith.constant 0 : i32
    return %arg0, %c0_i32, %c0_i32_0 : i32, i32, i32
  }
}

module attributes {stable_mosaic.version = 11 : i64} {
  func.func @_weighted_sum_kernel(%arg0: i32, %arg1: memref<4xf32, #tpu.memory_space<smem>>, %arg2: memref<4x160x64xbf16, #tpu.memory_space<vmem>>, %arg3: memref<160x64xf32, #tpu.memory_space<vmem>>) attributes {dimension_semantics = [#tpu.dimension_semantics<parallel>], iteration_bounds = array<i64: 2>, scalar_prefetch = 0 : i64, scratch_operands = 0 : i64, tpu.core_type = #tpu.core_type<tc>, window_params = [{transform_indices = @transform_0, window_bounds = array<i64: 4>}, {transform_indices = @transform_1, window_bounds = array<i64: 4, 160, 64>}, {transform_indices = @transform_2, window_bounds = array<i64: 160, 64>}]} {
    %c0 = arith.constant 0 : index
    %0 = memref.load %arg1[%c0] : memref<4xf32, #tpu.memory_space<smem>>
    %c0_0 = arith.constant 0 : index
    %c0_1 = arith.constant 0 : index
    %c0_2 = arith.constant 0 : index
    %1 = vector.load %arg2[%c0_0, %c0_1, %c0_2] : memref<4x160x64xbf16, #tpu.memory_space<vmem>>, vector<1x160x64xbf16>
    %2 = vector.shape_cast %1 : vector<1x160x64xbf16> to vector<160x64xbf16>
    %3 = arith.extf %2 : vector<160x64xbf16> to vector<160x64xf32>
    %4 = vector.broadcast %0 : f32 to vector<160x64xf32>
    %5 = arith.mulf %4, %3 : vector<160x64xf32>
    %c1 = arith.constant 1 : index
    %6 = memref.load %arg1[%c1] : memref<4xf32, #tpu.memory_space<smem>>
    %c1_3 = arith.constant 1 : index
    %c0_4 = arith.constant 0 : index
    %c0_5 = arith.constant 0 : index
    %7 = vector.load %arg2[%c1_3, %c0_4, %c0_5] : memref<4x160x64xbf16, #tpu.memory_space<vmem>>, vector<1x160x64xbf16>
    %8 = vector.shape_cast %7 : vector<1x160x64xbf16> to vector<160x64xbf16>
    %9 = arith.extf %8 : vector<160x64xbf16> to vector<160x64xf32>
    %10 = vector.broadcast %6 : f32 to vector<160x64xf32>
    %11 = arith.mulf %10, %9 : vector<160x64xf32>
    %12 = arith.addf %5, %11 : vector<160x64xf32>
    %c2 = arith.constant 2 : index
    %13 = memref.load %arg1[%c2] : memref<4xf32, #tpu.memory_space<smem>>
    %c2_6 = arith.constant 2 : index
    %c0_7 = arith.constant 0 : index
    %c0_8 = arith.constant 0 : index
    %14 = vector.load %arg2[%c2_6, %c0_7, %c0_8] : memref<4x160x64xbf16, #tpu.memory_space<vmem>>, vector<1x160x64xbf16>
    %15 = vector.shape_cast %14 : vector<1x160x64xbf16> to vector<160x64xbf16>
    %16 = arith.extf %15 : vector<160x64xbf16> to vector<160x64xf32>
    %17 = vector.broadcast %13 : f32 to vector<160x64xf32>
    %18 = arith.mulf %17, %16 : vector<160x64xf32>
    %19 = arith.addf %12, %18 : vector<160x64xf32>
    %c3 = arith.constant 3 : index
    %20 = memref.load %arg1[%c3] : memref<4xf32, #tpu.memory_space<smem>>
    %c3_9 = arith.constant 3 : index
    %c0_10 = arith.constant 0 : index
    %c0_11 = arith.constant 0 : index
    %21 = vector.load %arg2[%c3_9, %c0_10, %c0_11] : memref<4x160x64xbf16, #tpu.memory_space<vmem>>, vector<1x160x64xbf16>
    %22 = vector.shape_cast %21 : vector<1x160x64xbf16> to vector<160x64xbf16>
    %23 = arith.extf %22 : vector<160x64xbf16> to vector<160x64xf32>
    %24 = vector.broadcast %20 : f32 to vector<160x64xf32>
    %25 = arith.mulf %24, %23 : vector<160x64xf32>
    %26 = arith.addf %19, %25 : vector<160x64xf32>
    %c0_12 = arith.constant 0 : index
    %c0_13 = arith.constant 0 : index
    %27 = vector.load %arg3[%c0_12, %c0_13] : memref<160x64xf32, #tpu.memory_space<vmem>>, vector<160x64xf32>
    tpu.vector_store %arg3[%c0_12, %c0_13], %26 {strides = array<i32>} : memref<160x64xf32, #tpu.memory_space<vmem>>, vector<160x64xf32>,
    return
  }
  func.func @transform_0(%arg0: i32) -> i32 {
    %c0_i32 = arith.constant 0 : i32
    %c0_i32_0 = arith.constant 0 : i32
    return %c0_i32 : i32
  }
  func.func @transform_1(%arg0: i32) -> (i32, i32, i32) {
    %c0_i32 = arith.constant 0 : i32
    %c0_i32_0 = arith.constant 0 : i32
    %c0_i32_1 = arith.constant 0 : i32
    return %c0_i32, %arg0, %c0_i32_0 : i32, i32, i32
  }
  func.func @transform_2(%arg0: i32) -> (i32, i32) {
    %c0_i32 = arith.constant 0 : i32
    %c0_i32_0 = arith.constant 0 : i32
    return %arg0, %c0_i32 : i32, i32
  }
}

</mosaic_0001>

<llo_original>
// kernel: semantic_attention.3
$region0: #{semantic_attention.3}
  #allocation0 [shape = 'u32[]', space=smem, size = 0x4, offset = 0x4, fixed_abs, tag = 'smem constant byte address 0x4 - core index']
  #allocation1 [shape = 'u32[144,128]{1,0:T(1,128)}', space=vmem, size = 0x12000, scoped, tag = 'internal scratch']
  %s0 = inlined_call_operand.vmem [shape: f32[4], index: 0, kind: input, shape index: {}]
  %s1 = inlined_call_operand.vmem [shape: bf16[4,320,64], index: 1, kind: input, shape index: {}]
  %s2 = inlined_call_operand.vmem [shape: f32[320,64], index: 2, kind: output, shape index: {}]
  %s3 = sld [smem:[#allocation0]]
  $region86: #{semantic_attention.3} parent=0
    _
  %s5 = ssub.s32 1, %s3
  %s6 = scalar_select 0, %s5, %s3
  $region1: #{semantic_attention.3} parent=0
    #allocation2 [shape = 'u8[512]{0}', space=smem, size = 0x200, scoped, tag = 'input window, operand 0, single buffered']
    #allocation3 [shape = 's32[2]{0}', space=sflag, size = 0x8, scoped, tag = 'scoped memory for semantic_attention.3']
    #allocation4 [shape = 'u8[327680]{0}', space=vmem, size = 0x50000, scoped, tag = 'input window, operand 1']
    %7 = vsyncpa [#allocation3], 0
    loop: start=0, step=1, limit=4
    $region2: #{semantic_attention.3} parent=1 // loop_pre_header
      _
    $region3: #{semantic_attention.3} parent=1 // loop_header
      %s9 = sphi 0, %s13
      %p10 = scmp.ge.s32.totalorder %s9, 4
      %s17 = sphi 0, %s17
      %s19 = sphi 0, %s17
      %s20 = sphi 0, %s19
      %s34 = sphi 0, %s20
      %s40 = sphi 0, %s42
      %s43 = sphi 0, %s40
      %s44 = sphi 0, %s43
      %s60 = sphi 0, %s44
      %s66 = sphi 0, %s68
      %s69 = sphi 0, %s66
      %s70 = sphi 0, %s69
      %s86 = sphi 0, %s70
    $region4: #{semantic_attention.3} parent=1 // loop_header_branch
      %12 = sbr.rel (%p10) target = $region8
    $region5: #{semantic_attention.3} parent=1 // loop_body
      %s14 = ssub.s32 %s9, 1
      %s15 = ssub.s32 %s9, 2
      %s16 = sadd.s32 %s9, 1
      %s18 = sadd.s32 %s17, 1
      %p21 = scmp.eq.s32.totalorder %s9, 1
      %p22 = scmp.ne.s32.totalorder %s17, %s19
      %p23 = scmp.eq.s32.totalorder %s9, 0
      %p24 = por %p22, %p23
      %p25 = scmp.ne.s32.totalorder %s17, %s19
      %p26 = scmp.eq.s32.totalorder %s14, 1
      %p27 = por %p25, %p26
      %p28 = scmp.ne.s32.totalorder %s19, %s20
      %p29 = scmp.eq.s32.totalorder %s14, 0
      %p30 = por %p28, %p29
      %p31 = scmp.ne.s32.totalorder %s19, %s20
      %p32 = scmp.eq.s32.totalorder %s15, 1
      %p33 = por %p31, %p32
      %p35 = scmp.ne.s32.totalorder %s20, %s34
      %p36 = scmp.eq.s32.totalorder %s15, 0
      %p37 = por %p35, %p36
      %s38 = ssub.s32 %s9, %s16
      %p39 = scmp.eq.s32.totalorder %s38, 0
      %s41 = sadd.s32 %s40, 1
      %s42 = scalar_select %p39, %s40, %s41
      %p45 = pneg %p39
      %p46 = scmp.eq.s32.totalorder %s9, 1
      %p47 = por %p45, %p46
      %p48 = scmp.ne.s32.totalorder %s40, %s43
      %p49 = scmp.eq.s32.totalorder %s9, 0
      %p50 = por %p48, %p49
      %p51 = scmp.ne.s32.totalorder %s40, %s43
      %p52 = scmp.eq.s32.totalorder %s14, 1
      %p53 = por %p51, %p52
      %p54 = scmp.ne.s32.totalorder %s43, %s44
      %p55 = scmp.eq.s32.totalorder %s14, 0
      %p56 = por %p54, %p55
      %p57 = scmp.ne.s32.totalorder %s43, %s44
      %p58 = scmp.eq.s32.totalorder %s15, 1
      %p59 = por %p57, %p58
      %p61 = scmp.ne.s32.totalorder %s44, %s60
      %p62 = scmp.eq.s32.totalorder %s15, 0
      %p63 = por %p61, %p62
      %s64 = ssub.s32 %s9, %s16
      %p65 = scmp.eq.s32.totalorder %s64, 0
      %s67 = sadd.s32 %s66, 1
      %s68 = scalar_select %p65, %s66, %s67
      %p71 = pneg %p65
      %p72 = scmp.eq.s32.totalorder %s9, 1
      %p73 = por %p71, %p72
      %p74 = scmp.ne.s32.totalorder %s66, %s69
      %p75 = scmp.eq.s32.totalorder %s9, 0
      %p76 = por %p74, %p75
      %p77 = scmp.ne.s32.totalorder %s66, %s69
      %p78 = scmp.eq.s32.totalorder %s14, 1
      %p79 = por %p77, %p78
      %p80 = scmp.ne.s32.totalorder %s69, %s70
      %p81 = scmp.eq.s32.totalorder %s14, 0
      %p82 = por %p80, %p81
      %p83 = scmp.ne.s32.totalorder %s69, %s70
      %p84 = scmp.eq.s32.totalorder %s15, 1
      %p85 = por %p83, %p84
      %p87 = scmp.ne.s32.totalorder %s70, %s86
      %p88 = scmp.eq.s32.totalorder %s15, 0
      %p89 = por %p87, %p88
      %p90 = scmp.le.s32.totalorder 1, %s9
      %p91 = scmp.lt.s32.totalorder %s9, 3
      %p92 = pnand %p90, %p91
      %p93 = pneg %p92
      // Predicated region
      $region9: #{semantic_attention.3} parent=5 // pred_check
        _
      $region10: #{semantic_attention.3} parent=5 // pred_check_branch
        %95 = sbr.rel (%p92) target = $region12
      $region11: #{semantic_attention.3} parent=5 // pred_region
        %s96 = ssub.s32 %s9, 1
        // Predicated region
        $region13: #{semantic_attention.3} parent=11 // pred_check
          %p97 = pneg %p30
        $region14: #{semantic_attention.3} parent=11 // pred_check_branch
          %99 = sbr.rel (%p97) target = $region16
        $region15: #{semantic_attention.3} parent=11 // pred_region
          %s101 = ssub.s32 16, 16
          %102 = vsyncadd [#allocation3], %s101
          %s104 = sshll.u32 %s0, 4
          %s105 = int_to_ptr.vmem [resolvable:$true] %s104
          %107 = dma.vmem_to_smem %s105, 16, [#allocation2], [#allocation3]
        $region16: #{semantic_attention.3} parent=11 // pred_fallthru
          _
      $region12: #{semantic_attention.3} parent=5 // pred_fallthru
        _
      %p108 = scmp.lt.s32.totalorder %s9, 2
      // Predicated region
      $region17: #{semantic_attention.3} parent=5 // pred_check
        %p109 = pneg %p108
      $region18: #{semantic_attention.3} parent=5 // pred_check_branch
        %111 = sbr.rel (%p109) target = $region20
      $region19: #{semantic_attention.3} parent=5 // pred_region
        // Predicated region
        $region21: #{semantic_attention.3} parent=19 // pred_check
          %p112 = pneg %p50
        $region22: #{semantic_attention.3} parent=19 // pred_check_branch
          %114 = sbr.rel (%p112) target = $region24
        $region23: #{semantic_attention.3} parent=19 // pred_region
          %s115 = sand.u32 %s40, 1
          %s116 = sand.u32 %s40, 1
          %s117 = smul.addr %s116, 320
          %s118 = scalar_lea.vmem [#allocation4], %s117
          %s119 = smul.u32 20, %s9
          %s120 = smul.addr %s119, 4
          %s121 = scalar_lea.vmem %s1, %s120
          // Predicated region
          $region25: #{semantic_attention.3} parent=23 // pred_check
            _
          $region26: #{semantic_attention.3} parent=23 // pred_check_branch
            %123 = sbr.rel (0) target = $region28
          $region27: #{semantic_attention.3} parent=23 // pred_region
            // Predicated region
            $region29: #{semantic_attention.3} parent=27 // pred_check
              _
            $region30: #{semantic_attention.3} parent=27 // pred_check_branch
              %125 = sbr.rel target = $region32
            $region31: #{semantic_attention.3} parent=27 // pred_region
              // Predicated region
              $region44: #{semantic_attention.3} parent=31 // pred_check
                _
              $region45: #{semantic_attention.3} parent=31 // pred_check_branch
                %298 = sbr.rel (0) target = $region47
              $region46: #{semantic_attention.3} parent=31 // pred_region
                loop: start=0, step=1, limit=1
                $region48: #{semantic_attention.3} parent=46 // loop_pre_header
                  _
                $region49: #{semantic_attention.3} parent=46 // loop_header
                  %s300 = sphi 0, %s304
                  %p301 = scmp.ge.s32.totalorder %s300, 1
                  %s305 = sphi %s121, %s121
                  %s306 = sphi %s118, %s118
                $region50: #{semantic_attention.3} parent=46 // loop_header_branch
                  %303 = sbr.rel (%p301) target = $region54
                $region51: #{semantic_attention.3} parent=46 // loop_body
                  _
                $region52: #{semantic_attention.3} parent=46 // loop_footer
                  %s304 = sadd.s32 1, %s300
                $region53: #{semantic_attention.3} parent=46 // loop_footer_branch
                  %299 = sbr.rel target = $region49
                $region54: #{semantic_attention.3} parent=46 // loop_exit
                  _
                loop: start=0, step=1, limit=1
                $region55: #{semantic_attention.3} parent=46 // loop_pre_header
                  _
                $region56: #{semantic_attention.3} parent=46 // loop_header
                  %s309 = sphi 0, %s313
                  %p310 = scmp.ge.s32.totalorder %s309, 1
                  %s314 = sphi %s121, %s121
                  %s315 = sphi %s118, %s118
                $region57: #{semantic_attention.3} parent=46 // loop_header_branch
                  %312 = sbr.rel (%p310) target = $region61
                $region58: #{semantic_attention.3} parent=46 // loop_body
                  %v316 = vld [vmem:[%s314] sm:$0xf]
                  %317 = vst [vmem:[%s315] sm:$0xf] %v316
                  %v318 = vld [vmem:[%s314 + $0x4] sm:$0xf]
                  %319 = vst [vmem:[%s315 + $0x4] sm:$0xf] %v318
                  %v320 = vld [vmem:[%s314 + $0x8] sm:$0xf]
                  %321 = vst [vmem:[%s315 + $0x8] sm:$0xf] %v320
                  %v322 = vld [vmem:[%s314 + $0xc] sm:$0xf]
                  %323 = vst [vmem:[%s315 + $0xc] sm:$0xf] %v322
                  %v324 = vld [vmem:[%s314 + $0x10] sm:$0xf]
                  %325 = vst [vmem:[%s315 + $0x10] sm:$0xf] %v324
                  %v326 = vld [vmem:[%s314 + $0x14] sm:$0xf]
                  %327 = vst [vmem:[%s315 + $0x14] sm:$0xf] %v326
                  %v328 = vld [vmem:[%s314 + $0x18] sm:$0xf]
                  %329 = vst [vmem:[%s315 + $0x18] sm:$0xf] %v328
                  %v330 = vld [vmem:[%s314 + $0x1c] sm:$0xf]
                  %331 = vst [vmem:[%s315 + $0x1c] sm:$0xf] %v330
                  %v332 = vld [vmem:[%s314 + $0x20] sm:$0xf]
                  %333 = vst [vmem:[%s315 + $0x20] sm:$0xf] %v332
                  %v334 = vld [vmem:[%s314 + $0x24] sm:$0xf]
                  %335 = vst [vmem:[%s315 + $0x24] sm:$0xf] %v334
                  %v336 = vld [vmem:[%s314 + $0x28] sm:$0xf]
                  %337 = vst [vmem:[%s315 + $0x28] sm:$0xf] %v336
                  %v338 = vld [vmem:[%s314 + $0x2c] sm:$0xf]
                  %339 = vst [vmem:[%s315 + $0x2c] sm:$0xf] %v338
                  %v340 = vld [vmem:[%s314 + $0x30] sm:$0xf]
                  %341 = vst [vmem:[%s315 + $0x30] sm:$0xf] %v340
                  %v342 = vld [vmem:[%s314 + $0x34] sm:$0xf]
                  %343 = vst [vmem:[%s315 + $0x34] sm:$0xf] %v342
                  %v344 = vld [vmem:[%s314 + $0x38] sm:$0xf]
                  %345 = vst [vmem:[%s315 + $0x38] sm:$0xf] %v344
                  %v346 = vld [vmem:[%s314 + $0x3c] sm:$0xf]
                  %347 = vst [vmem:[%s315 + $0x3c] sm:$0xf] %v346
                  %v348 = vld [vmem:[%s314 + $0x40] sm:$0xf]
                  %349 = vst [vmem:[%s315 + $0x40] sm:$0xf] %v348
                  %v350 = vld [vmem:[%s314 + $0x44] sm:$0xf]
                  %351 = vst [vmem:[%s315 + $0x44] sm:$0xf] %v350
                  %v352 = vld [vmem:[%s314 + $0x48] sm:$0xf]
                  %353 = vst [vmem:[%s315 + $0x48] sm:$0xf] %v352
                  %v354 = vld [vmem:[%s314 + $0x4c] sm:$0xf]
                  %355 = vst [vmem:[%s315 + $0x4c] sm:$0xf] %v354
                  %v356 = vld [vmem:[%s314 + $0xa0] sm:$0xf]
                  %357 = vst [vmem:[%s315 + $0x50] sm:$0xf] %v356
                  %v358 = vld [vmem:[%s314 + $0xa4] sm:$0xf]
                  %359 = vst [vmem:[%s315 + $0x54] sm:$0xf] %v358
                  %v360 = vld [vmem:[%s314 + $0xa8] sm:$0xf]
                  %361 = vst [vmem:[%s315 + $0x58] sm:$0xf] %v360
                  %v362 = vld [vmem:[%s314 + $0xac] sm:$0xf]
                  %363 = vst [vmem:[%s315 + $0x5c] sm:$0xf] %v362
                  %v364 = vld [vmem:[%s314 + $0xb0] sm:$0xf]
                  %365 = vst [vmem:[%s315 + $0x60] sm:$0xf] %v364
                  %v366 = vld [vmem:[%s314 + $0xb4] sm:$0xf]
                  %367 = vst [vmem:[%s315 + $0x64] sm:$0xf] %v366
                  %v368 = vld [vmem:[%s314 + $0xb8] sm:$0xf]
                  %369 = vst [vmem:[%s315 + $0x68] sm:$0xf] %v368
                  %v370 = vld [vmem:[%s314 + $0xbc] sm:$0xf]
                  %371 = vst [vmem:[%s315 + $0x6c] sm:$0xf] %v370
                  %v372 = vld [vmem:[%s314 + $0xc0] sm:$0xf]
                  %373 = vst [vmem:[%s315 + $0x70] sm:$0xf] %v372
                  %v374 = vld [vmem:[%s314 + $0xc4] sm:$0xf]
                  %375 = vst [vmem:[%s315 + $0x74] sm:$0xf] %v374
                  %v376 = vld [vmem:[%s314 + $0xc8] sm:$0xf]
                  %377 = vst [vmem:[%s315 + $0x78] sm:$0xf] %v376
                  %v378 = vld [vmem:[%s314 + $0xcc] sm:$0xf]
                  %379 = vst [vmem:[%s315 + $0x7c] sm:$0xf] %v378
                  %v380 = vld [vmem:[%s314 + $0xd0] sm:$0xf]
                  %381 = vst [vmem:[%s315 + $0x80] sm:$0xf] %v380
                  %v382 = vld [vmem:[%s314 + $0xd4] sm:$0xf]
                  %383 = vst [vmem:[%s315 + $0x84] sm:$0xf] %v382
                  %v384 = vld [vmem:[%s314 + $0xd8] sm:$0xf]
                  %385 = vst [vmem:[%s315 + $0x88] sm:$0xf] %v384
                  %v386 = vld [vmem:[%s314 + $0xdc] sm:$0xf]
                  %387 = vst [vmem:[%s315 + $0x8c] sm:$0xf] %v386
                  %v388 = vld [vmem:[%s314 + $0xe0] sm:$0xf]
                  %389 = vst [vmem:[%s315 + $0x90] sm:$0xf] %v388
                  %v390 = vld [vmem:[%s314 + $0xe4] sm:$0xf]
                  %391 = vst [vmem:[%s315 + $0x94] sm:$0xf] %v390
                  %v392 = vld [vmem:[%s314 + $0xe8] sm:$0xf]
                  %393 = vst [vmem:[%s315 + $0x98] sm:$0xf] %v392
                  %v394 = vld [vmem:[%s314 + $0xec] sm:$0xf]
                  %395 = vst [vmem:[%s315 + $0x9c] sm:$0xf] %v394
                  %v396 = vld [vmem:[%s314 + $0x140] sm:$0xf]
                  %397 = vst [vmem:[%s315 + $0xa0] sm:$0xf] %v396
                  %v398 = vld [vmem:[%s314 + $0x144] sm:$0xf]
                  %399 = vst [vmem:[%s315 + $0xa4] sm:$0xf] %v398
                  %v400 = vld [vmem:[%s314 + $0x148] sm:$0xf]
                  %401 = vst [vmem:[%s315 + $0xa8] sm:$0xf] %v400
                  %v402 = vld [vmem:[%s314 + $0x14c] sm:$0xf]
                  %403 = vst [vmem:[%s315 + $0xac] sm:$0xf] %v402
                  %v404 = vld [vmem:[%s314 + $0x150] sm:$0xf]
                  %405 = vst [vmem:[%s315 + $0xb0] sm:$0xf] %v404
                  %v406 = vld [vmem:[%s314 + $0x154] sm:$0xf]
                  %407 = vst [vmem:[%s315 + $0xb4] sm:$0xf] %v406
                  %v408 = vld [vmem:[%s314 + $0x158] sm:$0xf]
                  %409 = vst [vmem:[%s315 + $0xb8] sm:$0xf] %v408
                  %v410 = vld [vmem:[%s314 + $0x15c] sm:$0xf]
                  %411 = vst [vmem:[%s315 + $0xbc] sm:$0xf] %v410
                  %v412 = vld [vmem:[%s314 + $0x160] sm:$0xf]
                  %413 = vst [vmem:[%s315 + $0xc0] sm:$0xf] %v412
                  %v414 = vld [vmem:[%s314 + $0x164] sm:$0xf]
                  %415 = vst [vmem:[%s315 + $0xc4] sm:$0xf] %v414
                  %v416 = vld [vmem:[%s314 + $0x168] sm:$0xf]
                  %417 = vst [vmem:[%s315 + $0xc8] sm:$0xf] %v416
                  %v418 = vld [vmem:[%s314 + $0x16c] sm:$0xf]
                  %419 = vst [vmem:[%s315 + $0xcc] sm:$0xf] %v418
                  %v420 = vld [vmem:[%s314 + $0x170] sm:$0xf]
                  %421 = vst [vmem:[%s315 + $0xd0] sm:$0xf] %v420
                  %v422 = vld [vmem:[%s314 + $0x174] sm:$0xf]
                  %423 = vst [vmem:[%s315 + $0xd4] sm:$0xf] %v422
                  %v424 = vld [vmem:[%s314 + $0x178] sm:$0xf]
                  %425 = vst [vmem:[%s315 + $0xd8] sm:$0xf] %v424
                  %v426 = vld [vmem:[%s314 + $0x17c] sm:$0xf]
                  %427 = vst [vmem:[%s315 + $0xdc] sm:$0xf] %v426
                  %v428 = vld [vmem:[%s314 + $0x180] sm:$0xf]
                  %429 = vst [vmem:[%s315 + $0xe0] sm:$0xf] %v428
                  %v430 = vld [vmem:[%s314 + $0x184] sm:$0xf]
                  %431 = vst [vmem:[%s315 + $0xe4] sm:$0xf] %v430
                  %v432 = vld [vmem:[%s314 + $0x188] sm:$0xf]
                  %433 = vst [vmem:[%s315 + $0xe8] sm:$0xf] %v432
                  %v434 = vld [vmem:[%s314 + $0x18c] sm:$0xf]
                  %435 = vst [vmem:[%s315 + $0xec] sm:$0xf] %v434
                  %v436 = vld [vmem:[%s314 + $0x1e0] sm:$0xf]
                  %437 = vst [vmem:[%s315 + $0xf0] sm:$0xf] %v436
                  %v438 = vld [vmem:[%s314 + $0x1e4] sm:$0xf]
                  %439 = vst [vmem:[%s315 + $0xf4] sm:$0xf] %v438
                  %v440 = vld [vmem:[%s314 + $0x1e8] sm:$0xf]
                  %441 = vst [vmem:[%s315 + $0xf8] sm:$0xf] %v440
                  %v442 = vld [vmem:[%s314 + $0x1ec] sm:$0xf]
                  %443 = vst [vmem:[%s315 + $0xfc] sm:$0xf] %v442
                  %v444 = vld [vmem:[%s314 + $0x1f0] sm:$0xf]
                  %445 = vst [vmem:[%s315 + $0x100] sm:$0xf] %v444
                  %v446 = vld [vmem:[%s314 + $0x1f4] sm:$0xf]
                  %447 = vst [vmem:[%s315 + $0x104] sm:$0xf] %v446
                  %v448 = vld [vmem:[%s314 + $0x1f8] sm:$0xf]
                  %449 = vst [vmem:[%s315 + $0x108] sm:$0xf] %v448
                  %v450 = vld [vmem:[%s314 + $0x1fc] sm:$0xf]
                  %451 = vst [vmem:[%s315 + $0x10c] sm:$0xf] %v450
                  %v452 = vld [vmem:[%s314 + $0x200] sm:$0xf]
                  %453 = vst [vmem:[%s315 + $0x110] sm:$0xf] %v452
                  %v454 = vld [vmem:[%s314 + $0x204] sm:$0xf]
                  %455 = vst [vmem:[%s315 + $0x114] sm:$0xf] %v454
                  %v456 = vld [vmem:[%s314 + $0x208] sm:$0xf]
                  %457 = vst [vmem:[%s315 + $0x118] sm:$0xf] %v456
                  %v458 = vld [vmem:[%s314 + $0x20c] sm:$0xf]
                  %459 = vst [vmem:[%s315 + $0x11c] sm:$0xf] %v458
                  %v460 = vld [vmem:[%s314 + $0x210] sm:$0xf]
                  %461 = vst [vmem:[%s315 + $0x120] sm:$0xf] %v460
                  %v462 = vld [vmem:[%s314 + $0x214] sm:$0xf]
                  %463 = vst [vmem:[%s315 + $0x124] sm:$0xf] %v462
                  %v464 = vld [vmem:[%s314 + $0x218] sm:$0xf]
                  %465 = vst [vmem:[%s315 + $0x128] sm:$0xf] %v464
                  %v466 = vld [vmem:[%s314 + $0x21c] sm:$0xf]
                  %467 = vst [vmem:[%s315 + $0x12c] sm:$0xf] %v466
                  %v468 = vld [vmem:[%s314 + $0x220] sm:$0xf]
                  %469 = vst [vmem:[%s315 + $0x130] sm:$0xf] %v468
                  %v470 = vld [vmem:[%s314 + $0x224] sm:$0xf]
                  %471 = vst [vmem:[%s315 + $0x134] sm:$0xf] %v470
                  %v472 = vld [vmem:[%s314 + $0x228] sm:$0xf]
                  %473 = vst [vmem:[%s315 + $0x138] sm:$0xf] %v472
                  %v474 = vld [vmem:[%s314 + $0x22c] sm:$0xf]
                  %475 = vst [vmem:[%s315 + $0x13c] sm:$0xf] %v474
                $region59: #{semantic_attention.3} parent=46 // loop_footer
                  %s313 = sadd.s32 1, %s309
                $region60: #{semantic_attention.3} parent=46 // loop_footer_branch
                  %308 = sbr.rel target = $region56
                $region61: #{semantic_attention.3} parent=46 // loop_exit
                  _
              $region47: #{semantic_attention.3} parent=31 // pred_fallthru
                _
            $region32: #{semantic_attention.3} parent=27 // pred_fallthru
              _
            // Predicated region
            $region33: #{semantic_attention.3} parent=27 // pred_check
              _
            $region34: #{semantic_attention.3} parent=27 // pred_check_branch
              %127 = sbr.rel (0) target = $region36
            $region35: #{semantic_attention.3} parent=27 // pred_region
              loop: start=0, step=1, limit=1
              $region37: #{semantic_attention.3} parent=35 // loop_pre_header
                _
              $region38: #{semantic_attention.3} parent=35 // loop_header
                %s130 = sphi 0, %s134
                %p131 = scmp.ge.s32.totalorder %s130, 1
                %s135 = sphi %s121, %s121
                %s136 = sphi %s118, %s118
              $region39: #{semantic_attention.3} parent=35 // loop_header_branch
                %133 = sbr.rel (%p131) target = $region43
              $region40: #{semantic_attention.3} parent=35 // loop_body
                %v137 = vld [vmem:[%s135] sm:$0xf]
                %138 = vst [vmem:[%s136] sm:$0xf] %v137
                %v139 = vld [vmem:[%s135 + $0x4] sm:$0xf]
                %140 = vst [vmem:[%s136 + $0x4] sm:$0xf] %v139
                %v141 = vld [vmem:[%s135 + $0x8] sm:$0xf]
                %142 = vst [vmem:[%s136 + $0x8] sm:$0xf] %v141
                %v143 = vld [vmem:[%s135 + $0xc] sm:$0xf]
                %144 = vst [vmem:[%s136 + $0xc] sm:$0xf] %v143
                %v145 = vld [vmem:[%s135 + $0x10] sm:$0xf]
                %146 = vst [vmem:[%s136 + $0x10] sm:$0xf] %v145
                %v147 = vld [vmem:[%s135 + $0x14] sm:$0xf]
                %148 = vst [vmem:[%s136 + $0x14] sm:$0xf] %v147
                %v149 = vld [vmem:[%s135 + $0x18] sm:$0xf]
                %150 = vst [vmem:[%s136 + $0x18] sm:$0xf] %v149
                %v151 = vld [vmem:[%s135 + $0x1c] sm:$0xf]
                %152 = vst [vmem:[%s136 + $0x1c] sm:$0xf] %v151
                %v153 = vld [vmem:[%s135 + $0x20] sm:$0xf]
                %154 = vst [vmem:[%s136 + $0x20] sm:$0xf] %v153
                %v155 = vld [vmem:[%s135 + $0x24] sm:$0xf]
                %156 = vst [vmem:[%s136 + $0x24] sm:$0xf] %v155
                %v157 = vld [vmem:[%s135 + $0x28] sm:$0xf]
                %158 = vst [vmem:[%s136 + $0x28] sm:$0xf] %v157
                %v159 = vld [vmem:[%s135 + $0x2c] sm:$0xf]
                %160 = vst [vmem:[%s136 + $0x2c] sm:$0xf] %v159
                %v161 = vld [vmem:[%s135 + $0x30] sm:$0xf]
                %162 = vst [vmem:[%s136 + $0x30] sm:$0xf] %v161
                %v163 = vld [vmem:[%s135 + $0x34] sm:$0xf]
                %164 = vst [vmem:[%s136 + $0x34] sm:$0xf] %v163
                %v165 = vld [vmem:[%s135 + $0x38] sm:$0xf]
                %166 = vst [vmem:[%s136 + $0x38] sm:$0xf] %v165
                %v167 = vld [vmem:[%s135 + $0x3c] sm:$0xf]
                %168 = vst [vmem:[%s136 + $0x3c] sm:$0xf] %v167
                %v169 = vld [vmem:[%s135 + $0x40] sm:$0xf]
                %170 = vst [vmem:[%s136 + $0x40] sm:$0xf] %v169
                %v171 = vld [vmem:[%s135 + $0x44] sm:$0xf]
                %172 = vst [vmem:[%s136 + $0x44] sm:$0xf] %v171
                %v173 = vld [vmem:[%s135 + $0x48] sm:$0xf]
                %174 = vst [vmem:[%s136 + $0x48] sm:$0xf] %v173
                %v175 = vld [vmem:[%s135 + $0x4c] sm:$0xf]
                %176 = vst [vmem:[%s136 + $0x4c] sm:$0xf] %v175
                %v177 = vld [vmem:[%s135 + $0xa0] sm:$0xf]
                %178 = vst [vmem:[%s136 + $0x50] sm:$0xf] %v177
                %v179 = vld [vmem:[%s135 + $0xa4] sm:$0xf]
                %180 = vst [vmem:[%s136 + $0x54] sm:$0xf] %v179
                %v181 = vld [vmem:[%s135 + $0xa8] sm:$0xf]
                %182 = vst [vmem:[%s136 + $0x58] sm:$0xf] %v181
                %v183 = vld [vmem:[%s135 + $0xac] sm:$0xf]
                %184 = vst [vmem:[%s136 + $0x5c] sm:$0xf] %v183
                %v185 = vld [vmem:[%s135 + $0xb0] sm:$0xf]
                %186 = vst [vmem:[%s136 + $0x60] sm:$0xf] %v185
                %v187 = vld [vmem:[%s135 + $0xb4] sm:$0xf]
                %188 = vst [vmem:[%s136 + $0x64] sm:$0xf] %v187
                %v189 = vld [vmem:[%s135 + $0xb8] sm:$0xf]
                %190 = vst [vmem:[%s136 + $0x68] sm:$0xf] %v189
                %v191 = vld [vmem:[%s135 + $0xbc] sm:$0xf]
                %192 = vst [vmem:[%s136 + $0x6c] sm:$0xf] %v191
                %v193 = vld [vmem:[%s135 + $0xc0] sm:$0xf]
                %194 = vst [vmem:[%s136 + $0x70] sm:$0xf] %v193
                %v195 = vld [vmem:[%s135 + $0xc4] sm:$0xf]
                %196 = vst [vmem:[%s136 + $0x74] sm:$0xf] %v195
                %v197 = vld [vmem:[%s135 + $0xc8] sm:$0xf]
                %198 = vst [vmem:[%s136 + $0x78] sm:$0xf] %v197
                %v199 = vld [vmem:[%s135 + $0xcc] sm:$0xf]
                %200 = vst [vmem:[%s136 + $0x7c] sm:$0xf] %v199
                %v201 = vld [vmem:[%s135 + $0xd0] sm:$0xf]
                %202 = vst [vmem:[%s136 + $0x80] sm:$0xf] %v201
                %v203 = vld [vmem:[%s135 + $0xd4] sm:$0xf]
                %204 = vst [vmem:[%s136 + $0x84] sm:$0xf] %v203
                %v205 = vld [vmem:[%s135 + $0xd8] sm:$0xf]
                %206 = vst [vmem:[%s136 + $0x88] sm:$0xf] %v205
                %v207 = vld [vmem:[%s135 + $0xdc] sm:$0xf]
                %208 = vst [vmem:[%s136 + $0x8c] sm:$0xf] %v207
                %v209 = vld [vmem:[%s135 + $0xe0] sm:$0xf]
                %210 = vst [vmem:[%s136 + $0x90] sm:$0xf] %v209
                %v211 = vld [vmem:[%s135 + $0xe4] sm:$0xf]
                %212 = vst [vmem:[%s136 + $0x94] sm:$0xf] %v211
                %v213 = vld [vmem:[%s135 + $0xe8] sm:$0xf]
                %214 = vst [vmem:[%s136 + $0x98] sm:$0xf] %v213
                %v215 = vld [vmem:[%s135 + $0xec] sm:$0xf]
                %216 = vst [vmem:[%s136 + $0x9c] sm:$0xf] %v215
                %v217 = vld [vmem:[%s135 + $0x140] sm:$0xf]
                %218 = vst [vmem:[%s136 + $0xa0] sm:$0xf] %v217
                %v219 = vld [vmem:[%s135 + $0x144] sm:$0xf]
                %220 = vst [vmem:[%s136 + $0xa4] sm:$0xf] %v219
                %v221 = vld [vmem:[%s135 + $0x148] sm:$0xf]
                %222 = vst [vmem:[%s136 + $0xa8] sm:$0xf] %v221
                %v223 = vld [vmem:[%s135 + $0x14c] sm:$0xf]
                %224 = vst [vmem:[%s136 + $0xac] sm:$0xf] %v223
                %v225 = vld [vmem:[%s135 + $0x150] sm:$0xf]
                %226 = vst [vmem:[%s136 + $0xb0] sm:$0xf] %v225
                %v227 = vld [vmem:[%s135 + $0x154] sm:$0xf]
                %228 = vst [vmem:[%s136 + $0xb4] sm:$0xf] %v227
                %v229 = vld [vmem:[%s135 + $0x158] sm:$0xf]
                %230 = vst [vmem:[%s136 + $0xb8] sm:$0xf] %v229
                %v231 = vld [vmem:[%s135 + $0x15c] sm:$0xf]
                %232 = vst [vmem:[%s136 + $0xbc] sm:$0xf] %v231
                %v233 = vld [vmem:[%s135 + $0x160] sm:$0xf]
                %234 = vst [vmem:[%s136 + $0xc0] sm:$0xf] %v233
                %v235 = vld [vmem:[%s135 + $0x164] sm:$0xf]
                %236 = vst [vmem:[%s136 + $0xc4] sm:$0xf] %v235
                %v237 = vld [vmem:[%s135 + $0x168] sm:$0xf]
                %238 = vst [vmem:[%s136 + $0xc8] sm:$0xf] %v237
                %v239 = vld [vmem:[%s135 + $0x16c] sm:$0xf]
                %240 = vst [vmem:[%s136 + $0xcc] sm:$0xf] %v239
                %v241 = vld [vmem:[%s135 + $0x170] sm:$0xf]
                %242 = vst [vmem:[%s136 + $0xd0] sm:$0xf] %v241
                %v243 = vld [vmem:[%s135 + $0x174] sm:$0xf]
                %244 = vst [vmem:[%s136 + $0xd4] sm:$0xf] %v243
                %v245 = vld [vmem:[%s135 + $0x178] sm:$0xf]
                %246 = vst [vmem:[%s136 + $0xd8] sm:$0xf] %v245
                %v247 = vld [vmem:[%s135 + $0x17c] sm:$0xf]
                %248 = vst [vmem:[%s136 + $0xdc] sm:$0xf] %v247
                %v249 = vld [vmem:[%s135 + $0x180] sm:$0xf]
                %250 = vst [vmem:[%s136 + $0xe0] sm:$0xf] %v249
                %v251 = vld [vmem:[%s135 + $0x184] sm:$0xf]
                %252 = vst [vmem:[%s136 + $0xe4] sm:$0xf] %v251
                %v253 = vld [vmem:[%s135 + $0x188] sm:$0xf]
                %254 = vst [vmem:[%s136 + $0xe8] sm:$0xf] %v253
                %v255 = vld [vmem:[%s135 + $0x18c] sm:$0xf]
                %256 = vst [vmem:[%s136 + $0xec] sm:$0xf] %v255
                %v257 = vld [vmem:[%s135 + $0x1e0] sm:$0xf]
                %258 = vst [vmem:[%s136 + $0xf0] sm:$0xf] %v257
                %v259 = vld [vmem:[%s135 + $0x1e4] sm:$0xf]
                %260 = vst [vmem:[%s136 + $0xf4] sm:$0xf] %v259
                %v261 = vld [vmem:[%s135 + $0x1e8] sm:$0xf]
                %262 = vst [vmem:[%s136 + $0xf8] sm:$0xf] %v261
                %v263 = vld [vmem:[%s135 + $0x1ec] sm:$0xf]
                %264 = vst [vmem:[%s136 + $0xfc] sm:$0xf] %v263
                %v265 = vld [vmem:[%s135 + $0x1f0] sm:$0xf]
                %266 = vst [vmem:[%s136 + $0x100] sm:$0xf] %v265
                %v267 = vld [vmem:[%s135 + $0x1f4] sm:$0xf]
                %268 = vst [vmem:[%s136 + $0x104] sm:$0xf] %v267
                %v269 = vld [vmem:[%s135 + $0x1f8] sm:$0xf]
                %270 = vst [vmem:[%s136 + $0x108] sm:$0xf] %v269
                %v271 = vld [vmem:[%s135 + $0x1fc] sm:$0xf]
                %272 = vst [vmem:[%s136 + $0x10c] sm:$0xf] %v271
                %v273 = vld [vmem:[%s135 + $0x200] sm:$0xf]
                %274 = vst [vmem:[%s136 + $0x110] sm:$0xf] %v273
                %v275 = vld [vmem:[%s135 + $0x204] sm:$0xf]
                %276 = vst [vmem:[%s136 + $0x114] sm:$0xf] %v275
                %v277 = vld [vmem:[%s135 + $0x208] sm:$0xf]
                %278 = vst [vmem:[%s136 + $0x118] sm:$0xf] %v277
                %v279 = vld [vmem:[%s135 + $0x20c] sm:$0xf]
                %280 = vst [vmem:[%s136 + $0x11c] sm:$0xf] %v279
                %v281 = vld [vmem:[%s135 + $0x210] sm:$0xf]
                %282 = vst [vmem:[%s136 + $0x120] sm:$0xf] %v281
                %v283 = vld [vmem:[%s135 + $0x214] sm:$0xf]
                %284 = vst [vmem:[%s136 + $0x124] sm:$0xf] %v283
                %v285 = vld [vmem:[%s135 + $0x218] sm:$0xf]
                %286 = vst [vmem:[%s136 + $0x128] sm:$0xf] %v285
                %v287 = vld [vmem:[%s135 + $0x21c] sm:$0xf]
                %288 = vst [vmem:[%s136 + $0x12c] sm:$0xf] %v287
                %v289 = vld [vmem:[%s135 + $0x220] sm:$0xf]
                %290 = vst [vmem:[%s136 + $0x130] sm:$0xf] %v289
                %v291 = vld [vmem:[%s135 + $0x224] sm:$0xf]
                %292 = vst [vmem:[%s136 + $0x134] sm:$0xf] %v291
                %v293 = vld [vmem:[%s135 + $0x228] sm:$0xf]
                %294 = vst [vmem:[%s136 + $0x138] sm:$0xf] %v293
                %v295 = vld [vmem:[%s135 + $0x22c] sm:$0xf]
                %296 = vst [vmem:[%s136 + $0x13c] sm:$0xf] %v295
              $region41: #{semantic_attention.3} parent=35 // loop_footer
                %s134 = sadd.s32 1, %s130
              $region42: #{semantic_attention.3} parent=35 // loop_footer_branch
                %129 = sbr.rel target = $region38
              $region43: #{semantic_attention.3} parent=35 // loop_exit
                _
            $region36: #{semantic_attention.3} parent=27 // pred_fallthru
              _
          $region28: #{semantic_attention.3} parent=23 // pred_fallthru
            _
          %476 = vnop
        $region24: #{semantic_attention.3} parent=19 // pred_fallthru
          _
      $region20: #{semantic_attention.3} parent=5 // pred_fallthru
        _
      %p477 = scmp.le.s32.totalorder 1, %s9
      %p478 = scmp.lt.s32.totalorder %s9, 3
      %p479 = pnand %p477, %p478
      %p480 = pneg %p479
      // Predicated region
      $region62: #{semantic_attention.3} parent=5 // pred_check
        _
      $region63: #{semantic_attention.3} parent=5 // pred_check_branch
        %482 = sbr.rel (%p479) target = $region65
      $region64: #{semantic_attention.3} parent=5 // pred_region
        %s483 = ssub.s32 %s9, 1
        // Predicated region
        $region66: #{semantic_attention.3} parent=64 // pred_check
          %p484 = pneg %p30
        $region67: #{semantic_attention.3} parent=64 // pred_check_branch
          %486 = sbr.rel (%p484) target = $region69
        $region68: #{semantic_attention.3} parent=64 // pred_region
          %487 = dma.done [#allocation3], 16
        $region69: #{semantic_attention.3} parent=64 // pred_fallthru
          _
        %s488 = sand.u32 %s43, 1
        %s489 = sand.u32 %s43, 1
        %s490 = smul.addr %s489, 320
        %s491 = scalar_lea.vmem [#allocation4], %s490
        // Predicated region
        $region70: #{semantic_attention.3} parent=64 // pred_check
          %p492 = pneg %p56
        $region71: #{semantic_attention.3} parent=64 // pred_check_branch
          %494 = sbr.rel (%p492) target = $region73
        $region72: #{semantic_attention.3} parent=64 // pred_region
          _
        $region73: #{semantic_attention.3} parent=64 // pred_fallthru
          _
        %495 = sfence
        %p496 = pneg %p30
        %p497 = pneg %p27
        %s498 = sand.u32 %s43, 1
        %s499 = sand.u32 %s43, 1
        %s500 = smul.addr %s499, 320
        %s501 = scalar_lea.vmem [#allocation4], %s500
        %p502 = pneg %p56
        %p503 = pneg %p53
        %p504 = pneg %p82
        %p505 = pneg %p79
        %s506 = smul.u32 20, %s14
        %p507 = scmp.lt.s32.totalorder %s506, 39
        %s508 = scalar_select %p507, %s506, 39
        %s509 = smul.addr %s508, 8
        %s510 = scalar_lea.vmem %s2, %s509
        %s511 = smul.u32 20, %s14
        %s512 = smul.u32 20, %s14
        %p513 = scmp.lt.s32.totalorder %s512, 39
        %s514 = scalar_select %p513, %s512, 39
        %s515 = smul.addr %s514, 8
        %s516 = scalar_lea.vmem %s2, %s515
        %s517 = smul.u32 20, %s14
        %s518 = sld [smem:[#allocation2]]
        %v519 = vld [vmem:[%s491] sm:$0xf]
        %v520 = vld [vmem:[%s491 + $0x4] sm:$0xf]
        %v521 = vld [vmem:[%s491 + $0x8] sm:$0xf]
        %v522 = vld [vmem:[%s491 + $0xc] sm:$0xf]
        %v523 = vld [vmem:[%s491 + $0x10] sm:$0xf]
        %v524 = vld [vmem:[%s491 + $0x14] sm:$0xf]
        %v525 = vld [vmem:[%s491 + $0x18] sm:$0xf]
        %v526 = vld [vmem:[%s491 + $0x1c] sm:$0xf]
        %v527 = vld [vmem:[%s491 + $0x20] sm:$0xf]
        %v528 = vld [vmem:[%s491 + $0x24] sm:$0xf]
        %v529 = vld [vmem:[%s491 + $0x28] sm:$0xf]
        %v530 = vld [vmem:[%s491 + $0x2c] sm:$0xf]
        %v531 = vld [vmem:[%s491 + $0x30] sm:$0xf]
        %v532 = vld [vmem:[%s491 + $0x34] sm:$0xf]
        %v533 = vld [vmem:[%s491 + $0x38] sm:$0xf]
        %v534 = vld [vmem:[%s491 + $0x3c] sm:$0xf]
        %v535 = vld [vmem:[%s491 + $0x40] sm:$0xf]
        %v536 = vld [vmem:[%s491 + $0x44] sm:$0xf]
        %v537 = vld [vmem:[%s491 + $0x48] sm:$0xf]
        %v538 = vld [vmem:[%s491 + $0x4c] sm:$0xf]
        %v539 = vunpack.c.l.bf16 %v519
        %v540 = vunpack.c.l.bf16 %v520
        %v541 = vunpack.c.l.bf16 %v521
        %v542 = vunpack.c.l.bf16 %v522
        %v543 = vunpack.c.l.bf16 %v523
        %v544 = vunpack.c.l.bf16 %v524
        %v545 = vunpack.c.l.bf16 %v525
        %v546 = vunpack.c.l.bf16 %v526
        %v547 = vunpack.c.l.bf16 %v527
        %v548 = vunpack.c.l.bf16 %v528
        %v549 = vunpack.c.l.bf16 %v529
        %v550 = vunpack.c.l.bf16 %v530
        %v551 = vunpack.c.l.bf16 %v531
        %v552 = vunpack.c.l.bf16 %v532
        %v553 = vunpack.c.l.bf16 %v533
        %v554 = vunpack.c.l.bf16 %v534
        %v555 = vunpack.c.l.bf16 %v535
        %v556 = vunpack.c.l.bf16 %v536
        %v557 = vunpack.c.l.bf16 %v537
        %v558 = vunpack.c.l.bf16 %v538
        %v559 = vstv %s518
        %v560 = vmul.f32 %v559, %v539
        %v561 = vmul.f32 %v559, %v540
        %v562 = vmul.f32 %v559, %v541
        %v563 = vmul.f32 %v559, %v542
        %v564 = vmul.f32 %v559, %v543
        %v565 = vmul.f32 %v559, %v544
        %v566 = vmul.f32 %v559, %v545
        %v567 = vmul.f32 %v559, %v546
        %v568 = vmul.f32 %v559, %v547
        %v569 = vmul.f32 %v559, %v548
        %v570 = vmul.f32 %v559, %v549
        %v571 = vmul.f32 %v559, %v550
        %v572 = vmul.f32 %v559, %v551
        %v573 = vmul.f32 %v559, %v552
        %v574 = vmul.f32 %v559, %v553
        %v575 = vmul.f32 %v559, %v554
        %v576 = vmul.f32 %v559, %v555
        %v577 = vmul.f32 %v559, %v556
        %v578 = vmul.f32 %v559, %v557
        %v579 = vmul.f32 %v559, %v558
        %s580 = sld [smem:[#allocation2 + $0x1]]
        %s581 = scalar_lea.vmem %s491, 80 [#allocation4]
        %v582 = vld [vmem:[%s581] sm:$0xf]
        %v583 = vld [vmem:[%s581 + $0x4] sm:$0xf]
        %v584 = vld [vmem:[%s581 + $0x8] sm:$0xf]
        %v585 = vld [vmem:[%s581 + $0xc] sm:$0xf]
        %v586 = vld [vmem:[%s581 + $0x10] sm:$0xf]
        %v587 = vld [vmem:[%s581 + $0x14] sm:$0xf]
        %v588 = vld [vmem:[%s581 + $0x18] sm:$0xf]
        %v589 = vld [vmem:[%s581 + $0x1c] sm:$0xf]
        %v590 = vld [vmem:[%s581 + $0x20] sm:$0xf]
        %v591 = vld [vmem:[%s581 + $0x24] sm:$0xf]
        %v592 = vld [vmem:[%s581 + $0x28] sm:$0xf]
        %v593 = vld [vmem:[%s581 + $0x2c] sm:$0xf]
        %v594 = vld [vmem:[%s581 + $0x30] sm:$0xf]
        %v595 = vld [vmem:[%s581 + $0x34] sm:$0xf]
        %v596 = vld [vmem:[%s581 + $0x38] sm:$0xf]
        %v597 = vld [vmem:[%s581 + $0x3c] sm:$0xf]
        %v598 = vld [vmem:[%s581 + $0x40] sm:$0xf]
        %v599 = vld [vmem:[%s581 + $0x44] sm:$0xf]
        %v600 = vld [vmem:[%s581 + $0x48] sm:$0xf]
        %v601 = vld [vmem:[%s581 + $0x4c] sm:$0xf]
        %v602 = vunpack.c.l.bf16 %v582
        %v603 = vunpack.c.l.bf16 %v583
        %v604 = vunpack.c.l.bf16 %v584
        %v605 = vunpack.c.l.bf16 %v585
        %v606 = vunpack.c.l.bf16 %v586
        %v607 = vunpack.c.l.bf16 %v587
        %v608 = vunpack.c.l.bf16 %v588
        %v609 = vunpack.c.l.bf16 %v589
        %v610 = vunpack.c.l.bf16 %v590
        %v611 = vunpack.c.l.bf16 %v591
        %v612 = vunpack.c.l.bf16 %v592
        %v613 = vunpack.c.l.bf16 %v593
        %v614 = vunpack.c.l.bf16 %v594
        %v615 = vunpack.c.l.bf16 %v595
        %v616 = vunpack.c.l.bf16 %v596
        %v617 = vunpack.c.l.bf16 %v597
        %v618 = vunpack.c.l.bf16 %v598
        %v619 = vunpack.c.l.bf16 %v599
        %v620 = vunpack.c.l.bf16 %v600
        %v621 = vunpack.c.l.bf16 %v601
        %v622 = vstv %s580
        %v623 = vmul.f32 %v622, %v602
        %v624 = vmul.f32 %v622, %v603
        %v625 = vmul.f32 %v622, %v604
        %v626 = vmul.f32 %v622, %v605
        %v627 = vmul.f32 %v622, %v606
        %v628 = vmul.f32 %v622, %v607
        %v629 = vmul.f32 %v622, %v608
        %v630 = vmul.f32 %v622, %v609
        %v631 = vmul.f32 %v622, %v610
        %v632 = vmul.f32 %v622, %v611
        %v633 = vmul.f32 %v622, %v612
        %v634 = vmul.f32 %v622, %v613
        %v635 = vmul.f32 %v622, %v614
        %v636 = vmul.f32 %v622, %v615
        %v637 = vmul.f32 %v622, %v616
        %v638 = vmul.f32 %v622, %v617
        %v639 = vmul.f32 %v622, %v618
        %v640 = vmul.f32 %v622, %v619
        %v641 = vmul.f32 %v622, %v620
        %v642 = vmul.f32 %v622, %v621
        %v643 = vadd.f32 %v560, %v623
        %v644 = vadd.f32 %v561, %v624
        %v645 = vadd.f32 %v562, %v625
        %v646 = vadd.f32 %v563, %v626
        %v647 = vadd.f32 %v564, %v627
        %v648 = vadd.f32 %v565, %v628
        %v649 = vadd.f32 %v566, %v629
        %v650 = vadd.f32 %v567, %v630
        %v651 = vadd.f32 %v568, %v631
        %v652 = vadd.f32 %v569, %v632
        %v653 = vadd.f32 %v570, %v633
        %v654 = vadd.f32 %v571, %v634
        %v655 = vadd.f32 %v572, %v635
        %v656 = vadd.f32 %v573, %v636
        %v657 = vadd.f32 %v574, %v637
        %v658 = vadd.f32 %v575, %v638
        %v659 = vadd.f32 %v576, %v639
        %v660 = vadd.f32 %v577, %v640
        %v661 = vadd.f32 %v578, %v641
        %v662 = vadd.f32 %v579, %v642
        %s663 = sld [smem:[#allocation2 + $0x2]]
        %s664 = scalar_lea.vmem %s491, 160 [#allocation4]
        %v665 = vld [vmem:[%s664] sm:$0xf]
        %v666 = vld [vmem:[%s664 + $0x4] sm:$0xf]
        %v667 = vld [vmem:[%s664 + $0x8] sm:$0xf]
        %v668 = vld [vmem:[%s664 + $0xc] sm:$0xf]
        %v669 = vld [vmem:[%s664 + $0x10] sm:$0xf]
        %v670 = vld [vmem:[%s664 + $0x14] sm:$0xf]
        %v671 = vld [vmem:[%s664 + $0x18] sm:$0xf]
        %v672 = vld [vmem:[%s664 + $0x1c] sm:$0xf]
        %v673 = vld [vmem:[%s664 + $0x20] sm:$0xf]
        %v674 = vld [vmem:[%s664 + $0x24] sm:$0xf]
        %v675 = vld [vmem:[%s664 + $0x28] sm:$0xf]
        %v676 = vld [vmem:[%s664 + $0x2c] sm:$0xf]
        %v677 = vld [vmem:[%s664 + $0x30] sm:$0xf]
        %v678 = vld [vmem:[%s664 + $0x34] sm:$0xf]
        %v679 = vld [vmem:[%s664 + $0x38] sm:$0xf]
        %v680 = vld [vmem:[%s664 + $0x3c] sm:$0xf]
        %v681 = vld [vmem:[%s664 + $0x40] sm:$0xf]
        %v682 = vld [vmem:[%s664 + $0x44] sm:$0xf]
        %v683 = vld [vmem:[%s664 + $0x48] sm:$0xf]
        %v684 = vld [vmem:[%s664 + $0x4c] sm:$0xf]
        %v685 = vunpack.c.l.bf16 %v665
        %v686 = vunpack.c.l.bf16 %v666
        %v687 = vunpack.c.l.bf16 %v667
        %v688 = vunpack.c.l.bf16 %v668
        %v689 = vunpack.c.l.bf16 %v669
        %v690 = vunpack.c.l.bf16 %v670
        %v691 = vunpack.c.l.bf16 %v671
        %v692 = vunpack.c.l.bf16 %v672
        %v693 = vunpack.c.l.bf16 %v673
        %v694 = vunpack.c.l.bf16 %v674
        %v695 = vunpack.c.l.bf16 %v675
        %v696 = vunpack.c.l.bf16 %v676
        %v697 = vunpack.c.l.bf16 %v677
        %v698 = vunpack.c.l.bf16 %v678
        %v699 = vunpack.c.l.bf16 %v679
        %v700 = vunpack.c.l.bf16 %v680
        %v701 = vunpack.c.l.bf16 %v681
        %v702 = vunpack.c.l.bf16 %v682
        %v703 = vunpack.c.l.bf16 %v683
        %v704 = vunpack.c.l.bf16 %v684
        %v705 = vstv %s663
        %v706 = vmul.f32 %v705, %v685
        %v707 = vmul.f32 %v705, %v686
        %v708 = vmul.f32 %v705, %v687
        %v709 = vmul.f32 %v705, %v688
        %v710 = vmul.f32 %v705, %v689
        %v711 = vmul.f32 %v705, %v690
        %v712 = vmul.f32 %v705, %v691
        %v713 = vmul.f32 %v705, %v692
        %v714 = vmul.f32 %v705, %v693
        %v715 = vmul.f32 %v705, %v694
        %v716 = vmul.f32 %v705, %v695
        %v717 = vmul.f32 %v705, %v696
        %v718 = vmul.f32 %v705, %v697
        %v719 = vmul.f32 %v705, %v698
        %v720 = vmul.f32 %v705, %v699
        %v721 = vmul.f32 %v705, %v700
        %v722 = vmul.f32 %v705, %v701
        %v723 = vmul.f32 %v705, %v702
        %v724 = vmul.f32 %v705, %v703
        %v725 = vmul.f32 %v705, %v704
        %v726 = vadd.f32 %v643, %v706
        %v727 = vadd.f32 %v644, %v707
        %v728 = vadd.f32 %v645, %v708
        %v729 = vadd.f32 %v646, %v709
        %v730 = vadd.f32 %v647, %v710
        %v731 = vadd.f32 %v648, %v711
        %v732 = vadd.f32 %v649, %v712
        %v733 = vadd.f32 %v650, %v713
        %v734 = vadd.f32 %v651, %v714
        %v735 = vadd.f32 %v652, %v715
        %v736 = vadd.f32 %v653, %v716
        %v737 = vadd.f32 %v654, %v717
        %v738 = vadd.f32 %v655, %v718
        %v739 = vadd.f32 %v656, %v719
        %v740 = vadd.f32 %v657, %v720
        %v741 = vadd.f32 %v658, %v721
        %v742 = vadd.f32 %v659, %v722
        %v743 = vadd.f32 %v660, %v723
        %v744 = vadd.f32 %v661, %v724
        %v745 = vadd.f32 %v662, %v725
        %s746 = sld [smem:[#allocation2 + $0x3]]
        %s747 = scalar_lea.vmem %s491, 240 [#allocation4]
        %v748 = vld [vmem:[%s747] sm:$0xf]
        %v749 = vld [vmem:[%s747 + $0x4] sm:$0xf]
        %v750 = vld [vmem:[%s747 + $0x8] sm:$0xf]
        %v751 = vld [vmem:[%s747 + $0xc] sm:$0xf]
        %v752 = vld [vmem:[%s747 + $0x10] sm:$0xf]
        %v753 = vld [vmem:[%s747 + $0x14] sm:$0xf]
        %v754 = vld [vmem:[%s747 + $0x18] sm:$0xf]
        %v755 = vld [vmem:[%s747 + $0x1c] sm:$0xf]
        %v756 = vld [vmem:[%s747 + $0x20] sm:$0xf]
        %v757 = vld [vmem:[%s747 + $0x24] sm:$0xf]
        %v758 = vld [vmem:[%s747 + $0x28] sm:$0xf]
        %v759 = vld [vmem:[%s747 + $0x2c] sm:$0xf]
        %v760 = vld [vmem:[%s747 + $0x30] sm:$0xf]
        %v761 = vld [vmem:[%s747 + $0x34] sm:$0xf]
        %v762 = vld [vmem:[%s747 + $0x38] sm:$0xf]
        %v763 = vld [vmem:[%s747 + $0x3c] sm:$0xf]
        %v764 = vld [vmem:[%s747 + $0x40] sm:$0xf]
        %v765 = vld [vmem:[%s747 + $0x44] sm:$0xf]
        %v766 = vld [vmem:[%s747 + $0x48] sm:$0xf]
        %v767 = vld [vmem:[%s747 + $0x4c] sm:$0xf]
        %v768 = vunpack.c.l.bf16 %v748
        %v769 = vunpack.c.l.bf16 %v749
        %v770 = vunpack.c.l.bf16 %v750
        %v771 = vunpack.c.l.bf16 %v751
        %v772 = vunpack.c.l.bf16 %v752
        %v773 = vunpack.c.l.bf16 %v753
        %v774 = vunpack.c.l.bf16 %v754
        %v775 = vunpack.c.l.bf16 %v755
        %v776 = vunpack.c.l.bf16 %v756
        %v777 = vunpack.c.l.bf16 %v757
        %v778 = vunpack.c.l.bf16 %v758
        %v779 = vunpack.c.l.bf16 %v759
        %v780 = vunpack.c.l.bf16 %v760
        %v781 = vunpack.c.l.bf16 %v761
        %v782 = vunpack.c.l.bf16 %v762
        %v783 = vunpack.c.l.bf16 %v763
        %v784 = vunpack.c.l.bf16 %v764
        %v785 = vunpack.c.l.bf16 %v765
        %v786 = vunpack.c.l.bf16 %v766
        %v787 = vunpack.c.l.bf16 %v767
        %v788 = vstv %s746
        %v789 = vmul.f32 %v788, %v768
        %v790 = vmul.f32 %v788, %v769
        %v791 = vmul.f32 %v788, %v770
        %v792 = vmul.f32 %v788, %v771
        %v793 = vmul.f32 %v788, %v772
        %v794 = vmul.f32 %v788, %v773
        %v795 = vmul.f32 %v788, %v774
        %v796 = vmul.f32 %v788, %v775
        %v797 = vmul.f32 %v788, %v776
        %v798 = vmul.f32 %v788, %v777
        %v799 = vmul.f32 %v788, %v778
        %v800 = vmul.f32 %v788, %v779
        %v801 = vmul.f32 %v788, %v780
        %v802 = vmul.f32 %v788, %v781
        %v803 = vmul.f32 %v788, %v782
        %v804 = vmul.f32 %v788, %v783
        %v805 = vmul.f32 %v788, %v784
        %v806 = vmul.f32 %v788, %v785
        %v807 = vmul.f32 %v788, %v786
        %v808 = vmul.f32 %v788, %v787
        %v809 = vadd.f32 %v726, %v789
        %v810 = vadd.f32 %v727, %v790
        %v811 = vadd.f32 %v728, %v791
        %v812 = vadd.f32 %v729, %v792
        %v813 = vadd.f32 %v730, %v793
        %v814 = vadd.f32 %v731, %v794
        %v815 = vadd.f32 %v732, %v795
        %v816 = vadd.f32 %v733, %v796
        %v817 = vadd.f32 %v734, %v797
        %v818 = vadd.f32 %v735, %v798
        %v819 = vadd.f32 %v736, %v799
        %v820 = vadd.f32 %v737, %v800
        %v821 = vadd.f32 %v738, %v801
        %v822 = vadd.f32 %v739, %v802
        %v823 = vadd.f32 %v740, %v803
        %v824 = vadd.f32 %v741, %v804
        %v825 = vadd.f32 %v742, %v805
        %v826 = vadd.f32 %v743, %v806
        %v827 = vadd.f32 %v744, %v807
        %v828 = vadd.f32 %v745, %v808
        %vm829 = vcmask 523264
        %830 = vst.msk [vmem:[%s516] sm:$0xff] %vm829, %v809
        %831 = vst.msk [vmem:[%s516 + $0x8] sm:$0xff] %vm829, %v810
        %832 = vst.msk [vmem:[%s516 + $0x10] sm:$0xff] %vm829, %v811
        %833 = vst.msk [vmem:[%s516 + $0x18] sm:$0xff] %vm829, %v812
        %834 = vst.msk [vmem:[%s516 + $0x20] sm:$0xff] %vm829, %v813
        %835 = vst.msk [vmem:[%s516 + $0x28] sm:$0xff] %vm829, %v814
        %836 = vst.msk [vmem:[%s516 + $0x30] sm:$0xff] %vm829, %v815
        %837 = vst.msk [vmem:[%s516 + $0x38] sm:$0xff] %vm829, %v816
        %838 = vst.msk [vmem:[%s516 + $0x40] sm:$0xff] %vm829, %v817
        %839 = vst.msk [vmem:[%s516 + $0x48] sm:$0xff] %vm829, %v818
        %840 = vst.msk [vmem:[%s516 + $0x50] sm:$0xff] %vm829, %v819
        %841 = vst.msk [vmem:[%s516 + $0x58] sm:$0xff] %vm829, %v820
        %842 = vst.msk [vmem:[%s516 + $0x60] sm:$0xff] %vm829, %v821
        %843 = vst.msk [vmem:[%s516 + $0x68] sm:$0xff] %vm829, %v822
        %844 = vst.msk [vmem:[%s516 + $0x70] sm:$0xff] %vm829, %v823
        %845 = vst.msk [vmem:[%s516 + $0x78] sm:$0xff] %vm829, %v824
        %846 = vst.msk [vmem:[%s516 + $0x80] sm:$0xff] %vm829, %v825
        %847 = vst.msk [vmem:[%s516 + $0x88] sm:$0xff] %vm829, %v826
        %848 = vst.msk [vmem:[%s516 + $0x90] sm:$0xff] %vm829, %v827
        %849 = vst.msk [vmem:[%s516 + $0x98] sm:$0xff] %vm829, %v828
        %s850 = smul.u32 20, %s14
        %p851 = scmp.lt.s32.totalorder %s850, 39
        %s852 = scalar_select %p851, %s850, 39
        %s853 = smul.addr %s852, 8
        %s854 = scalar_lea.vmem %s2, %s853
        // Predicated region
        $region74: #{semantic_attention.3} parent=64 // pred_check
          %p855 = pneg %p79
        $region75: #{semantic_attention.3} parent=64 // pred_check_branch
          %857 = sbr.rel (%p855) target = $region77
        $region76: #{semantic_attention.3} parent=64 // pred_region
          %s858 = smul.u32 20, %s14
        $region77: #{semantic_attention.3} parent=64 // pred_fallthru
          _
      $region65: #{semantic_attention.3} parent=5 // pred_fallthru
        _
      %p859 = scmp.le.s32.totalorder 2, %s9
      // Predicated region
      $region78: #{semantic_attention.3} parent=5 // pred_check
        %p860 = pneg %p859
      $region79: #{semantic_attention.3} parent=5 // pred_check_branch
        %862 = sbr.rel (%p860) target = $region81
      $region80: #{semantic_attention.3} parent=5 // pred_region
        %s863 = ssub.s32 %s9, 2
        // Predicated region
        $region82: #{semantic_attention.3} parent=80 // pred_check
          %p864 = pneg %p85
        $region83: #{semantic_attention.3} parent=80 // pred_check_branch
          %866 = sbr.rel (%p864) target = $region85
        $region84: #{semantic_attention.3} parent=80 // pred_region
          %s867 = smul.u32 20, %s15
          %p868 = scmp.lt.s32.totalorder %s867, 39
          %s869 = scalar_select %p868, %s867, 39
          %s870 = smul.addr %s869, 8
          %s871 = scalar_lea.vmem %s2, %s870
        $region85: #{semantic_attention.3} parent=80 // pred_fallthru
          _
      $region81: #{semantic_attention.3} parent=5 // pred_fallthru
        _
    $region6: #{semantic_attention.3} parent=1 // loop_footer
      %s13 = sadd.s32 1, %s9
    $region7: #{semantic_attention.3} parent=1 // loop_footer_branch
      %8 = sbr.rel target = $region3
    $region8: #{semantic_attention.3} parent=1 // loop_exit
      _
    %872 = vsyncpa [#allocation3], 1
    %s873 = scalar_lea.sflag [#allocation3], 1
    %874 = vsyncpa %s873, 1

// kernel: semantic_attention.2
$region0: #{semantic_attention.2}
  #allocation0 [shape = 'u32[]', space=smem, size = 0x4, offset = 0x4, fixed_abs, tag = 'smem constant byte address 0x4 - core index']
  #allocation1 [shape = 'u32[144,128]{1,0:T(1,128)}', space=vmem, size = 0x12000, scoped, tag = 'internal scratch']
  %s0 = inlined_call_operand.vmem [shape: bf16[4,320,64], index: 0, kind: input, shape index: {}]
  %s1 = inlined_call_operand.vmem [shape: bf16[64,128], index: 1, kind: input, shape index: {}]
  %s2 = inlined_call_operand.vmem [shape: f32[1,128], index: 2, kind: input, shape index: {}]
  %s3 = inlined_call_operand.vmem [shape: f32[1,128], index: 3, kind: input, shape index: {}]
  %s4 = inlined_call_operand.vmem [shape: f32[2,1,4], index: 4, kind: output, shape index: {}]
  %s5 = sld [smem:[#allocation0]]
  $region94: #{semantic_attention.2} parent=0
    _
  %s7 = ssub.s32 1, %s5
  %s8 = scalar_select 0, %s7, %s5
  $region1: #{semantic_attention.2} parent=0
    #allocation2 [shape = 'u8[327680]{0}', space=vmem, size = 0x50000, scoped, tag = 'input window, operand 0']
    loop: start=0, step=1, limit=4
    $region2: #{semantic_attention.2} parent=1 // loop_pre_header
      _
    $region3: #{semantic_attention.2} parent=1 // loop_header
      %s10 = sphi 0, %s14
      %p11 = scmp.ge.s32.totalorder %s10, 4
      %s17 = sphi 0, %s29
      %s18 = sphi 0, %s25
      %s19 = sphi 0, %s17
      %s20 = sphi 0, %s18
      %s21 = sphi 0, %s19
      %s22 = sphi 0, %s20
      %s34 = sphi 0, %s36
      %s37 = sphi 0, %s34
      %s38 = sphi 0, %s37
      %s54 = sphi 0, %s38
      %s58 = sphi 0, %s58
      %s60 = sphi 0, %s58
      %s61 = sphi 0, %s60
      %s75 = sphi 0, %s61
      %s79 = sphi 0, %s79
      %s81 = sphi 0, %s79
      %s82 = sphi 0, %s81
      %s96 = sphi 0, %s82
      %s100 = sphi 0, %s100
      %s102 = sphi 0, %s100
      %s103 = sphi 0, %s102
      %s117 = sphi 0, %s103
      %s123 = sphi 0, %s125
      %s126 = sphi 0, %s123
      %s127 = sphi 0, %s126
      %s143 = sphi 0, %s127
    $region4: #{semantic_attention.2} parent=1 // loop_header_branch
      %13 = sbr.rel (%p11) target = $region8
    $region5: #{semantic_attention.2} parent=1 // loop_body
      %s15 = ssub.s32 %s10, 1
      %s16 = ssub.s32 %s10, 2
      %s23 = sadd.s32 1, %s18
      %p24 = scmp.ge.s32.totalorder %s23, 1
      %s25 = scalar_select %p24, 0, %s23
      %s26 = sadd.s32 1, %s17
      %s27 = scalar_select %p24, %s26, %s17
      %p28 = scmp.ge.s32.totalorder %s27, 2
      %s29 = scalar_select %p28, 0, %s27
      %s30 = sadd.s32 %s17, %s18
      %s31 = sadd.s32 %s29, %s25
      %s32 = ssub.s32 %s30, %s31
      %p33 = scmp.eq.s32.totalorder %s32, 0
      %s35 = sadd.s32 %s34, 1
      %s36 = scalar_select %p33, %s34, %s35
      %p39 = pneg %p33
      %p40 = scmp.eq.s32.totalorder %s10, 1
      %p41 = por %p39, %p40
      %p42 = scmp.ne.s32.totalorder %s34, %s37
      %p43 = scmp.eq.s32.totalorder %s10, 0
      %p44 = por %p42, %p43
      %p45 = scmp.ne.s32.totalorder %s34, %s37
      %p46 = scmp.eq.s32.totalorder %s15, 1
      %p47 = por %p45, %p46
      %p48 = scmp.ne.s32.totalorder %s37, %s38
      %p49 = scmp.eq.s32.totalorder %s15, 0
      %p50 = por %p48, %p49
      %p51 = scmp.ne.s32.totalorder %s37, %s38
      %p52 = scmp.eq.s32.totalorder %s16, 1
      %p53 = por %p51, %p52
      %p55 = scmp.ne.s32.totalorder %s38, %s54
      %p56 = scmp.eq.s32.totalorder %s16, 0
      %p57 = por %p55, %p56
      %s59 = sadd.s32 %s58, 1
      %p62 = scmp.eq.s32.totalorder %s10, 1
      %p63 = scmp.ne.s32.totalorder %s58, %s60
      %p64 = scmp.eq.s32.totalorder %s10, 0
      %p65 = por %p63, %p64
      %p66 = scmp.ne.s32.totalorder %s58, %s60
      %p67 = scmp.eq.s32.totalorder %s15, 1
      %p68 = por %p66, %p67
      %p69 = scmp.ne.s32.totalorder %s60, %s61
      %p70 = scmp.eq.s32.totalorder %s15, 0
      %p71 = por %p69, %p70
      %p72 = scmp.ne.s32.totalorder %s60, %s61
      %p73 = scmp.eq.s32.totalorder %s16, 1
      %p74 = por %p72, %p73
      %p76 = scmp.ne.s32.totalorder %s61, %s75
      %p77 = scmp.eq.s32.totalorder %s16, 0
      %p78 = por %p76, %p77
      %s80 = sadd.s32 %s79, 1
      %p83 = scmp.eq.s32.totalorder %s10, 1
      %p84 = scmp.ne.s32.totalorder %s79, %s81
      %p85 = scmp.eq.s32.totalorder %s10, 0
      %p86 = por %p84, %p85
      %p87 = scmp.ne.s32.totalorder %s79, %s81
      %p88 = scmp.eq.s32.totalorder %s15, 1
      %p89 = por %p87, %p88
      %p90 = scmp.ne.s32.totalorder %s81, %s82
      %p91 = scmp.eq.s32.totalorder %s15, 0
      %p92 = por %p90, %p91
      %p93 = scmp.ne.s32.totalorder %s81, %s82
      %p94 = scmp.eq.s32.totalorder %s16, 1
      %p95 = por %p93, %p94
      %p97 = scmp.ne.s32.totalorder %s82, %s96
      %p98 = scmp.eq.s32.totalorder %s16, 0
      %p99 = por %p97, %p98
      %s101 = sadd.s32 %s100, 1
      %p104 = scmp.eq.s32.totalorder %s10, 1
      %p105 = scmp.ne.s32.totalorder %s100, %s102
      %p106 = scmp.eq.s32.totalorder %s10, 0
      %p107 = por %p105, %p106
      %p108 = scmp.ne.s32.totalorder %s100, %s102
      %p109 = scmp.eq.s32.totalorder %s15, 1
      %p110 = por %p108, %p109
      %p111 = scmp.ne.s32.totalorder %s102, %s103
      %p112 = scmp.eq.s32.totalorder %s15, 0
      %p113 = por %p111, %p112
      %p114 = scmp.ne.s32.totalorder %s102, %s103
      %p115 = scmp.eq.s32.totalorder %s16, 1
      %p116 = por %p114, %p115
      %p118 = scmp.ne.s32.totalorder %s103, %s117
      %p119 = scmp.eq.s32.totalorder %s16, 0
      %p120 = por %p118, %p119
      %s121 = ssub.s32 %s17, %s29
      %p122 = scmp.eq.s32.totalorder %s121, 0
      %s124 = sadd.s32 %s123, 1
      %s125 = scalar_select %p122, %s123, %s124
      %p128 = pneg %p122
      %p129 = scmp.eq.s32.totalorder %s10, 1
      %p130 = por %p128, %p129
      %p131 = scmp.ne.s32.totalorder %s123, %s126
      %p132 = scmp.eq.s32.totalorder %s10, 0
      %p133 = por %p131, %p132
      %p134 = scmp.ne.s32.totalorder %s123, %s126
      %p135 = scmp.eq.s32.totalorder %s15, 1
      %p136 = por %p134, %p135
      %p137 = scmp.ne.s32.totalorder %s126, %s127
      %p138 = scmp.eq.s32.totalorder %s15, 0
      %p139 = por %p137, %p138
      %p140 = scmp.ne.s32.totalorder %s126, %s127
      %p141 = scmp.eq.s32.totalorder %s16, 1
      %p142 = por %p140, %p141
      %p144 = scmp.ne.s32.totalorder %s127, %s143
      %p145 = scmp.eq.s32.totalorder %s16, 0
      %p146 = por %p144, %p145
      %p147 = scmp.le.s32.totalorder 1, %s10
      %p148 = scmp.lt.s32.totalorder %s10, 3
      %p149 = pnand %p147, %p148
      %p150 = pneg %p149
      // Predicated region
      $region9: #{semantic_attention.2} parent=5 // pred_check
        _
      $region10: #{semantic_attention.2} parent=5 // pred_check_branch
        %152 = sbr.rel (%p149) target = $region12
      $region11: #{semantic_attention.2} parent=5 // pred_region
        %s153 = ssub.s32 %s10, 1
        // Predicated region
        $region13: #{semantic_attention.2} parent=11 // pred_check
          %p154 = pneg %p71
        $region14: #{semantic_attention.2} parent=11 // pred_check_branch
          %156 = sbr.rel (%p154) target = $region16
        $region15: #{semantic_attention.2} parent=11 // pred_region
          _
        $region16: #{semantic_attention.2} parent=11 // pred_fallthru
          _
        // Predicated region
        $region17: #{semantic_attention.2} parent=11 // pred_check
          %p157 = pneg %p92
        $region18: #{semantic_attention.2} parent=11 // pred_check_branch
          %159 = sbr.rel (%p157) target = $region20
        $region19: #{semantic_attention.2} parent=11 // pred_region
          _
        $region20: #{semantic_attention.2} parent=11 // pred_fallthru
          _
        // Predicated region
        $region21: #{semantic_attention.2} parent=11 // pred_check
          %p160 = pneg %p113
        $region22: #{semantic_attention.2} parent=11 // pred_check_branch
          %162 = sbr.rel (%p160) target = $region24
        $region23: #{semantic_attention.2} parent=11 // pred_region
          _
        $region24: #{semantic_attention.2} parent=11 // pred_fallthru
          _
      $region12: #{semantic_attention.2} parent=5 // pred_fallthru
        _
      %p163 = scmp.lt.s32.totalorder %s10, 2
      // Predicated region
      $region25: #{semantic_attention.2} parent=5 // pred_check
        %p164 = pneg %p163
      $region26: #{semantic_attention.2} parent=5 // pred_check_branch
        %166 = sbr.rel (%p164) target = $region28
      $region27: #{semantic_attention.2} parent=5 // pred_region
        // Predicated region
        $region29: #{semantic_attention.2} parent=27 // pred_check
          %p167 = pneg %p44
        $region30: #{semantic_attention.2} parent=27 // pred_check_branch
          %169 = sbr.rel (%p167) target = $region32
        $region31: #{semantic_attention.2} parent=27 // pred_region
          %s170 = sand.u32 %s34, 1
          %s171 = sand.u32 %s34, 1
          %s172 = smul.addr %s171, 320
          %s173 = scalar_lea.vmem [#allocation2], %s172
          %s174 = sadd.s32 %s17, %s18
          %s175 = smul.u32 20, %s174
          %s176 = smul.addr %s175, 4
          %s177 = scalar_lea.vmem %s0, %s176
          // Predicated region
          $region33: #{semantic_attention.2} parent=31 // pred_check
            _
          $region34: #{semantic_attention.2} parent=31 // pred_check_branch
            %179 = sbr.rel (0) target = $region36
          $region35: #{semantic_attention.2} parent=31 // pred_region
            // Predicated region
            $region37: #{semantic_attention.2} parent=35 // pred_check
              _
            $region38: #{semantic_attention.2} parent=35 // pred_check_branch
              %181 = sbr.rel target = $region40
            $region39: #{semantic_attention.2} parent=35 // pred_region
              // Predicated region
              $region52: #{semantic_attention.2} parent=39 // pred_check
                _
              $region53: #{semantic_attention.2} parent=39 // pred_check_branch
                %354 = sbr.rel (0) target = $region55
              $region54: #{semantic_attention.2} parent=39 // pred_region
                loop: start=0, step=1, limit=1
                $region56: #{semantic_attention.2} parent=54 // loop_pre_header
                  _
                $region57: #{semantic_attention.2} parent=54 // loop_header
                  %s356 = sphi 0, %s360
                  %p357 = scmp.ge.s32.totalorder %s356, 1
                  %s361 = sphi %s177, %s177
                  %s362 = sphi %s173, %s173
                $region58: #{semantic_attention.2} parent=54 // loop_header_branch
                  %359 = sbr.rel (%p357) target = $region62
                $region59: #{semantic_attention.2} parent=54 // loop_body
                  _
                $region60: #{semantic_attention.2} parent=54 // loop_footer
                  %s360 = sadd.s32 1, %s356
                $region61: #{semantic_attention.2} parent=54 // loop_footer_branch
                  %355 = sbr.rel target = $region57
                $region62: #{semantic_attention.2} parent=54 // loop_exit
                  _
                loop: start=0, step=1, limit=1
                $region63: #{semantic_attention.2} parent=54 // loop_pre_header
                  _
                $region64: #{semantic_attention.2} parent=54 // loop_header
                  %s365 = sphi 0, %s369
                  %p366 = scmp.ge.s32.totalorder %s365, 1
                  %s370 = sphi %s177, %s177
                  %s371 = sphi %s173, %s173
                $region65: #{semantic_attention.2} parent=54 // loop_header_branch
                  %368 = sbr.rel (%p366) target = $region69
                $region66: #{semantic_attention.2} parent=54 // loop_body
                  %v372 = vld [vmem:[%s370] sm:$0xf]
                  %373 = vst [vmem:[%s371] sm:$0xf] %v372
                  %v374 = vld [vmem:[%s370 + $0x4] sm:$0xf]
                  %375 = vst [vmem:[%s371 + $0x4] sm:$0xf] %v374
                  %v376 = vld [vmem:[%s370 + $0x8] sm:$0xf]
                  %377 = vst [vmem:[%s371 + $0x8] sm:$0xf] %v376
                  %v378 = vld [vmem:[%s370 + $0xc] sm:$0xf]
                  %379 = vst [vmem:[%s371 + $0xc] sm:$0xf] %v378
                  %v380 = vld [vmem:[%s370 + $0x10] sm:$0xf]
                  %381 = vst [vmem:[%s371 + $0x10] sm:$0xf] %v380
                  %v382 = vld [vmem:[%s370 + $0x14] sm:$0xf]
                  %383 = vst [vmem:[%s371 + $0x14] sm:$0xf] %v382
                  %v384 = vld [vmem:[%s370 + $0x18] sm:$0xf]
                  %385 = vst [vmem:[%s371 + $0x18] sm:$0xf] %v384
                  %v386 = vld [vmem:[%s370 + $0x1c] sm:$0xf]
                  %387 = vst [vmem:[%s371 + $0x1c] sm:$0xf] %v386
                  %v388 = vld [vmem:[%s370 + $0x20] sm:$0xf]
                  %389 = vst [vmem:[%s371 + $0x20] sm:$0xf] %v388
                  %v390 = vld [vmem:[%s370 + $0x24] sm:$0xf]
                  %391 = vst [vmem:[%s371 + $0x24] sm:$0xf] %v390
                  %v392 = vld [vmem:[%s370 + $0x28] sm:$0xf]
                  %393 = vst [vmem:[%s371 + $0x28] sm:$0xf] %v392
                  %v394 = vld [vmem:[%s370 + $0x2c] sm:$0xf]
                  %395 = vst [vmem:[%s371 + $0x2c] sm:$0xf] %v394
                  %v396 = vld [vmem:[%s370 + $0x30] sm:$0xf]
                  %397 = vst [vmem:[%s371 + $0x30] sm:$0xf] %v396
                  %v398 = vld [vmem:[%s370 + $0x34] sm:$0xf]
                  %399 = vst [vmem:[%s371 + $0x34] sm:$0xf] %v398
                  %v400 = vld [vmem:[%s370 + $0x38] sm:$0xf]
                  %401 = vst [vmem:[%s371 + $0x38] sm:$0xf] %v400
                  %v402 = vld [vmem:[%s370 + $0x3c] sm:$0xf]
                  %403 = vst [vmem:[%s371 + $0x3c] sm:$0xf] %v402
                  %v404 = vld [vmem:[%s370 + $0x40] sm:$0xf]
                  %405 = vst [vmem:[%s371 + $0x40] sm:$0xf] %v404
                  %v406 = vld [vmem:[%s370 + $0x44] sm:$0xf]
                  %407 = vst [vmem:[%s371 + $0x44] sm:$0xf] %v406
                  %v408 = vld [vmem:[%s370 + $0x48] sm:$0xf]
                  %409 = vst [vmem:[%s371 + $0x48] sm:$0xf] %v408
                  %v410 = vld [vmem:[%s370 + $0x4c] sm:$0xf]
                  %411 = vst [vmem:[%s371 + $0x4c] sm:$0xf] %v410
                  %v412 = vld [vmem:[%s370 + $0xa0] sm:$0xf]
                  %413 = vst [vmem:[%s371 + $0x50] sm:$0xf] %v412
                  %v414 = vld [vmem:[%s370 + $0xa4] sm:$0xf]
                  %415 = vst [vmem:[%s371 + $0x54] sm:$0xf] %v414
                  %v416 = vld [vmem:[%s370 + $0xa8] sm:$0xf]
                  %417 = vst [vmem:[%s371 + $0x58] sm:$0xf] %v416
                  %v418 = vld [vmem:[%s370 + $0xac] sm:$0xf]
                  %419 = vst [vmem:[%s371 + $0x5c] sm:$0xf] %v418
                  %v420 = vld [vmem:[%s370 + $0xb0] sm:$0xf]
                  %421 = vst [vmem:[%s371 + $0x60] sm:$0xf] %v420
                  %v422 = vld [vmem:[%s370 + $0xb4] sm:$0xf]
                  %423 = vst [vmem:[%s371 + $0x64] sm:$0xf] %v422
                  %v424 = vld [vmem:[%s370 + $0xb8] sm:$0xf]
                  %425 = vst [vmem:[%s371 + $0x68] sm:$0xf] %v424
                  %v426 = vld [vmem:[%s370 + $0xbc] sm:$0xf]
                  %427 = vst [vmem:[%s371 + $0x6c] sm:$0xf] %v426
                  %v428 = vld [vmem:[%s370 + $0xc0] sm:$0xf]
                  %429 = vst [vmem:[%s371 + $0x70] sm:$0xf] %v428
                  %v430 = vld [vmem:[%s370 + $0xc4] sm:$0xf]
                  %431 = vst [vmem:[%s371 + $0x74] sm:$0xf] %v430
                  %v432 = vld [vmem:[%s370 + $0xc8] sm:$0xf]
                  %433 = vst [vmem:[%s371 + $0x78] sm:$0xf] %v432
                  %v434 = vld [vmem:[%s370 + $0xcc] sm:$0xf]
                  %435 = vst [vmem:[%s371 + $0x7c] sm:$0xf] %v434
                  %v436 = vld [vmem:[%s370 + $0xd0] sm:$0xf]
                  %437 = vst [vmem:[%s371 + $0x80] sm:$0xf] %v436
                  %v438 = vld [vmem:[%s370 + $0xd4] sm:$0xf]
                  %439 = vst [vmem:[%s371 + $0x84] sm:$0xf] %v438
                  %v440 = vld [vmem:[%s370 + $0xd8] sm:$0xf]
                  %441 = vst [vmem:[%s371 + $0x88] sm:$0xf] %v440
                  %v442 = vld [vmem:[%s370 + $0xdc] sm:$0xf]
                  %443 = vst [vmem:[%s371 + $0x8c] sm:$0xf] %v442
                  %v444 = vld [vmem:[%s370 + $0xe0] sm:$0xf]
                  %445 = vst [vmem:[%s371 + $0x90] sm:$0xf] %v444
                  %v446 = vld [vmem:[%s370 + $0xe4] sm:$0xf]
                  %447 = vst [vmem:[%s371 + $0x94] sm:$0xf] %v446
                  %v448 = vld [vmem:[%s370 + $0xe8] sm:$0xf]
                  %449 = vst [vmem:[%s371 + $0x98] sm:$0xf] %v448
                  %v450 = vld [vmem:[%s370 + $0xec] sm:$0xf]
                  %451 = vst [vmem:[%s371 + $0x9c] sm:$0xf] %v450
                  %v452 = vld [vmem:[%s370 + $0x140] sm:$0xf]
                  %453 = vst [vmem:[%s371 + $0xa0] sm:$0xf] %v452
                  %v454 = vld [vmem:[%s370 + $0x144] sm:$0xf]
                  %455 = vst [vmem:[%s371 + $0xa4] sm:$0xf] %v454
                  %v456 = vld [vmem:[%s370 + $0x148] sm:$0xf]
                  %457 = vst [vmem:[%s371 + $0xa8] sm:$0xf] %v456
                  %v458 = vld [vmem:[%s370 + $0x14c] sm:$0xf]
                  %459 = vst [vmem:[%s371 + $0xac] sm:$0xf] %v458
                  %v460 = vld [vmem:[%s370 + $0x150] sm:$0xf]
                  %461 = vst [vmem:[%s371 + $0xb0] sm:$0xf] %v460
                  %v462 = vld [vmem:[%s370 + $0x154] sm:$0xf]
                  %463 = vst [vmem:[%s371 + $0xb4] sm:$0xf] %v462
                  %v464 = vld [vmem:[%s370 + $0x158] sm:$0xf]
                  %465 = vst [vmem:[%s371 + $0xb8] sm:$0xf] %v464
                  %v466 = vld [vmem:[%s370 + $0x15c] sm:$0xf]
                  %467 = vst [vmem:[%s371 + $0xbc] sm:$0xf] %v466
                  %v468 = vld [vmem:[%s370 + $0x160] sm:$0xf]
                  %469 = vst [vmem:[%s371 + $0xc0] sm:$0xf] %v468
                  %v470 = vld [vmem:[%s370 + $0x164] sm:$0xf]
                  %471 = vst [vmem:[%s371 + $0xc4] sm:$0xf] %v470
                  %v472 = vld [vmem:[%s370 + $0x168] sm:$0xf]
                  %473 = vst [vmem:[%s371 + $0xc8] sm:$0xf] %v472
                  %v474 = vld [vmem:[%s370 + $0x16c] sm:$0xf]
                  %475 = vst [vmem:[%s371 + $0xcc] sm:$0xf] %v474
                  %v476 = vld [vmem:[%s370 + $0x170] sm:$0xf]
                  %477 = vst [vmem:[%s371 + $0xd0] sm:$0xf] %v476
                  %v478 = vld [vmem:[%s370 + $0x174] sm:$0xf]
                  %479 = vst [vmem:[%s371 + $0xd4] sm:$0xf] %v478
                  %v480 = vld [vmem:[%s370 + $0x178] sm:$0xf]
                  %481 = vst [vmem:[%s371 + $0xd8] sm:$0xf] %v480
                  %v482 = vld [vmem:[%s370 + $0x17c] sm:$0xf]
                  %483 = vst [vmem:[%s371 + $0xdc] sm:$0xf] %v482
                  %v484 = vld [vmem:[%s370 + $0x180] sm:$0xf]
                  %485 = vst [vmem:[%s371 + $0xe0] sm:$0xf] %v484
                  %v486 = vld [vmem:[%s370 + $0x184] sm:$0xf]
                  %487 = vst [vmem:[%s371 + $0xe4] sm:$0xf] %v486
                  %v488 = vld [vmem:[%s370 + $0x188] sm:$0xf]
                  %489 = vst [vmem:[%s371 + $0xe8] sm:$0xf] %v488
                  %v490 = vld [vmem:[%s370 + $0x18c] sm:$0xf]
                  %491 = vst [vmem:[%s371 + $0xec] sm:$0xf] %v490
                  %v492 = vld [vmem:[%s370 + $0x1e0] sm:$0xf]
                  %493 = vst [vmem:[%s371 + $0xf0] sm:$0xf] %v492
                  %v494 = vld [vmem:[%s370 + $0x1e4] sm:$0xf]
                  %495 = vst [vmem:[%s371 + $0xf4] sm:$0xf] %v494
                  %v496 = vld [vmem:[%s370 + $0x1e8] sm:$0xf]
                  %497 = vst [vmem:[%s371 + $0xf8] sm:$0xf] %v496
                  %v498 = vld [vmem:[%s370 + $0x1ec] sm:$0xf]
                  %499 = vst [vmem:[%s371 + $0xfc] sm:$0xf] %v498
                  %v500 = vld [vmem:[%s370 + $0x1f0] sm:$0xf]
                  %501 = vst [vmem:[%s371 + $0x100] sm:$0xf] %v500
                  %v502 = vld [vmem:[%s370 + $0x1f4] sm:$0xf]
                  %503 = vst [vmem:[%s371 + $0x104] sm:$0xf] %v502
                  %v504 = vld [vmem:[%s370 + $0x1f8] sm:$0xf]
                  %505 = vst [vmem:[%s371 + $0x108] sm:$0xf] %v504
                  %v506 = vld [vmem:[%s370 + $0x1fc] sm:$0xf]
                  %507 = vst [vmem:[%s371 + $0x10c] sm:$0xf] %v506
                  %v508 = vld [vmem:[%s370 + $0x200] sm:$0xf]
                  %509 = vst [vmem:[%s371 + $0x110] sm:$0xf] %v508
                  %v510 = vld [vmem:[%s370 + $0x204] sm:$0xf]
                  %511 = vst [vmem:[%s371 + $0x114] sm:$0xf] %v510
                  %v512 = vld [vmem:[%s370 + $0x208] sm:$0xf]
                  %513 = vst [vmem:[%s371 + $0x118] sm:$0xf] %v512
                  %v514 = vld [vmem:[%s370 + $0x20c] sm:$0xf]
                  %515 = vst [vmem:[%s371 + $0x11c] sm:$0xf] %v514
                  %v516 = vld [vmem:[%s370 + $0x210] sm:$0xf]
                  %517 = vst [vmem:[%s371 + $0x120] sm:$0xf] %v516
                  %v518 = vld [vmem:[%s370 + $0x214] sm:$0xf]
                  %519 = vst [vmem:[%s371 + $0x124] sm:$0xf] %v518
                  %v520 = vld [vmem:[%s370 + $0x218] sm:$0xf]
                  %521 = vst [vmem:[%s371 + $0x128] sm:$0xf] %v520
                  %v522 = vld [vmem:[%s370 + $0x21c] sm:$0xf]
                  %523 = vst [vmem:[%s371 + $0x12c] sm:$0xf] %v522
                  %v524 = vld [vmem:[%s370 + $0x220] sm:$0xf]
                  %525 = vst [vmem:[%s371 + $0x130] sm:$0xf] %v524
                  %v526 = vld [vmem:[%s370 + $0x224] sm:$0xf]
                  %527 = vst [vmem:[%s371 + $0x134] sm:$0xf] %v526
                  %v528 = vld [vmem:[%s370 + $0x228] sm:$0xf]
                  %529 = vst [vmem:[%s371 + $0x138] sm:$0xf] %v528
                  %v530 = vld [vmem:[%s370 + $0x22c] sm:$0xf]
                  %531 = vst [vmem:[%s371 + $0x13c] sm:$0xf] %v530
                $region67: #{semantic_attention.2} parent=54 // loop_footer
                  %s369 = sadd.s32 1, %s365
                $region68: #{semantic_attention.2} parent=54 // loop_footer_branch
                  %364 = sbr.rel target = $region64
                $region69: #{semantic_attention.2} parent=54 // loop_exit
                  _
              $region55: #{semantic_attention.2} parent=39 // pred_fallthru
                _
            $region40: #{semantic_attention.2} parent=35 // pred_fallthru
              _
            // Predicated region
            $region41: #{semantic_attention.2} parent=35 // pred_check
              _
            $region42: #{semantic_attention.2} parent=35 // pred_check_branch
              %183 = sbr.rel (0) target = $region44
            $region43: #{semantic_attention.2} parent=35 // pred_region
              loop: start=0, step=1, limit=1
              $region45: #{semantic_attention.2} parent=43 // loop_pre_header
                _
              $region46: #{semantic_attention.2} parent=43 // loop_header
                %s186 = sphi 0, %s190
                %p187 = scmp.ge.s32.totalorder %s186, 1
                %s191 = sphi %s177, %s177
                %s192 = sphi %s173, %s173
              $region47: #{semantic_attention.2} parent=43 // loop_header_branch
                %189 = sbr.rel (%p187) target = $region51
              $region48: #{semantic_attention.2} parent=43 // loop_body
                %v193 = vld [vmem:[%s191] sm:$0xf]
                %194 = vst [vmem:[%s192] sm:$0xf] %v193
                %v195 = vld [vmem:[%s191 + $0x4] sm:$0xf]
                %196 = vst [vmem:[%s192 + $0x4] sm:$0xf] %v195
                %v197 = vld [vmem:[%s191 + $0x8] sm:$0xf]
                %198 = vst [vmem:[%s192 + $0x8] sm:$0xf] %v197
                %v199 = vld [vmem:[%s191 + $0xc] sm:$0xf]
                %200 = vst [vmem:[%s192 + $0xc] sm:$0xf] %v199
                %v201 = vld [vmem:[%s191 + $0x10] sm:$0xf]
                %202 = vst [vmem:[%s192 + $0x10] sm:$0xf] %v201
                %v203 = vld [vmem:[%s191 + $0x14] sm:$0xf]
                %204 = vst [vmem:[%s192 + $0x14] sm:$0xf] %v203
                %v205 = vld [vmem:[%s191 + $0x18] sm:$0xf]
                %206 = vst [vmem:[%s192 + $0x18] sm:$0xf] %v205
                %v207 = vld [vmem:[%s191 + $0x1c] sm:$0xf]
                %208 = vst [vmem:[%s192 + $0x1c] sm:$0xf] %v207
                %v209 = vld [vmem:[%s191 + $0x20] sm:$0xf]
                %210 = vst [vmem:[%s192 + $0x20] sm:$0xf] %v209
                %v211 = vld [vmem:[%s191 + $0x24] sm:$0xf]
                %212 = vst [vmem:[%s192 + $0x24] sm:$0xf] %v211
                %v213 = vld [vmem:[%s191 + $0x28] sm:$0xf]
                %214 = vst [vmem:[%s192 + $0x28] sm:$0xf] %v213
                %v215 = vld [vmem:[%s191 + $0x2c] sm:$0xf]
                %216 = vst [vmem:[%s192 + $0x2c] sm:$0xf] %v215
                %v217 = vld [vmem:[%s191 + $0x30] sm:$0xf]
                %218 = vst [vmem:[%s192 + $0x30] sm:$0xf] %v217
                %v219 = vld [vmem:[%s191 + $0x34] sm:$0xf]
                %220 = vst [vmem:[%s192 + $0x34] sm:$0xf] %v219
                %v221 = vld [vmem:[%s191 + $0x38] sm:$0xf]
                %222 = vst [vmem:[%s192 + $0x38] sm:$0xf] %v221
                %v223 = vld [vmem:[%s191 + $0x3c] sm:$0xf]
                %224 = vst [vmem:[%s192 + $0x3c] sm:$0xf] %v223
                %v225 = vld [vmem:[%s191 + $0x40] sm:$0xf]
                %226 = vst [vmem:[%s192 + $0x40] sm:$0xf] %v225
                %v227 = vld [vmem:[%s191 + $0x44] sm:$0xf]
                %228 = vst [vmem:[%s192 + $0x44] sm:$0xf] %v227
                %v229 = vld [vmem:[%s191 + $0x48] sm:$0xf]
                %230 = vst [vmem:[%s192 + $0x48] sm:$0xf] %v229
                %v231 = vld [vmem:[%s191 + $0x4c] sm:$0xf]
                %232 = vst [vmem:[%s192 + $0x4c] sm:$0xf] %v231
                %v233 = vld [vmem:[%s191 + $0xa0] sm:$0xf]
                %234 = vst [vmem:[%s192 + $0x50] sm:$0xf] %v233
                %v235 = vld [vmem:[%s191 + $0xa4] sm:$0xf]
                %236 = vst [vmem:[%s192 + $0x54] sm:$0xf] %v235
                %v237 = vld [vmem:[%s191 + $0xa8] sm:$0xf]
                %238 = vst [vmem:[%s192 + $0x58] sm:$0xf] %v237
                %v239 = vld [vmem:[%s191 + $0xac] sm:$0xf]
                %240 = vst [vmem:[%s192 + $0x5c] sm:$0xf] %v239
                %v241 = vld [vmem:[%s191 + $0xb0] sm:$0xf]
                %242 = vst [vmem:[%s192 + $0x60] sm:$0xf] %v241
                %v243 = vld [vmem:[%s191 + $0xb4] sm:$0xf]
                %244 = vst [vmem:[%s192 + $0x64] sm:$0xf] %v243
                %v245 = vld [vmem:[%s191 + $0xb8] sm:$0xf]
                %246 = vst [vmem:[%s192 + $0x68] sm:$0xf] %v245
                %v247 = vld [vmem:[%s191 + $0xbc] sm:$0xf]
                %248 = vst [vmem:[%s192 + $0x6c] sm:$0xf] %v247
                %v249 = vld [vmem:[%s191 + $0xc0] sm:$0xf]
                %250 = vst [vmem:[%s192 + $0x70] sm:$0xf] %v249
                %v251 = vld [vmem:[%s191 + $0xc4] sm:$0xf]
                %252 = vst [vmem:[%s192 + $0x74] sm:$0xf] %v251
                %v253 = vld [vmem:[%s191 + $0xc8] sm:$0xf]
                %254 = vst [vmem:[%s192 + $0x78] sm:$0xf] %v253
                %v255 = vld [vmem:[%s191 + $0xcc] sm:$0xf]
                %256 = vst [vmem:[%s192 + $0x7c] sm:$0xf] %v255
                %v257 = vld [vmem:[%s191 + $0xd0] sm:$0xf]
                %258 = vst [vmem:[%s192 + $0x80] sm:$0xf] %v257
                %v259 = vld [vmem:[%s191 + $0xd4] sm:$0xf]
                %260 = vst [vmem:[%s192 + $0x84] sm:$0xf] %v259
                %v261 = vld [vmem:[%s191 + $0xd8] sm:$0xf]
                %262 = vst [vmem:[%s192 + $0x88] sm:$0xf] %v261
                %v263 = vld [vmem:[%s191 + $0xdc] sm:$0xf]
                %264 = vst [vmem:[%s192 + $0x8c] sm:$0xf] %v263
                %v265 = vld [vmem:[%s191 + $0xe0] sm:$0xf]
                %266 = vst [vmem:[%s192 + $0x90] sm:$0xf] %v265
                %v267 = vld [vmem:[%s191 + $0xe4] sm:$0xf]
                %268 = vst [vmem:[%s192 + $0x94] sm:$0xf] %v267
                %v269 = vld [vmem:[%s191 + $0xe8] sm:$0xf]
                %270 = vst [vmem:[%s192 + $0x98] sm:$0xf] %v269
                %v271 = vld [vmem:[%s191 + $0xec] sm:$0xf]
                %272 = vst [vmem:[%s192 + $0x9c] sm:$0xf] %v271
                %v273 = vld [vmem:[%s191 + $0x140] sm:$0xf]
                %274 = vst [vmem:[%s192 + $0xa0] sm:$0xf] %v273
                %v275 = vld [vmem:[%s191 + $0x144] sm:$0xf]
                %276 = vst [vmem:[%s192 + $0xa4] sm:$0xf] %v275
                %v277 = vld [vmem:[%s191 + $0x148] sm:$0xf]
                %278 = vst [vmem:[%s192 + $0xa8] sm:$0xf] %v277
                %v279 = vld [vmem:[%s191 + $0x14c] sm:$0xf]
                %280 = vst [vmem:[%s192 + $0xac] sm:$0xf] %v279
                %v281 = vld [vmem:[%s191 + $0x150] sm:$0xf]
                %282 = vst [vmem:[%s192 + $0xb0] sm:$0xf] %v281
                %v283 = vld [vmem:[%s191 + $0x154] sm:$0xf]
                %284 = vst [vmem:[%s192 + $0xb4] sm:$0xf] %v283
                %v285 = vld [vmem:[%s191 + $0x158] sm:$0xf]
                %286 = vst [vmem:[%s192 + $0xb8] sm:$0xf] %v285
                %v287 = vld [vmem:[%s191 + $0x15c] sm:$0xf]
                %288 = vst [vmem:[%s192 + $0xbc] sm:$0xf] %v287
                %v289 = vld [vmem:[%s191 + $0x160] sm:$0xf]
                %290 = vst [vmem:[%s192 + $0xc0] sm:$0xf] %v289
                %v291 = vld [vmem:[%s191 + $0x164] sm:$0xf]
                %292 = vst [vmem:[%s192 + $0xc4] sm:$0xf] %v291
                %v293 = vld [vmem:[%s191 + $0x168] sm:$0xf]
                %294 = vst [vmem:[%s192 + $0xc8] sm:$0xf] %v293
                %v295 = vld [vmem:[%s191 + $0x16c] sm:$0xf]
                %296 = vst [vmem:[%s192 + $0xcc] sm:$0xf] %v295
                %v297 = vld [vmem:[%s191 + $0x170] sm:$0xf]
                %298 = vst [vmem:[%s192 + $0xd0] sm:$0xf] %v297
                %v299 = vld [vmem:[%s191 + $0x174] sm:$0xf]
                %300 = vst [vmem:[%s192 + $0xd4] sm:$0xf] %v299
                %v301 = vld [vmem:[%s191 + $0x178] sm:$0xf]
                %302 = vst [vmem:[%s192 + $0xd8] sm:$0xf] %v301
                %v303 = vld [vmem:[%s191 + $0x17c] sm:$0xf]
                %304 = vst [vmem:[%s192 + $0xdc] sm:$0xf] %v303
                %v305 = vld [vmem:[%s191 + $0x180] sm:$0xf]
                %306 = vst [vmem:[%s192 + $0xe0] sm:$0xf] %v305
                %v307 = vld [vmem:[%s191 + $0x184] sm:$0xf]
                %308 = vst [vmem:[%s192 + $0xe4] sm:$0xf] %v307
                %v309 = vld [vmem:[%s191 + $0x188] sm:$0xf]
                %310 = vst [vmem:[%s192 + $0xe8] sm:$0xf] %v309
                %v311 = vld [vmem:[%s191 + $0x18c] sm:$0xf]
                %312 = vst [vmem:[%s192 + $0xec] sm:$0xf] %v311
                %v313 = vld [vmem:[%s191 + $0x1e0] sm:$0xf]
                %314 = vst [vmem:[%s192 + $0xf0] sm:$0xf] %v313
                %v315 = vld [vmem:[%s191 + $0x1e4] sm:$0xf]
                %316 = vst [vmem:[%s192 + $0xf4] sm:$0xf] %v315
                %v317 = vld [vmem:[%s191 + $0x1e8] sm:$0xf]
                %318 = vst [vmem:[%s192 + $0xf8] sm:$0xf] %v317
                %v319 = vld [vmem:[%s191 + $0x1ec] sm:$0xf]
                %320 = vst [vmem:[%s192 + $0xfc] sm:$0xf] %v319
                %v321 = vld [vmem:[%s191 + $0x1f0] sm:$0xf]
                %322 = vst [vmem:[%s192 + $0x100] sm:$0xf] %v321
                %v323 = vld [vmem:[%s191 + $0x1f4] sm:$0xf]
                %324 = vst [vmem:[%s192 + $0x104] sm:$0xf] %v323
                %v325 = vld [vmem:[%s191 + $0x1f8] sm:$0xf]
                %326 = vst [vmem:[%s192 + $0x108] sm:$0xf] %v325
                %v327 = vld [vmem:[%s191 + $0x1fc] sm:$0xf]
                %328 = vst [vmem:[%s192 + $0x10c] sm:$0xf] %v327
                %v329 = vld [vmem:[%s191 + $0x200] sm:$0xf]
                %330 = vst [vmem:[%s192 + $0x110] sm:$0xf] %v329
                %v331 = vld [vmem:[%s191 + $0x204] sm:$0xf]
                %332 = vst [vmem:[%s192 + $0x114] sm:$0xf] %v331
                %v333 = vld [vmem:[%s191 + $0x208] sm:$0xf]
                %334 = vst [vmem:[%s192 + $0x118] sm:$0xf] %v333
                %v335 = vld [vmem:[%s191 + $0x20c] sm:$0xf]
                %336 = vst [vmem:[%s192 + $0x11c] sm:$0xf] %v335
                %v337 = vld [vmem:[%s191 + $0x210] sm:$0xf]
                %338 = vst [vmem:[%s192 + $0x120] sm:$0xf] %v337
                %v339 = vld [vmem:[%s191 + $0x214] sm:$0xf]
                %340 = vst [vmem:[%s192 + $0x124] sm:$0xf] %v339
                %v341 = vld [vmem:[%s191 + $0x218] sm:$0xf]
                %342 = vst [vmem:[%s192 + $0x128] sm:$0xf] %v341
                %v343 = vld [vmem:[%s191 + $0x21c] sm:$0xf]
                %344 = vst [vmem:[%s192 + $0x12c] sm:$0xf] %v343
                %v345 = vld [vmem:[%s191 + $0x220] sm:$0xf]
                %346 = vst [vmem:[%s192 + $0x130] sm:$0xf] %v345
                %v347 = vld [vmem:[%s191 + $0x224] sm:$0xf]
                %348 = vst [vmem:[%s192 + $0x134] sm:$0xf] %v347
                %v349 = vld [vmem:[%s191 + $0x228] sm:$0xf]
                %350 = vst [vmem:[%s192 + $0x138] sm:$0xf] %v349
                %v351 = vld [vmem:[%s191 + $0x22c] sm:$0xf]
                %352 = vst [vmem:[%s192 + $0x13c] sm:$0xf] %v351
              $region49: #{semantic_attention.2} parent=43 // loop_footer
                %s190 = sadd.s32 1, %s186
              $region50: #{semantic_attention.2} parent=43 // loop_footer_branch
                %185 = sbr.rel target = $region46
              $region51: #{semantic_attention.2} parent=43 // loop_exit
                _
            $region44: #{semantic_attention.2} parent=35 // pred_fallthru
              _
          $region36: #{semantic_attention.2} parent=31 // pred_fallthru
            _
          %532 = vnop
        $region32: #{semantic_attention.2} parent=27 // pred_fallthru
          _
      $region28: #{semantic_attention.2} parent=5 // pred_fallthru
        _
      %p533 = scmp.le.s32.totalorder 1, %s10
      %p534 = scmp.lt.s32.totalorder %s10, 3
      %p535 = pnand %p533, %p534
      %p536 = pneg %p535
      // Predicated region
      $region70: #{semantic_attention.2} parent=5 // pred_check
        _
      $region71: #{semantic_attention.2} parent=5 // pred_check_branch
        %538 = sbr.rel (%p535) target = $region73
      $region72: #{semantic_attention.2} parent=5 // pred_region
        %s539 = ssub.s32 %s10, 1
        %s540 = sand.u32 %s37, 1
        %s541 = sand.u32 %s37, 1
        %s542 = smul.addr %s541, 320
        %s543 = scalar_lea.vmem [#allocation2], %s542
        // Predicated region
        $region74: #{semantic_attention.2} parent=72 // pred_check
          %p544 = pneg %p50
        $region75: #{semantic_attention.2} parent=72 // pred_check_branch
          %546 = sbr.rel (%p544) target = $region77
        $region76: #{semantic_attention.2} parent=72 // pred_region
          _
        $region77: #{semantic_attention.2} parent=72 // pred_fallthru
          _
        %s547 = sand.u32 %s37, 1
        %s548 = sand.u32 %s37, 1
        %s549 = smul.addr %s548, 320
        %s550 = scalar_lea.vmem [#allocation2], %s549
        %p551 = pneg %p50
        %p552 = pneg %p47
        %p553 = pneg %p71
        %p554 = pneg %p68
        %p555 = pneg %p92
        %p556 = pneg %p89
        %p557 = pneg %p113
        %p558 = pneg %p110
        %p559 = pneg %p139
        %p560 = pneg %p136
        %p561 = scmp.lt.s32.totalorder %s19, 1
        %s562 = scalar_select %p561, %s19, 1
        %s563 = scalar_lea.vmem %s4, %s562
        %s564 = sadd.s32 %s19, %s20
        %s565 = smul.u32 20, %s564
        %p566 = scmp.lt.s32.totalorder %s19, 1
        %s567 = scalar_select %p566, %s19, 1
        %s568 = scalar_lea.vmem %s4, %s567
        %p570 = scmp.eq.s32.totalorder %s20, 0
        // Predicated region
        $region78: #{semantic_attention.2} parent=72 // pred_check
          %p571 = pneg %p570
        $region79: #{semantic_attention.2} parent=72 // pred_check_branch
          %573 = sbr.rel (%p571) target = $region81
        $region80: #{semantic_attention.2} parent=72 // pred_region
          %vm574 = vcmask 24576
          %575 = vst.msk [vmem:[%s568] sm:$0x1] %vm574, 0.0
        $region81: #{semantic_attention.2} parent=72 // pred_fallthru
          _
        %v576 = vld [vmem:[%s1] sm:$0xf]
        %v577 = vld [vmem:[%s1 + $0x4] sm:$0xf]
        %v578 = vld [vmem:[%s1 + $0x8] sm:$0xf]
        %v579 = vld [vmem:[%s1 + $0xc] sm:$0xf]
        %v580 = vld [vmem:[%s1 + $0x10] sm:$0xf]
        %v581 = vld [vmem:[%s1 + $0x14] sm:$0xf]
        %v582 = vld [vmem:[%s1 + $0x18] sm:$0xf]
        %v583 = vld [vmem:[%s1 + $0x1c] sm:$0xf]
        %v584 = vld [vmem:[%s2] sm:$0x1]
        %v585 = vld [vmem:[%s3] sm:$0x1]
        %s586 = sadd.s32 %s19, %s20
        %s587 = smul.u32 %s586, 160
        %v588 = vlaneseq
        %v589 = vshrl.u32 %v588, 7
        %v590 = vadd.s32 %v589, 8
        %v591 = vadd.s32 %v589, 16
        %v592 = vadd.s32 %v589, 24
        %v593 = vadd.s32 %v589, 32
        %v594 = vadd.s32 %v589, 40
        %v595 = vadd.s32 %v589, 48
        %v596 = vadd.s32 %v589, 56
        %v597 = vadd.s32 %v589, 64
        %v598 = vadd.s32 %v589, 72
        %v599 = vadd.s32 %v589, 80
        %v600 = vadd.s32 %v589, 88
        %v601 = vadd.s32 %v589, 96
        %v602 = vadd.s32 %v589, 104
        %v603 = vadd.s32 %v589, 112
        %v604 = vadd.s32 %v589, 120
        %v605 = vadd.s32 %v589, 128
        %v606 = vadd.s32 %v589, 136
        %v607 = vadd.s32 %v589, 144
        %v608 = vadd.s32 %v589, 152
        %v609 = vstv %s587
        %v610 = vadd.s32 %v589, %v609
        %v611 = vadd.s32 %v590, %v609
        %v612 = vadd.s32 %v591, %v609
        %v613 = vadd.s32 %v592, %v609
        %v614 = vadd.s32 %v593, %v609
        %v615 = vadd.s32 %v594, %v609
        %v616 = vadd.s32 %v595, %v609
        %v617 = vadd.s32 %v596, %v609
        %v618 = vadd.s32 %v597, %v609
        %v619 = vadd.s32 %v598, %v609
        %v620 = vadd.s32 %v599, %v609
        %v621 = vadd.s32 %v600, %v609
        %v622 = vadd.s32 %v601, %v609
        %v623 = vadd.s32 %v602, %v609
        %v624 = vadd.s32 %v603, %v609
        %v625 = vadd.s32 %v604, %v609
        %v626 = vadd.s32 %v605, %v609
        %v627 = vadd.s32 %v606, %v609
        %v628 = vadd.s32 %v607, %v609
        %v629 = vadd.s32 %v608, %v609
        %vm630 = vcmp.lt.s32.totalorder %v610, 300
        %vm631 = vcmp.lt.s32.totalorder %v611, 300
        %vm632 = vcmp.lt.s32.totalorder %v612, 300
        %vm633 = vcmp.lt.s32.totalorder %v613, 300
        %vm634 = vcmp.lt.s32.totalorder %v614, 300
        %vm635 = vcmp.lt.s32.totalorder %v615, 300
        %vm636 = vcmp.lt.s32.totalorder %v616, 300
        %vm637 = vcmp.lt.s32.totalorder %v617, 300
        %vm638 = vcmp.lt.s32.totalorder %v618, 300
        %vm639 = vcmp.lt.s32.totalorder %v619, 300
        %vm640 = vcmp.lt.s32.totalorder %v620, 300
        %vm641 = vcmp.lt.s32.totalorder %v621, 300
        %vm642 = vcmp.lt.s32.totalorder %v622, 300
        %vm643 = vcmp.lt.s32.totalorder %v623, 300
        %vm644 = vcmp.lt.s32.totalorder %v624, 300
        %vm645 = vcmp.lt.s32.totalorder %v625, 300
        %vm646 = vcmp.lt.s32.totalorder %v626, 300
        %vm647 = vcmp.lt.s32.totalorder %v627, 300
        %vm648 = vcmp.lt.s32.totalorder %v628, 300
        %vm649 = vcmp.lt.s32.totalorder %v629, 300
        %v650 = vsel %vm630, 1, 0
        %v651 = vsel %vm631, 1, 0
        %v652 = vsel %vm632, 1, 0
        %v653 = vsel %vm633, 1, 0
        %v654 = vsel %vm634, 1, 0
        %v655 = vsel %vm635, 1, 0
        %v656 = vsel %vm636, 1, 0
        %v657 = vsel %vm637, 1, 0
        %v658 = vsel %vm638, 1, 0
        %v659 = vsel %vm639, 1, 0
        %v660 = vsel %vm640, 1, 0
        %v661 = vsel %vm641, 1, 0
        %v662 = vsel %vm642, 1, 0
        %v663 = vsel %vm643, 1, 0
        %v664 = vsel %vm644, 1, 0
        %v665 = vsel %vm645, 1, 0
        %v666 = vsel %vm646, 1, 0
        %v667 = vsel %vm647, 1, 0
        %v668 = vsel %vm648, 1, 0
        %v669 = vsel %vm649, 1, 0
        %v670 = vcvt.s32.f32 %v650
        %v671 = vcvt.s32.f32 %v651
        %v672 = vcvt.s32.f32 %v652
        %v673 = vcvt.s32.f32 %v653
        %v674 = vcvt.s32.f32 %v654
        %v675 = vcvt.s32.f32 %v655
        %v676 = vcvt.s32.f32 %v656
        %v677 = vcvt.s32.f32 %v657
        %v678 = vcvt.s32.f32 %v658
        %v679 = vcvt.s32.f32 %v659
        %v680 = vcvt.s32.f32 %v660
        %v681 = vcvt.s32.f32 %v661
        %v682 = vcvt.s32.f32 %v662
        %v683 = vcvt.s32.f32 %v663
        %v684 = vcvt.s32.f32 %v664
        %v685 = vcvt.s32.f32 %v665
        %v686 = vcvt.s32.f32 %v666
        %v687 = vcvt.s32.f32 %v667
        %v688 = vcvt.s32.f32 %v668
        %v689 = vcvt.s32.f32 %v669
        %v690 = vlaneseq
        %v691 = vand.u32 %v690, 127
        %v692 = vld [vmem:[%s543] sm:$0xf]
        %v693 = vld [vmem:[%s543 + $0x4] sm:$0xf]
        %v694 = vld [vmem:[%s543 + $0x8] sm:$0xf]
        %v695 = vld [vmem:[%s543 + $0xc] sm:$0xf]
        %v696 = vld [vmem:[%s543 + $0x10] sm:$0xf]
        %v697 = vld [vmem:[%s543 + $0x14] sm:$0xf]
        %v698 = vld [vmem:[%s543 + $0x18] sm:$0xf]
        %v699 = vld [vmem:[%s543 + $0x1c] sm:$0xf]
        %v700 = vld [vmem:[%s543 + $0x20] sm:$0xf]
        %v701 = vld [vmem:[%s543 + $0x24] sm:$0xf]
        %v702 = vld [vmem:[%s543 + $0x28] sm:$0xf]
        %v703 = vld [vmem:[%s543 + $0x2c] sm:$0xf]
        %v704 = vld [vmem:[%s543 + $0x30] sm:$0xf]
        %v705 = vld [vmem:[%s543 + $0x34] sm:$0xf]
        %v706 = vld [vmem:[%s543 + $0x38] sm:$0xf]
        %v707 = vld [vmem:[%s543 + $0x3c] sm:$0xf]
        %v708 = vld [vmem:[%s543 + $0x40] sm:$0xf]
        %v709 = vld [vmem:[%s543 + $0x44] sm:$0xf]
        %v710 = vld [vmem:[%s543 + $0x48] sm:$0xf]
        %v711 = vld [vmem:[%s543 + $0x4c] sm:$0xf]
        %v713 = vlaneseq
        %v714 = vshrl.u32 %v713, 7
        %v715 = vsub.s32 0, %v714
        %v716 = vrot.slane %v584, %v715
        %v738 = vunpack.c.l.b16 %v692
        %v739 = vunpack.c.l.b16 %v693
        %v740 = vunpack.c.l.b16 %v694
        %v741 = vunpack.c.l.b16 %v695
        %v742 = vunpack.c.l.b16 %v696
        %v743 = vunpack.c.l.b16 %v697
        %v744 = vunpack.c.l.b16 %v698
        %v745 = vunpack.c.l.b16 %v699
        %v746 = vunpack.c.l.b16 %v700
        %v747 = vunpack.c.l.b16 %v701
        %v748 = vunpack.c.l.b16 %v702
        %v749 = vunpack.c.l.b16 %v703
        %v750 = vunpack.c.l.b16 %v704
        %v751 = vunpack.c.l.b16 %v705
        %v752 = vunpack.c.l.b16 %v706
        %v753 = vunpack.c.l.b16 %v707
        %v754 = vunpack.c.l.b16 %v708
        %v755 = vunpack.c.l.b16 %v709
        %v756 = vunpack.c.l.b16 %v710
        %v757 = vunpack.c.l.b16 %v711
        %v758 = vpack.c.b16 %v739, %v738
        %v759 = vpack.c.b16 %v741, %v740
        %v760 = vpack.c.b16 %v743, %v742
        %v761 = vpack.c.b16 %v745, %v744
        %v762 = vpack.c.b16 %v747, %v746
        %v763 = vpack.c.b16 %v749, %v748
        %v764 = vpack.c.b16 %v751, %v750
        %v765 = vpack.c.b16 %v753, %v752
        %v766 = vpack.c.b16 %v755, %v754
        %v767 = vpack.c.b16 %v757, %v756
        %v776 = vunpack.c.l.b16 %v576
        %v777 = vunpack.c.l.b16 %v577
        %v778 = vunpack.c.l.b16 %v578
        %v779 = vunpack.c.l.b16 %v579
        %v780 = vunpack.c.l.b16 %v580
        %v781 = vunpack.c.l.b16 %v581
        %v782 = vunpack.c.l.b16 %v582
        %v783 = vunpack.c.l.b16 %v583
        %v784 = vpack.c.b16 %v777, %v776
        %v785 = vpack.c.b16 %v779, %v778
        %v786 = vpack.c.b16 %v781, %v780
        %v787 = vpack.c.b16 %v783, %v782
        %vm792 = vcmask 523264
        %v794 = vsel %vm792, %v758, 0
        %v797 = vsel %vm792, %v759, 0
        %v800 = vsel %vm792, %v760, 0
        %v803 = vsel %vm792, %v761, 0
        %v806 = vsel %vm792, %v762, 0
        %v809 = vsel %vm792, %v763, 0
        %v812 = vsel %vm792, %v764, 0
        %v815 = vsel %vm792, %v765, 0
        %v818 = vsel %vm792, %v766, 0
        %v821 = vsel %vm792, %v767, 0
        %823 = vmatprep.subr.bf16.mxu0 0
        %824 = vmatpush1.bf16.msra.mxu0 %v784
        %825 = vmatprep.subr.bf16.mxu0 0
        %826 = vmatpush1.bf16.msra.mxu0 %v785
        %827 = vmatprep.subr.bf16.mxu0 0
        %828 = vmatpush1.bf16.msra.mxu0 %v786
        %829 = vmatprep.subr.bf16.mxu0 0
        %830 = vmatpush1.bf16.msra.mxu0 %v787
        %831 = vmatprep.subr.bf16.mxu0 0
        %832 = vmatpush1.bf16.msra.mxu0 0
        %833 = vmatprep.subr.bf16.mxu0 0
        %834 = vmatpush1.bf16.msra.mxu0 0
        %835 = vmatprep.subr.bf16.mxu0 0
        %836 = vmatpush1.bf16.msra.mxu0 0
        %837 = vmatprep.subr.bf16.mxu0 0
        %838 = vmatpush1.bf16.msra.mxu0 0
        %839 = vmatprep.subr.bf16.mxu0 0
        %840 = vmatpush1.bf16.msra.mxu0 0
        %841 = vmatprep.subr.bf16.mxu0 0
        %842 = vmatpush1.bf16.msra.mxu0 0
        %843 = vmatprep.subr.bf16.mxu0 0
        %844 = vmatpush1.bf16.msra.mxu0 0
        %845 = vmatprep.subr.bf16.mxu0 0
        %846 = vmatpush1.bf16.msra.mxu0 0
        %847 = vmatprep.subr.bf16.mxu0 0
        %848 = vmatpush1.bf16.msra.mxu0 0
        %849 = vmatprep.subr.bf16.mxu0 0
        %850 = vmatpush1.bf16.msra.mxu0 0
        %851 = vmatprep.subr.bf16.mxu0 0
        %852 = vmatpush1.bf16.msra.mxu0 0
        %853 = vmatprep.subr.bf16.mxu0 0
        %854 = vmatpush1.bf16.msra.mxu0 0
        %855 = vmatprep.mubr.bf16.mxu0 0
        %856 = vmatmul.mubr.bf16.gmra.mrb[0].mxu0 %v794
        %v857 = vpop.f32.mrb[0].mxu0
        %v858 = vadd.f32 %v716, %v857
        %v859 = vpop.f32.mrb[0].mxu0
        %v860 = vpop.f32.mrb[0].mxu0
        %v861 = vadd.f32 %v716, %v860
        %v862 = vpop.f32.mrb[0].mxu0
        %863 = vmatprep.mubr.bf16.mxu0 0
        %864 = vmatmul.mubr.bf16.gmra.mrb[0].mxu0 %v797
        %v865 = vpop.f32.mrb[0].mxu0
        %v866 = vadd.f32 %v716, %v865
        %v867 = vpop.f32.mrb[0].mxu0
        %v868 = vpop.f32.mrb[0].mxu0
        %v869 = vadd.f32 %v716, %v868
        %v870 = vpop.f32.mrb[0].mxu0
        %871 = vmatprep.mubr.bf16.mxu0 0
        %872 = vmatmul.mubr.bf16.gmra.mrb[0].mxu0 %v800
        %v873 = vpop.f32.mrb[0].mxu0
        %v874 = vadd.f32 %v716, %v873
        %v875 = vpop.f32.mrb[0].mxu0
        %v876 = vpop.f32.mrb[0].mxu0
        %v877 = vadd.f32 %v716, %v876
        %v878 = vpop.f32.mrb[0].mxu0
        %879 = vmatprep.mubr.bf16.mxu0 0
        %880 = vmatmul.mubr.bf16.gmra.mrb[0].mxu0 %v803
        %v881 = vpop.f32.mrb[0].mxu0
        %v882 = vadd.f32 %v716, %v881
        %v883 = vpop.f32.mrb[0].mxu0
        %v884 = vpop.f32.mrb[0].mxu0
        %v885 = vadd.f32 %v716, %v884
        %v886 = vpop.f32.mrb[0].mxu0
        %887 = vmatprep.mubr.bf16.mxu0 0
        %888 = vmatmul.mubr.bf16.gmra.mrb[0].mxu0 %v806
        %v889 = vpop.f32.mrb[0].mxu0
        %v890 = vadd.f32 %v716, %v889
        %v891 = vpop.f32.mrb[0].mxu0
        %v892 = vpop.f32.mrb[0].mxu0
        %v893 = vadd.f32 %v716, %v892
        %v894 = vpop.f32.mrb[0].mxu0
        %895 = vmatprep.mubr.bf16.mxu0 0
        %896 = vmatmul.mubr.bf16.gmra.mrb[0].mxu0 %v809
        %v897 = vpop.f32.mrb[0].mxu0
        %v898 = vadd.f32 %v716, %v897
        %v899 = vpop.f32.mrb[0].mxu0
        %v900 = vpop.f32.mrb[0].mxu0
        %v901 = vadd.f32 %v716, %v900
        %v902 = vpop.f32.mrb[0].mxu0
        %903 = vmatprep.mubr.bf16.mxu0 0
        %904 = vmatmul.mubr.bf16.gmra.mrb[0].mxu0 %v812
        %v905 = vpop.f32.mrb[0].mxu0
        %v906 = vadd.f32 %v716, %v905
        %v907 = vpop.f32.mrb[0].mxu0
        %v908 = vpop.f32.mrb[0].mxu0
        %v909 = vadd.f32 %v716, %v908
        %v910 = vpop.f32.mrb[0].mxu0
        %911 = vmatprep.mubr.bf16.mxu0 0
        %912 = vmatmul.mubr.bf16.gmra.mrb[0].mxu0 %v815
        %v913 = vpop.f32.mrb[0].mxu0
        %v914 = vadd.f32 %v716, %v913
        %v915 = vpop.f32.mrb[0].mxu0
        %v916 = vpop.f32.mrb[0].mxu0
        %v917 = vadd.f32 %v716, %v916
        %v918 = vpop.f32.mrb[0].mxu0
        %919 = vmatprep.mubr.bf16.mxu0 0
        %920 = vmatmul.mubr.bf16.gmra.mrb[0].mxu0 %v818
        %v921 = vpop.f32.mrb[0].mxu0
        %v922 = vadd.f32 %v716, %v921
        %v923 = vpop.f32.mrb[0].mxu0
        %v924 = vpop.f32.mrb[0].mxu0
        %v925 = vadd.f32 %v716, %v924
        %v926 = vpop.f32.mrb[0].mxu0
        %927 = vmatprep.mubr.bf16.mxu0 0
        %928 = vmatmul.mubr.bf16.gmra.mrb[0].mxu0 %v821
        %v929 = vpop.f32.mrb[0].mxu0
        %v930 = vadd.f32 %v716, %v929
        %v931 = vpop.f32.mrb[0].mxu0
        %v932 = vpop.f32.mrb[0].mxu0
        %v933 = vadd.f32 %v716, %v932
        %v934 = vpop.f32.mrb[0].mxu0
        %935 = vdwg.mxu0
        %v936 = vtanh.pop %v858
        %v937 = vtanh.pop %v861
        %v938 = vtanh.pop %v866
        %v939 = vtanh.pop %v869
        %v940 = vtanh.pop %v874
        %v941 = vtanh.pop %v877
        %v942 = vtanh.pop %v882
        %v943 = vtanh.pop %v885
        %v944 = vtanh.pop %v890
        %v945 = vtanh.pop %v893
        %v946 = vtanh.pop %v898
        %v947 = vtanh.pop %v901
        %v948 = vtanh.pop %v906
        %v949 = vtanh.pop %v909
        %v950 = vtanh.pop %v914
        %v951 = vtanh.pop %v917
        %v952 = vtanh.pop %v922
        %v953 = vtanh.pop %v925
        %v954 = vtanh.pop %v930
        %v955 = vtanh.pop %v933
        %v957 = vlaneseq
        %v958 = vshrl.u32 %v957, 7
        %v959 = vsub.s32 0, %v958
        %v960 = vrot.slane %v585, %v959
        %v962 = vmul.f32 %v936, %v960
        %v963 = vmul.f32 %v937, %v960
        %v964 = vmul.f32 %v938, %v960
        %v965 = vmul.f32 %v939, %v960
        %v966 = vmul.f32 %v940, %v960
        %v967 = vmul.f32 %v941, %v960
        %v968 = vmul.f32 %v942, %v960
        %v969 = vmul.f32 %v943, %v960
        %v970 = vmul.f32 %v944, %v960
        %v971 = vmul.f32 %v945, %v960
        %v972 = vmul.f32 %v946, %v960
        %v973 = vmul.f32 %v947, %v960
        %v974 = vmul.f32 %v948, %v960
        %v975 = vmul.f32 %v949, %v960
        %v976 = vmul.f32 %v950, %v960
        %v977 = vmul.f32 %v951, %v960
        %v978 = vmul.f32 %v952, %v960
        %v979 = vmul.f32 %v953, %v960
        %v980 = vmul.f32 %v954, %v960
        %v981 = vmul.f32 %v955, %v960
        %982 = vadd.xlane.f32.xlu0 %v962
        %v983 = vpop.xlane.xlu0 %982
        %984 = vadd.xlane.f32.xlu0 %v963
        %v985 = vpop.xlane.xlu0 %984
        %986 = vadd.xlane.f32.xlu0 %v964
        %v987 = vpop.xlane.xlu0 %986
        %988 = vadd.xlane.f32.xlu0 %v965
        %v989 = vpop.xlane.xlu0 %988
        %990 = vadd.xlane.f32.xlu0 %v966
        %v991 = vpop.xlane.xlu0 %990
        %992 = vadd.xlane.f32.xlu0 %v967
        %v993 = vpop.xlane.xlu0 %992
        %994 = vadd.xlane.f32.xlu0 %v968
        %v995 = vpop.xlane.xlu0 %994
        %996 = vadd.xlane.f32.xlu0 %v969
        %v997 = vpop.xlane.xlu0 %996
        %998 = vadd.xlane.f32.xlu0 %v970
        %v999 = vpop.xlane.xlu0 %998
        %1000 = vadd.xlane.f32.xlu0 %v971
        %v1001 = vpop.xlane.xlu0 %1000
        %1002 = vadd.xlane.f32.xlu0 %v972
        %v1003 = vpop.xlane.xlu0 %1002
        %1004 = vadd.xlane.f32.xlu0 %v973
        %v1005 = vpop.xlane.xlu0 %1004
        %1006 = vadd.xlane.f32.xlu0 %v974
        %v1007 = vpop.xlane.xlu0 %1006
        %1008 = vadd.xlane.f32.xlu0 %v975
        %v1009 = vpop.xlane.xlu0 %1008
        %1010 = vadd.xlane.f32.xlu0 %v976
        %v1011 = vpop.xlane.xlu0 %1010
        %1012 = vadd.xlane.f32.xlu0 %v977
        %v1013 = vpop.xlane.xlu0 %1012
        %1014 = vadd.xlane.f32.xlu0 %v978
        %v1015 = vpop.xlane.xlu0 %1014
        %1016 = vadd.xlane.f32.xlu0 %v979
        %v1017 = vpop.xlane.xlu0 %1016
        %1018 = vadd.xlane.f32.xlu0 %v980
        %v1019 = vpop.xlane.xlu0 %1018
        %1020 = vadd.xlane.f32.xlu0 %v981
        %v1021 = vpop.xlane.xlu0 %1020
        %v1022 = vmul.f32 %v983, %v670
        %v1023 = vmul.f32 %v985, %v671
        %v1024 = vmul.f32 %v987, %v672
        %v1025 = vmul.f32 %v989, %v673
        %v1026 = vmul.f32 %v991, %v674
        %v1027 = vmul.f32 %v993, %v675
        %v1028 = vmul.f32 %v995, %v676
        %v1029 = vmul.f32 %v997, %v677
        %v1030 = vmul.f32 %v999, %v678
        %v1031 = vmul.f32 %v1001, %v679
        %v1032 = vmul.f32 %v1003, %v680
        %v1033 = vmul.f32 %v1005, %v681
        %v1034 = vmul.f32 %v1007, %v682
        %v1035 = vmul.f32 %v1009, %v683
        %v1036 = vmul.f32 %v1011, %v684
        %v1037 = vmul.f32 %v1013, %v685
        %v1038 = vmul.f32 %v1015, %v686
        %v1039 = vmul.f32 %v1017, %v687
        %v1040 = vmul.f32 %v1019, %v688
        %v1041 = vmul.f32 %v1021, %v689
        %vm1042 = vcmask 7168
        %v1043 = vsel %vm1042, %v1022, 0.0
        %v1044 = vsel %vm1042, %v1023, 0.0
        %v1045 = vadd.f32 %v1043, %v1044
        %v1046 = vsel %vm1042, %v1024, 0.0
        %v1047 = vadd.f32 %v1045, %v1046
        %v1048 = vsel %vm1042, %v1025, 0.0
        %v1049 = vadd.f32 %v1047, %v1048
        %v1050 = vsel %vm1042, %v1026, 0.0
        %v1051 = vadd.f32 %v1049, %v1050
        %v1052 = vsel %vm1042, %v1027, 0.0
        %v1053 = vadd.f32 %v1051, %v1052
        %v1054 = vsel %vm1042, %v1028, 0.0
        %v1055 = vadd.f32 %v1053, %v1054
        %v1056 = vsel %vm1042, %v1029, 0.0
        %v1057 = vadd.f32 %v1055, %v1056
        %v1058 = vsel %vm1042, %v1030, 0.0
        %v1059 = vadd.f32 %v1057, %v1058
        %v1060 = vsel %vm1042, %v1031, 0.0
        %v1061 = vadd.f32 %v1059, %v1060
        %v1062 = vsel %vm1042, %v1032, 0.0
        %v1063 = vadd.f32 %v1061, %v1062
        %v1064 = vsel %vm1042, %v1033, 0.0
        %v1065 = vadd.f32 %v1063, %v1064
        %v1066 = vsel %vm1042, %v1034, 0.0
        %v1067 = vadd.f32 %v1065, %v1066
        %v1068 = vsel %vm1042, %v1035, 0.0
        %v1069 = vadd.f32 %v1067, %v1068
        %v1070 = vsel %vm1042, %v1036, 0.0
        %v1071 = vadd.f32 %v1069, %v1070
        %v1072 = vsel %vm1042, %v1037, 0.0
        %v1073 = vadd.f32 %v1071, %v1072
        %v1074 = vsel %vm1042, %v1038, 0.0
        %v1075 = vadd.f32 %v1073, %v1074
        %v1076 = vsel %vm1042, %v1039, 0.0
        %v1077 = vadd.f32 %v1075, %v1076
        %v1078 = vsel %vm1042, %v1040, 0.0
        %v1079 = vadd.f32 %v1077, %v1078
        %v1080 = vsel %vm1042, %v1041, 0.0
        %v1081 = vadd.f32 %v1079, %v1080
        %1082 = vadd.xlane.f32.xlu0 %v1081
        %v1083 = vpop.xlane.xlu0 %1082
        %v1084 = vrot.slane %v1083, 4
        %v1085 = vadd.f32 %v1083, %v1084
        %v1086 = vrot.slane %v1085, 2
        %v1087 = vadd.f32 %v1085, %v1086
        %v1088 = vrot.slane %v1087, 1
        %v1089 = vadd.f32 %v1087, %v1088
        %s1090 = vtos %v1089
        %vm1091 = vcmp.eq.s32.totalorder %v691, 0
        %v1092 = vstv %s1090
        %v1093 = vsel %vm1091, %v1092, 0.0
        %v1094 = vadd.f32 %v1093, 0.0
        %s1095 = scalar_lea.vmem %s543, 80 [#allocation2]
        %v1096 = vld [vmem:[%s1095] sm:$0xf]
        %v1097 = vld [vmem:[%s1095 + $0x4] sm:$0xf]
        %v1098 = vld [vmem:[%s1095 + $0x8] sm:$0xf]
        %v1099 = vld [vmem:[%s1095 + $0xc] sm:$0xf]
        %v1100 = vld [vmem:[%s1095 + $0x10] sm:$0xf]
        %v1101 = vld [vmem:[%s1095 + $0x14] sm:$0xf]
        %v1102 = vld [vmem:[%s1095 + $0x18] sm:$0xf]
        %v1103 = vld [vmem:[%s1095 + $0x1c] sm:$0xf]
        %v1104 = vld [vmem:[%s1095 + $0x20] sm:$0xf]
        %v1105 = vld [vmem:[%s1095 + $0x24] sm:$0xf]
        %v1106 = vld [vmem:[%s1095 + $0x28] sm:$0xf]
        %v1107 = vld [vmem:[%s1095 + $0x2c] sm:$0xf]
        %v1108 = vld [vmem:[%s1095 + $0x30] sm:$0xf]
        %v1109 = vld [vmem:[%s1095 + $0x34] sm:$0xf]
        %v1110 = vld [vmem:[%s1095 + $0x38] sm:$0xf]
        %v1111 = vld [vmem:[%s1095 + $0x3c] sm:$0xf]
        %v1112 = vld [vmem:[%s1095 + $0x40] sm:$0xf]
        %v1113 = vld [vmem:[%s1095 + $0x44] sm:$0xf]
        %v1114 = vld [vmem:[%s1095 + $0x48] sm:$0xf]
        %v1115 = vld [vmem:[%s1095 + $0x4c] sm:$0xf]
        %v1136 = vunpack.c.l.b16 %v1096
        %v1137 = vunpack.c.l.b16 %v1097
        %v1138 = vunpack.c.l.b16 %v1098
        %v1139 = vunpack.c.l.b16 %v1099
        %v1140 = vunpack.c.l.b16 %v1100
        %v1141 = vunpack.c.l.b16 %v1101
        %v1142 = vunpack.c.l.b16 %v1102
        %v1143 = vunpack.c.l.b16 %v1103
        %v1144 = vunpack.c.l.b16 %v1104
        %v1145 = vunpack.c.l.b16 %v1105
        %v1146 = vunpack.c.l.b16 %v1106
        %v1147 = vunpack.c.l.b16 %v1107
        %v1148 = vunpack.c.l.b16 %v1108
        %v1149 = vunpack.c.l.b16 %v1109
        %v1150 = vunpack.c.l.b16 %v1110
        %v1151 = vunpack.c.l.b16 %v1111
        %v1152 = vunpack.c.l.b16 %v1112
        %v1153 = vunpack.c.l.b16 %v1113
        %v1154 = vunpack.c.l.b16 %v1114
        %v1155 = vunpack.c.l.b16 %v1115
        %v1156 = vpack.c.b16 %v1137, %v1136
        %v1157 = vpack.c.b16 %v1139, %v1138
        %v1158 = vpack.c.b16 %v1141, %v1140
        %v1159 = vpack.c.b16 %v1143, %v1142
        %v1160 = vpack.c.b16 %v1145, %v1144
        %v1161 = vpack.c.b16 %v1147, %v1146
        %v1162 = vpack.c.b16 %v1149, %v1148
        %v1163 = vpack.c.b16 %v1151, %v1150
        %v1164 = vpack.c.b16 %v1153, %v1152
        %v1165 = vpack.c.b16 %v1155, %v1154
        %v1167 = vsel %vm792, %v1156, 0
        %v1170 = vsel %vm792, %v1157, 0
        %v1173 = vsel %vm792, %v1158, 0
        %v1176 = vsel %vm792, %v1159, 0
        %v1179 = vsel %vm792, %v1160, 0
        %v1182 = vsel %vm792, %v1161, 0
        %v1185 = vsel %vm792, %v1162, 0
        %v1188 = vsel %vm792, %v1163, 0
        %v1191 = vsel %vm792, %v1164, 0
        %v1194 = vsel %vm792, %v1165, 0
        %1196 = vmatprep.subr.bf16.mxu0 0
        %1197 = vmatpush1.bf16.msra.mxu0 %v784
        %1198 = vmatprep.subr.bf16.mxu0 0
        %1199 = vmatpush1.bf16.msra.mxu0 %v785
        %1200 = vmatprep.subr.bf16.mxu0 0
        %1201 = vmatpush1.bf16.msra.mxu0 %v786
        %1202 = vmatprep.subr.bf16.mxu0 0
        %1203 = vmatpush1.bf16.msra.mxu0 %v787
        %1204 = vmatprep.subr.bf16.mxu0 0
        %1205 = vmatpush1.bf16.msra.mxu0 0
        %1206 = vmatprep.subr.bf16.mxu0 0
        %1207 = vmatpush1.bf16.msra.mxu0 0
        %1208 = vmatprep.subr.bf16.mxu0 0
        %1209 = vmatpush1.bf16.msra.mxu0 0
        %1210 = vmatprep.subr.bf16.mxu0 0
        %1211 = vmatpush1.bf16.msra.mxu0 0
        %1212 = vmatprep.subr.bf16.mxu0 0
        %1213 = vmatpush1.bf16.msra.mxu0 0
        %1214 = vmatprep.subr.bf16.mxu0 0
        %1215 = vmatpush1.bf16.msra.mxu0 0
        %1216 = vmatprep.subr.bf16.mxu0 0
        %1217 = vmatpush1.bf16.msra.mxu0 0
        %1218 = vmatprep.subr.bf16.mxu0 0
        %1219 = vmatpush1.bf16.msra.mxu0 0
        %1220 = vmatprep.subr.bf16.mxu0 0
        %1221 = vmatpush1.bf16.msra.mxu0 0
        %1222 = vmatprep.subr.bf16.mxu0 0
        %1223 = vmatpush1.bf16.msra.mxu0 0
        %1224 = vmatprep.subr.bf16.mxu0 0
        %1225 = vmatpush1.bf16.msra.mxu0 0
        %1226 = vmatprep.subr.bf16.mxu0 0
        %1227 = vmatpush1.bf16.msra.mxu0 0
        %1228 = vmatprep.mubr.bf16.mxu0 0
        %1229 = vmatmul.mubr.bf16.gmra.mrb[0].mxu0 %v1167
        %v1230 = vpop.f32.mrb[0].mxu0
        %v1231 = vadd.f32 %v716, %v1230
        %v1232 = vpop.f32.mrb[0].mxu0
        %v1233 = vpop.f32.mrb[0].mxu0
        %v1234 = vadd.f32 %v716, %v1233
        %v1235 = vpop.f32.mrb[0].mxu0
        %1236 = vmatprep.mubr.bf16.mxu0 0
        %1237 = vmatmul.mubr.bf16.gmra.mrb[0].mxu0 %v1170
        %v1238 = vpop.f32.mrb[0].mxu0
        %v1239 = vadd.f32 %v716, %v1238
        %v1240 = vpop.f32.mrb[0].mxu0
        %v1241 = vpop.f32.mrb[0].mxu0
        %v1242 = vadd.f32 %v716, %v1241
        %v1243 = vpop.f32.mrb[0].mxu0
        %1244 = vmatprep.mubr.bf16.mxu0 0
        %1245 = vmatmul.mubr.bf16.gmra.mrb[0].mxu0 %v1173
        %v1246 = vpop.f32.mrb[0].mxu0
        %v1247 = vadd.f32 %v716, %v1246
        %v1248 = vpop.f32.mrb[0].mxu0
        %v1249 = vpop.f32.mrb[0].mxu0
        %v1250 = vadd.f32 %v716, %v1249
        %v1251 = vpop.f32.mrb[0].mxu0
        %1252 = vmatprep.mubr.bf16.mxu0 0
        %1253 = vmatmul.mubr.bf16.gmra.mrb[0].mxu0 %v1176
        %v1254 = vpop.f32.mrb[0].mxu0
        %v1255 = vadd.f32 %v716, %v1254
        %v1256 = vpop.f32.mrb[0].mxu0
        %v1257 = vpop.f32.mrb[0].mxu0
        %v1258 = vadd.f32 %v716, %v1257
        %v1259 = vpop.f32.mrb[0].mxu0
        %1260 = vmatprep.mubr.bf16.mxu0 0
        %1261 = vmatmul.mubr.bf16.gmra.mrb[0].mxu0 %v1179
        %v1262 = vpop.f32.mrb[0].mxu0
        %v1263 = vadd.f32 %v716, %v1262
        %v1264 = vpop.f32.mrb[0].mxu0
        %v1265 = vpop.f32.mrb[0].mxu0
        %v1266 = vadd.f32 %v716, %v1265
        %v1267 = vpop.f32.mrb[0].mxu0
        %1268 = vmatprep.mubr.bf16.mxu0 0
        %1269 = vmatmul.mubr.bf16.gmra.mrb[0].mxu0 %v1182
        %v1270 = vpop.f32.mrb[0].mxu0
        %v1271 = vadd.f32 %v716, %v1270
        %v1272 = vpop.f32.mrb[0].mxu0
        %v1273 = vpop.f32.mrb[0].mxu0
        %v1274 = vadd.f32 %v716, %v1273
        %v1275 = vpop.f32.mrb[0].mxu0
        %1276 = vmatprep.mubr.bf16.mxu0 0
        %1277 = vmatmul.mubr.bf16.gmra.mrb[0].mxu0 %v1185
        %v1278 = vpop.f32.mrb[0].mxu0
        %v1279 = vadd.f32 %v716, %v1278
        %v1280 = vpop.f32.mrb[0].mxu0
        %v1281 = vpop.f32.mrb[0].mxu0
        %v1282 = vadd.f32 %v716, %v1281
        %v1283 = vpop.f32.mrb[0].mxu0
        %1284 = vmatprep.mubr.bf16.mxu0 0
        %1285 = vmatmul.mubr.bf16.gmra.mrb[0].mxu0 %v1188
        %v1286 = vpop.f32.mrb[0].mxu0
        %v1287 = vadd.f32 %v716, %v1286
        %v1288 = vpop.f32.mrb[0].mxu0
        %v1289 = vpop.f32.mrb[0].mxu0
        %v1290 = vadd.f32 %v716, %v1289
        %v1291 = vpop.f32.mrb[0].mxu0
        %1292 = vmatprep.mubr.bf16.mxu0 0
        %1293 = vmatmul.mubr.bf16.gmra.mrb[0].mxu0 %v1191
        %v1294 = vpop.f32.mrb[0].mxu0
        %v1295 = vadd.f32 %v716, %v1294
        %v1296 = vpop.f32.mrb[0].mxu0
        %v1297 = vpop.f32.mrb[0].mxu0
        %v1298 = vadd.f32 %v716, %v1297
        %v1299 = vpop.f32.mrb[0].mxu0
        %1300 = vmatprep.mubr.bf16.mxu0 0
        %1301 = vmatmul.mubr.bf16.gmra.mrb[0].mxu0 %v1194
        %v1302 = vpop.f32.mrb[0].mxu0
        %v1303 = vadd.f32 %v716, %v1302
        %v1304 = vpop.f32.mrb[0].mxu0
        %v1305 = vpop.f32.mrb[0].mxu0
        %v1306 = vadd.f32 %v716, %v1305
        %v1307 = vpop.f32.mrb[0].mxu0
        %1308 = vdwg.mxu0
        %v1309 = vtanh.pop %v1231
        %v1310 = vtanh.pop %v1234
        %v1311 = vtanh.pop %v1239
        %v1312 = vtanh.pop %v1242
        %v1313 = vtanh.pop %v1247
        %v1314 = vtanh.pop %v1250
        %v1315 = vtanh.pop %v1255
        %v1316 = vtanh.pop %v1258
        %v1317 = vtanh.pop %v1263
        %v1318 = vtanh.pop %v1266
        %v1319 = vtanh.pop %v1271
        %v1320 = vtanh.pop %v1274
        %v1321 = vtanh.pop %v1279
        %v1322 = vtanh.pop %v1282
        %v1323 = vtanh.pop %v1287
        %v1324 = vtanh.pop %v1290
        %v1325 = vtanh.pop %v1295
        %v1326 = vtanh.pop %v1298
        %v1327 = vtanh.pop %v1303
        %v1328 = vtanh.pop %v1306
        %v1329 = vmul.f32 %v1309, %v960
        %v1330 = vmul.f32 %v1310, %v960
        %v1331 = vmul.f32 %v1311, %v960
        %v1332 = vmul.f32 %v1312, %v960
        %v1333 = vmul.f32 %v1313, %v960
        %v1334 = vmul.f32 %v1314, %v960
        %v1335 = vmul.f32 %v1315, %v960
        %v1336 = vmul.f32 %v1316, %v960
        %v1337 = vmul.f32 %v1317, %v960
        %v1338 = vmul.f32 %v1318, %v960
        %v1339 = vmul.f32 %v1319, %v960
        %v1340 = vmul.f32 %v1320, %v960
        %v1341 = vmul.f32 %v1321, %v960
        %v1342 = vmul.f32 %v1322, %v960
        %v1343 = vmul.f32 %v1323, %v960
        %v1344 = vmul.f32 %v1324, %v960
        %v1345 = vmul.f32 %v1325, %v960
        %v1346 = vmul.f32 %v1326, %v960
        %v1347 = vmul.f32 %v1327, %v960
        %v1348 = vmul.f32 %v1328, %v960
        %1349 = vadd.xlane.f32.xlu0 %v1329
        %v1350 = vpop.xlane.xlu0 %1349
        %1351 = vadd.xlane.f32.xlu0 %v1330
        %v1352 = vpop.xlane.xlu0 %1351
        %1353 = vadd.xlane.f32.xlu0 %v1331
        %v1354 = vpop.xlane.xlu0 %1353
        %1355 = vadd.xlane.f32.xlu0 %v1332
        %v1356 = vpop.xlane.xlu0 %1355
        %1357 = vadd.xlane.f32.xlu0 %v1333
        %v1358 = vpop.xlane.xlu0 %1357
        %1359 = vadd.xlane.f32.xlu0 %v1334
        %v1360 = vpop.xlane.xlu0 %1359
        %1361 = vadd.xlane.f32.xlu0 %v1335
        %v1362 = vpop.xlane.xlu0 %1361
        %1363 = vadd.xlane.f32.xlu0 %v1336
        %v1364 = vpop.xlane.xlu0 %1363
        %1365 = vadd.xlane.f32.xlu0 %v1337
        %v1366 = vpop.xlane.xlu0 %1365
        %1367 = vadd.xlane.f32.xlu0 %v1338
        %v1368 = vpop.xlane.xlu0 %1367
        %1369 = vadd.xlane.f32.xlu0 %v1339
        %v1370 = vpop.xlane.xlu0 %1369
        %1371 = vadd.xlane.f32.xlu0 %v1340
        %v1372 = vpop.xlane.xlu0 %1371
        %1373 = vadd.xlane.f32.xlu0 %v1341
        %v1374 = vpop.xlane.xlu0 %1373
        %1375 = vadd.xlane.f32.xlu0 %v1342
        %v1376 = vpop.xlane.xlu0 %1375
        %1377 = vadd.xlane.f32.xlu0 %v1343
        %v1378 = vpop.xlane.xlu0 %1377
        %1379 = vadd.xlane.f32.xlu0 %v1344
        %v1380 = vpop.xlane.xlu0 %1379
        %1381 = vadd.xlane.f32.xlu0 %v1345
        %v1382 = vpop.xlane.xlu0 %1381
        %1383 = vadd.xlane.f32.xlu0 %v1346
        %v1384 = vpop.xlane.xlu0 %1383
        %1385 = vadd.xlane.f32.xlu0 %v1347
        %v1386 = vpop.xlane.xlu0 %1385
        %1387 = vadd.xlane.f32.xlu0 %v1348
        %v1388 = vpop.xlane.xlu0 %1387
        %v1389 = vmul.f32 %v1350, %v670
        %v1390 = vmul.f32 %v1352, %v671
        %v1391 = vmul.f32 %v1354, %v672
        %v1392 = vmul.f32 %v1356, %v673
        %v1393 = vmul.f32 %v1358, %v674
        %v1394 = vmul.f32 %v1360, %v675
        %v1395 = vmul.f32 %v1362, %v676
        %v1396 = vmul.f32 %v1364, %v677
        %v1397 = vmul.f32 %v1366, %v678
        %v1398 = vmul.f32 %v1368, %v679
        %v1399 = vmul.f32 %v1370, %v680
        %v1400 = vmul.f32 %v1372, %v681
        %v1401 = vmul.f32 %v1374, %v682
        %v1402 = vmul.f32 %v1376, %v683
        %v1403 = vmul.f32 %v1378, %v684
        %v1404 = vmul.f32 %v1380, %v685
        %v1405 = vmul.f32 %v1382, %v686
        %v1406 = vmul.f32 %v1384, %v687
        %v1407 = vmul.f32 %v1386, %v688
        %v1408 = vmul.f32 %v1388, %v689
        %v1409 = vsel %vm1042, %v1389, 0.0
        %v1410 = vsel %vm1042, %v1390, 0.0
        %v1411 = vadd.f32 %v1409, %v1410
        %v1412 = vsel %vm1042, %v1391, 0.0
        %v1413 = vadd.f32 %v1411, %v1412
        %v1414 = vsel %vm1042, %v1392, 0.0
        %v1415 = vadd.f32 %v1413, %v1414
        %v1416 = vsel %vm1042, %v1393, 0.0
        %v1417 = vadd.f32 %v1415, %v1416
        %v1418 = vsel %vm1042, %v1394, 0.0
        %v1419 = vadd.f32 %v1417, %v1418
        %v1420 = vsel %vm1042, %v1395, 0.0
        %v1421 = vadd.f32 %v1419, %v1420
        %v1422 = vsel %vm1042, %v1396, 0.0
        %v1423 = vadd.f32 %v1421, %v1422
        %v1424 = vsel %vm1042, %v1397, 0.0
        %v1425 = vadd.f32 %v1423, %v1424
        %v1426 = vsel %vm1042, %v1398, 0.0
        %v1427 = vadd.f32 %v1425, %v1426
        %v1428 = vsel %vm1042, %v1399, 0.0
        %v1429 = vadd.f32 %v1427, %v1428
        %v1430 = vsel %vm1042, %v1400, 0.0
        %v1431 = vadd.f32 %v1429, %v1430
        %v1432 = vsel %vm1042, %v1401, 0.0
        %v1433 = vadd.f32 %v1431, %v1432
        %v1434 = vsel %vm1042, %v1402, 0.0
        %v1435 = vadd.f32 %v1433, %v1434
        %v1436 = vsel %vm1042, %v1403, 0.0
        %v1437 = vadd.f32 %v1435, %v1436
        %v1438 = vsel %vm1042, %v1404, 0.0
        %v1439 = vadd.f32 %v1437, %v1438
        %v1440 = vsel %vm1042, %v1405, 0.0
        %v1441 = vadd.f32 %v1439, %v1440
        %v1442 = vsel %vm1042, %v1406, 0.0
        %v1443 = vadd.f32 %v1441, %v1442
        %v1444 = vsel %vm1042, %v1407, 0.0
        %v1445 = vadd.f32 %v1443, %v1444
        %v1446 = vsel %vm1042, %v1408, 0.0
        %v1447 = vadd.f32 %v1445, %v1446
        %1448 = vadd.xlane.f32.xlu0 %v1447
        %v1449 = vpop.xlane.xlu0 %1448
        %v1450 = vrot.slane %v1449, 4
        %v1451 = vadd.f32 %v1449, %v1450
        %v1452 = vrot.slane %v1451, 2
        %v1453 = vadd.f32 %v1451, %v1452
        %v1454 = vrot.slane %v1453, 1
        %v1455 = vadd.f32 %v1453, %v1454
        %s1456 = vtos %v1455
        %vm1457 = vcmp.eq.s32.totalorder %v691, 1
        %v1458 = vstv %s1456
        %v1459 = vsel %vm1457, %v1458, 0.0
        %v1460 = vadd.f32 %v1094, %v1459
        %s1461 = scalar_lea.vmem %s543, 160 [#allocation2]
        %v1462 = vld [vmem:[%s1461] sm:$0xf]
        %v1463 = vld [vmem:[%s1461 + $0x4] sm:$0xf]
        %v1464 = vld [vmem:[%s1461 + $0x8] sm:$0xf]
        %v1465 = vld [vmem:[%s1461 + $0xc] sm:$0xf]
        %v1466 = vld [vmem:[%s1461 + $0x10] sm:$0xf]
        %v1467 = vld [vmem:[%s1461 + $0x14] sm:$0xf]
        %v1468 = vld [vmem:[%s1461 + $0x18] sm:$0xf]
        %v1469 = vld [vmem:[%s1461 + $0x1c] sm:$0xf]
        %v1470 = vld [vmem:[%s1461 + $0x20] sm:$0xf]
        %v1471 = vld [vmem:[%s1461 + $0x24] sm:$0xf]
        %v1472 = vld [vmem:[%s1461 + $0x28] sm:$0xf]
        %v1473 = vld [vmem:[%s1461 + $0x2c] sm:$0xf]
        %v1474 = vld [vmem:[%s1461 + $0x30] sm:$0xf]
        %v1475 = vld [vmem:[%s1461 + $0x34] sm:$0xf]
        %v1476 = vld [vmem:[%s1461 + $0x38] sm:$0xf]
        %v1477 = vld [vmem:[%s1461 + $0x3c] sm:$0xf]
        %v1478 = vld [vmem:[%s1461 + $0x40] sm:$0xf]
        %v1479 = vld [vmem:[%s1461 + $0x44] sm:$0xf]
        %v1480 = vld [vmem:[%s1461 + $0x48] sm:$0xf]
        %v1481 = vld [vmem:[%s1461 + $0x4c] sm:$0xf]
        %v1502 = vunpack.c.l.b16 %v1462
        %v1503 = vunpack.c.l.b16 %v1463
        %v1504 = vunpack.c.l.b16 %v1464
        %v1505 = vunpack.c.l.b16 %v1465
        %v1506 = vunpack.c.l.b16 %v1466
        %v1507 = vunpack.c.l.b16 %v1467
        %v1508 = vunpack.c.l.b16 %v1468
        %v1509 = vunpack.c.l.b16 %v1469
        %v1510 = vunpack.c.l.b16 %v1470
        %v1511 = vunpack.c.l.b16 %v1471
        %v1512 = vunpack.c.l.b16 %v1472
        %v1513 = vunpack.c.l.b16 %v1473
        %v1514 = vunpack.c.l.b16 %v1474
        %v1515 = vunpack.c.l.b16 %v1475
        %v1516 = vunpack.c.l.b16 %v1476
        %v1517 = vunpack.c.l.b16 %v1477
        %v1518 = vunpack.c.l.b16 %v1478
        %v1519 = vunpack.c.l.b16 %v1479
        %v1520 = vunpack.c.l.b16 %v1480
        %v1521 = vunpack.c.l.b16 %v1481
        %v1522 = vpack.c.b16 %v1503, %v1502
        %v1523 = vpack.c.b16 %v1505, %v1504
        %v1524 = vpack.c.b16 %v1507, %v1506
        %v1525 = vpack.c.b16 %v1509, %v1508
        %v1526 = vpack.c.b16 %v1511, %v1510
        %v1527 = vpack.c.b16 %v1513, %v1512
        %v1528 = vpack.c.b16 %v1515, %v1514
        %v1529 = vpack.c.b16 %v1517, %v1516
        %v1530 = vpack.c.b16 %v1519, %v1518
        %v1531 = vpack.c.b16 %v1521, %v1520
        %v1533 = vsel %vm792, %v1522, 0
        %v1536 = vsel %vm792, %v1523, 0
        %v1539 = vsel %vm792, %v1524, 0
        %v1542 = vsel %vm792, %v1525, 0
        %v1545 = vsel %vm792, %v1526, 0
        %v1548 = vsel %vm792, %v1527, 0
        %v1551 = vsel %vm792, %v1528, 0
        %v1554 = vsel %vm792, %v1529, 0
        %v1557 = vsel %vm792, %v1530, 0
        %v1560 = vsel %vm792, %v1531, 0
        %1562 = vmatprep.subr.bf16.mxu0 0
        %1563 = vmatpush1.bf16.msra.mxu0 %v784
        %1564 = vmatprep.subr.bf16.mxu0 0
        %1565 = vmatpush1.bf16.msra.mxu0 %v785
        %1566 = vmatprep.subr.bf16.mxu0 0
        %1567 = vmatpush1.bf16.msra.mxu0 %v786
        %1568 = vmatprep.subr.bf16.mxu0 0
        %1569 = vmatpush1.bf16.msra.mxu0 %v787
        %1570 = vmatprep.subr.bf16.mxu0 0
        %1571 = vmatpush1.bf16.msra.mxu0 0
        %1572 = vmatprep.subr.bf16.mxu0 0
        %1573 = vmatpush1.bf16.msra.mxu0 0
        %1574 = vmatprep.subr.bf16.mxu0 0
        %1575 = vmatpush1.bf16.msra.mxu0 0
        %1576 = vmatprep.subr.bf16.mxu0 0
        %1577 = vmatpush1.bf16.msra.mxu0 0
        %1578 = vmatprep.subr.bf16.mxu0 0
        %1579 = vmatpush1.bf16.msra.mxu0 0
        %1580 = vmatprep.subr.bf16.mxu0 0
        %1581 = vmatpush1.bf16.msra.mxu0 0
        %1582 = vmatprep.subr.bf16.mxu0 0
        %1583 = vmatpush1.bf16.msra.mxu0 0
        %1584 = vmatprep.subr.bf16.mxu0 0
        %1585 = vmatpush1.bf16.msra.mxu0 0
        %1586 = vmatprep.subr.bf16.mxu0 0
        %1587 = vmatpush1.bf16.msra.mxu0 0
        %1588 = vmatprep.subr.bf16.mxu0 0
        %1589 = vmatpush1.bf16.msra.mxu0 0
        %1590 = vmatprep.subr.bf16.mxu0 0
        %1591 = vmatpush1.bf16.msra.mxu0 0
        %1592 = vmatprep.subr.bf16.mxu0 0
        %1593 = vmatpush1.bf16.msra.mxu0 0
        %1594 = vmatprep.mubr.bf16.mxu0 0
        %1595 = vmatmul.mubr.bf16.gmra.mrb[0].mxu0 %v1533
        %v1596 = vpop.f32.mrb[0].mxu0
        %v1597 = vadd.f32 %v716, %v1596
        %v1598 = vpop.f32.mrb[0].mxu0
        %v1599 = vpop.f32.mrb[0].mxu0
        %v1600 = vadd.f32 %v716, %v1599
        %v1601 = vpop.f32.mrb[0].mxu0
        %1602 = vmatprep.mubr.bf16.mxu0 0
        %1603 = vmatmul.mubr.bf16.gmra.mrb[0].mxu0 %v1536
        %v1604 = vpop.f32.mrb[0].mxu0
        %v1605 = vadd.f32 %v716, %v1604
        %v1606 = vpop.f32.mrb[0].mxu0
        %v1607 = vpop.f32.mrb[0].mxu0
        %v1608 = vadd.f32 %v716, %v1607
        %v1609 = vpop.f32.mrb[0].mxu0
        %1610 = vmatprep.mubr.bf16.mxu0 0
        %1611 = vmatmul.mubr.bf16.gmra.mrb[0].mxu0 %v1539
        %v1612 = vpop.f32.mrb[0].mxu0
        %v1613 = vadd.f32 %v716, %v1612
        %v1614 = vpop.f32.mrb[0].mxu0
        %v1615 = vpop.f32.mrb[0].mxu0
        %v1616 = vadd.f32 %v716, %v1615
        %v1617 = vpop.f32.mrb[0].mxu0
        %1618 = vmatprep.mubr.bf16.mxu0 0
        %1619 = vmatmul.mubr.bf16.gmra.mrb[0].mxu0 %v1542
        %v1620 = vpop.f32.mrb[0].mxu0
        %v1621 = vadd.f32 %v716, %v1620
        %v1622 = vpop.f32.mrb[0].mxu0
        %v1623 = vpop.f32.mrb[0].mxu0
        %v1624 = vadd.f32 %v716, %v1623
        %v1625 = vpop.f32.mrb[0].mxu0
        %1626 = vmatprep.mubr.bf16.mxu0 0
        %1627 = vmatmul.mubr.bf16.gmra.mrb[0].mxu0 %v1545
        %v1628 = vpop.f32.mrb[0].mxu0
        %v1629 = vadd.f32 %v716, %v1628
        %v1630 = vpop.f32.mrb[0].mxu0
        %v1631 = vpop.f32.mrb[0].mxu0
        %v1632 = vadd.f32 %v716, %v1631
        %v1633 = vpop.f32.mrb[0].mxu0
        %1634 = vmatprep.mubr.bf16.mxu0 0
        %1635 = vmatmul.mubr.bf16.gmra.mrb[0].mxu0 %v1548
        %v1636 = vpop.f32.mrb[0].mxu0
        %v1637 = vadd.f32 %v716, %v1636
        %v1638 = vpop.f32.mrb[0].mxu0
        %v1639 = vpop.f32.mrb[0].mxu0
        %v1640 = vadd.f32 %v716, %v1639
        %v1641 = vpop.f32.mrb[0].mxu0
        %1642 = vmatprep.mubr.bf16.mxu0 0
        %1643 = vmatmul.mubr.bf16.gmra.mrb[0].mxu0 %v1551
        %v1644 = vpop.f32.mrb[0].mxu0
        %v1645 = vadd.f32 %v716, %v1644
        %v1646 = vpop.f32.mrb[0].mxu0
        %v1647 = vpop.f32.mrb[0].mxu0
        %v1648 = vadd.f32 %v716, %v1647
        %v1649 = vpop.f32.mrb[0].mxu0
        %1650 = vmatprep.mubr.bf16.mxu0 0
        %1651 = vmatmul.mubr.bf16.gmra.mrb[0].mxu0 %v1554
        %v1652 = vpop.f32.mrb[0].mxu0
        %v1653 = vadd.f32 %v716, %v1652
        %v1654 = vpop.f32.mrb[0].mxu0
        %v1655 = vpop.f32.mrb[0].mxu0
        %v1656 = vadd.f32 %v716, %v1655
        %v1657 = vpop.f32.mrb[0].mxu0
        %1658 = vmatprep.mubr.bf16.mxu0 0
        %1659 = vmatmul.mubr.bf16.gmra.mrb[0].mxu0 %v1557
        %v1660 = vpop.f32.mrb[0].mxu0
        %v1661 = vadd.f32 %v716, %v1660
        %v1662 = vpop.f32.mrb[0].mxu0
        %v1663 = vpop.f32.mrb[0].mxu0
        %v1664 = vadd.f32 %v716, %v1663
        %v1665 = vpop.f32.mrb[0].mxu0
        %1666 = vmatprep.mubr.bf16.mxu0 0
        %1667 = vmatmul.mubr.bf16.gmra.mrb[0].mxu0 %v1560
        %v1668 = vpop.f32.mrb[0].mxu0
        %v1669 = vadd.f32 %v716, %v1668
        %v1670 = vpop.f32.mrb[0].mxu0
        %v1671 = vpop.f32.mrb[0].mxu0
        %v1672 = vadd.f32 %v716, %v1671
        %v1673 = vpop.f32.mrb[0].mxu0
        %1674 = vdwg.mxu0
        %v1675 = vtanh.pop %v1597
        %v1676 = vtanh.pop %v1600
        %v1677 = vtanh.pop %v1605
        %v1678 = vtanh.pop %v1608
        %v1679 = vtanh.pop %v1613
        %v1680 = vtanh.pop %v1616
        %v1681 = vtanh.pop %v1621
        %v1682 = vtanh.pop %v1624
        %v1683 = vtanh.pop %v1629
        %v1684 = vtanh.pop %v1632
        %v1685 = vtanh.pop %v1637
        %v1686 = vtanh.pop %v1640
        %v1687 = vtanh.pop %v1645
        %v1688 = vtanh.pop %v1648
        %v1689 = vtanh.pop %v1653
        %v1690 = vtanh.pop %v1656
        %v1691 = vtanh.pop %v1661
        %v1692 = vtanh.pop %v1664
        %v1693 = vtanh.pop %v1669
        %v1694 = vtanh.pop %v1672
        %v1695 = vmul.f32 %v1675, %v960
        %v1696 = vmul.f32 %v1676, %v960
        %v1697 = vmul.f32 %v1677, %v960
        %v1698 = vmul.f32 %v1678, %v960
        %v1699 = vmul.f32 %v1679, %v960
        %v1700 = vmul.f32 %v1680, %v960
        %v1701 = vmul.f32 %v1681, %v960
        %v1702 = vmul.f32 %v1682, %v960
        %v1703 = vmul.f32 %v1683, %v960
        %v1704 = vmul.f32 %v1684, %v960
        %v1705 = vmul.f32 %v1685, %v960
        %v1706 = vmul.f32 %v1686, %v960
        %v1707 = vmul.f32 %v1687, %v960
        %v1708 = vmul.f32 %v1688, %v960
        %v1709 = vmul.f32 %v1689, %v960
        %v1710 = vmul.f32 %v1690, %v960
        %v1711 = vmul.f32 %v1691, %v960
        %v1712 = vmul.f32 %v1692, %v960
        %v1713 = vmul.f32 %v1693, %v960
        %v1714 = vmul.f32 %v1694, %v960
        %1715 = vadd.xlane.f32.xlu0 %v1695
        %v1716 = vpop.xlane.xlu0 %1715
        %1717 = vadd.xlane.f32.xlu0 %v1696
        %v1718 = vpop.xlane.xlu0 %1717
        %1719 = vadd.xlane.f32.xlu0 %v1697
        %v1720 = vpop.xlane.xlu0 %1719
        %1721 = vadd.xlane.f32.xlu0 %v1698
        %v1722 = vpop.xlane.xlu0 %1721
        %1723 = vadd.xlane.f32.xlu0 %v1699
        %v1724 = vpop.xlane.xlu0 %1723
        %1725 = vadd.xlane.f32.xlu0 %v1700
        %v1726 = vpop.xlane.xlu0 %1725
        %1727 = vadd.xlane.f32.xlu0 %v1701
        %v1728 = vpop.xlane.xlu0 %1727
        %1729 = vadd.xlane.f32.xlu0 %v1702
        %v1730 = vpop.xlane.xlu0 %1729
        %1731 = vadd.xlane.f32.xlu0 %v1703
        %v1732 = vpop.xlane.xlu0 %1731
        %1733 = vadd.xlane.f32.xlu0 %v1704
        %v1734 = vpop.xlane.xlu0 %1733
        %1735 = vadd.xlane.f32.xlu0 %v1705
        %v1736 = vpop.xlane.xlu0 %1735
        %1737 = vadd.xlane.f32.xlu0 %v1706
        %v1738 = vpop.xlane.xlu0 %1737
        %1739 = vadd.xlane.f32.xlu0 %v1707
        %v1740 = vpop.xlane.xlu0 %1739
        %1741 = vadd.xlane.f32.xlu0 %v1708
        %v1742 = vpop.xlane.xlu0 %1741
        %1743 = vadd.xlane.f32.xlu0 %v1709
        %v1744 = vpop.xlane.xlu0 %1743
        %1745 = vadd.xlane.f32.xlu0 %v1710
        %v1746 = vpop.xlane.xlu0 %1745
        %1747 = vadd.xlane.f32.xlu0 %v1711
        %v1748 = vpop.xlane.xlu0 %1747
        %1749 = vadd.xlane.f32.xlu0 %v1712
        %v1750 = vpop.xlane.xlu0 %1749
        %1751 = vadd.xlane.f32.xlu0 %v1713
        %v1752 = vpop.xlane.xlu0 %1751
        %1753 = vadd.xlane.f32.xlu0 %v1714
        %v1754 = vpop.xlane.xlu0 %1753
        %v1755 = vmul.f32 %v1716, %v670
        %v1756 = vmul.f32 %v1718, %v671
        %v1757 = vmul.f32 %v1720, %v672
        %v1758 = vmul.f32 %v1722, %v673
        %v1759 = vmul.f32 %v1724, %v674
        %v1760 = vmul.f32 %v1726, %v675
        %v1761 = vmul.f32 %v1728, %v676
        %v1762 = vmul.f32 %v1730, %v677
        %v1763 = vmul.f32 %v1732, %v678
        %v1764 = vmul.f32 %v1734, %v679
        %v1765 = vmul.f32 %v1736, %v680
        %v1766 = vmul.f32 %v1738, %v681
        %v1767 = vmul.f32 %v1740, %v682
        %v1768 = vmul.f32 %v1742, %v683
        %v1769 = vmul.f32 %v1744, %v684
        %v1770 = vmul.f32 %v1746, %v685
        %v1771 = vmul.f32 %v1748, %v686
        %v1772 = vmul.f32 %v1750, %v687
        %v1773 = vmul.f32 %v1752, %v688
        %v1774 = vmul.f32 %v1754, %v689
        %v1775 = vsel %vm1042, %v1755, 0.0
        %v1776 = vsel %vm1042, %v1756, 0.0
        %v1777 = vadd.f32 %v1775, %v1776
        %v1778 = vsel %vm1042, %v1757, 0.0
        %v1779 = vadd.f32 %v1777, %v1778
        %v1780 = vsel %vm1042, %v1758, 0.0
        %v1781 = vadd.f32 %v1779, %v1780
        %v1782 = vsel %vm1042, %v1759, 0.0
        %v1783 = vadd.f32 %v1781, %v1782
        %v1784 = vsel %vm1042, %v1760, 0.0
        %v1785 = vadd.f32 %v1783, %v1784
        %v1786 = vsel %vm1042, %v1761, 0.0
        %v1787 = vadd.f32 %v1785, %v1786
        %v1788 = vsel %vm1042, %v1762, 0.0
        %v1789 = vadd.f32 %v1787, %v1788
        %v1790 = vsel %vm1042, %v1763, 0.0
        %v1791 = vadd.f32 %v1789, %v1790
        %v1792 = vsel %vm1042, %v1764, 0.0
        %v1793 = vadd.f32 %v1791, %v1792
        %v1794 = vsel %vm1042, %v1765, 0.0
        %v1795 = vadd.f32 %v1793, %v1794
        %v1796 = vsel %vm1042, %v1766, 0.0
        %v1797 = vadd.f32 %v1795, %v1796
        %v1798 = vsel %vm1042, %v1767, 0.0
        %v1799 = vadd.f32 %v1797, %v1798
        %v1800 = vsel %vm1042, %v1768, 0.0
        %v1801 = vadd.f32 %v1799, %v1800
        %v1802 = vsel %vm1042, %v1769, 0.0
        %v1803 = vadd.f32 %v1801, %v1802
        %v1804 = vsel %vm1042, %v1770, 0.0
        %v1805 = vadd.f32 %v1803, %v1804
        %v1806 = vsel %vm1042, %v1771, 0.0
        %v1807 = vadd.f32 %v1805, %v1806
        %v1808 = vsel %vm1042, %v1772, 0.0
        %v1809 = vadd.f32 %v1807, %v1808
        %v1810 = vsel %vm1042, %v1773, 0.0
        %v1811 = vadd.f32 %v1809, %v1810
        %v1812 = vsel %vm1042, %v1774, 0.0
        %v1813 = vadd.f32 %v1811, %v1812
        %1814 = vadd.xlane.f32.xlu0 %v1813
        %v1815 = vpop.xlane.xlu0 %1814
        %v1816 = vrot.slane %v1815, 4
        %v1817 = vadd.f32 %v1815, %v1816
        %v1818 = vrot.slane %v1817, 2
        %v1819 = vadd.f32 %v1817, %v1818
        %v1820 = vrot.slane %v1819, 1
        %v1821 = vadd.f32 %v1819, %v1820
        %s1822 = vtos %v1821
        %vm1823 = vcmp.eq.s32.totalorder %v691, 2
        %v1824 = vstv %s1822
        %v1825 = vsel %vm1823, %v1824, 0.0
        %v1826 = vadd.f32 %v1460, %v1825
        %s1827 = scalar_lea.vmem %s543, 240 [#allocation2]
        %v1828 = vld [vmem:[%s1827] sm:$0xf]
        %v1829 = vld [vmem:[%s1827 + $0x4] sm:$0xf]
        %v1830 = vld [vmem:[%s1827 + $0x8] sm:$0xf]
        %v1831 = vld [vmem:[%s1827 + $0xc] sm:$0xf]
        %v1832 = vld [vmem:[%s1827 + $0x10] sm:$0xf]
        %v1833 = vld [vmem:[%s1827 + $0x14] sm:$0xf]
        %v1834 = vld [vmem:[%s1827 + $0x18] sm:$0xf]
        %v1835 = vld [vmem:[%s1827 + $0x1c] sm:$0xf]
        %v1836 = vld [vmem:[%s1827 + $0x20] sm:$0xf]
        %v1837 = vld [vmem:[%s1827 + $0x24] sm:$0xf]
        %v1838 = vld [vmem:[%s1827 + $0x28] sm:$0xf]
        %v1839 = vld [vmem:[%s1827 + $0x2c] sm:$0xf]
        %v1840 = vld [vmem:[%s1827 + $0x30] sm:$0xf]
        %v1841 = vld [vmem:[%s1827 + $0x34] sm:$0xf]
        %v1842 = vld [vmem:[%s1827 + $0x38] sm:$0xf]
        %v1843 = vld [vmem:[%s1827 + $0x3c] sm:$0xf]
        %v1844 = vld [vmem:[%s1827 + $0x40] sm:$0xf]
        %v1845 = vld [vmem:[%s1827 + $0x44] sm:$0xf]
        %v1846 = vld [vmem:[%s1827 + $0x48] sm:$0xf]
        %v1847 = vld [vmem:[%s1827 + $0x4c] sm:$0xf]
        %v1868 = vunpack.c.l.b16 %v1828
        %v1869 = vunpack.c.l.b16 %v1829
        %v1870 = vunpack.c.l.b16 %v1830
        %v1871 = vunpack.c.l.b16 %v1831
        %v1872 = vunpack.c.l.b16 %v1832
        %v1873 = vunpack.c.l.b16 %v1833
        %v1874 = vunpack.c.l.b16 %v1834
        %v1875 = vunpack.c.l.b16 %v1835
        %v1876 = vunpack.c.l.b16 %v1836
        %v1877 = vunpack.c.l.b16 %v1837
        %v1878 = vunpack.c.l.b16 %v1838
        %v1879 = vunpack.c.l.b16 %v1839
        %v1880 = vunpack.c.l.b16 %v1840
        %v1881 = vunpack.c.l.b16 %v1841
        %v1882 = vunpack.c.l.b16 %v1842
        %v1883 = vunpack.c.l.b16 %v1843
        %v1884 = vunpack.c.l.b16 %v1844
        %v1885 = vunpack.c.l.b16 %v1845
        %v1886 = vunpack.c.l.b16 %v1846
        %v1887 = vunpack.c.l.b16 %v1847
        %v1888 = vpack.c.b16 %v1869, %v1868
        %v1889 = vpack.c.b16 %v1871, %v1870
        %v1890 = vpack.c.b16 %v1873, %v1872
        %v1891 = vpack.c.b16 %v1875, %v1874
        %v1892 = vpack.c.b16 %v1877, %v1876
        %v1893 = vpack.c.b16 %v1879, %v1878
        %v1894 = vpack.c.b16 %v1881, %v1880
        %v1895 = vpack.c.b16 %v1883, %v1882
        %v1896 = vpack.c.b16 %v1885, %v1884
        %v1897 = vpack.c.b16 %v1887, %v1886
        %v1899 = vsel %vm792, %v1888, 0
        %v1902 = vsel %vm792, %v1889, 0
        %v1905 = vsel %vm792, %v1890, 0
        %v1908 = vsel %vm792, %v1891, 0
        %v1911 = vsel %vm792, %v1892, 0
        %v1914 = vsel %vm792, %v1893, 0
        %v1917 = vsel %vm792, %v1894, 0
        %v1920 = vsel %vm792, %v1895, 0
        %v1923 = vsel %vm792, %v1896, 0
        %v1926 = vsel %vm792, %v1897, 0
        %1928 = vmatprep.subr.bf16.mxu0 0
        %1929 = vmatpush1.bf16.msra.mxu0 %v784
        %1930 = vmatprep.subr.bf16.mxu0 0
        %1931 = vmatpush1.bf16.msra.mxu0 %v785
        %1932 = vmatprep.subr.bf16.mxu0 0
        %1933 = vmatpush1.bf16.msra.mxu0 %v786
        %1934 = vmatprep.subr.bf16.mxu0 0
        %1935 = vmatpush1.bf16.msra.mxu0 %v787
        %1936 = vmatprep.subr.bf16.mxu0 0
        %1937 = vmatpush1.bf16.msra.mxu0 0
        %1938 = vmatprep.subr.bf16.mxu0 0
        %1939 = vmatpush1.bf16.msra.mxu0 0
        %1940 = vmatprep.subr.bf16.mxu0 0
        %1941 = vmatpush1.bf16.msra.mxu0 0
        %1942 = vmatprep.subr.bf16.mxu0 0
        %1943 = vmatpush1.bf16.msra.mxu0 0
        %1944 = vmatprep.subr.bf16.mxu0 0
        %1945 = vmatpush1.bf16.msra.mxu0 0
        %1946 = vmatprep.subr.bf16.mxu0 0
        %1947 = vmatpush1.bf16.msra.mxu0 0
        %1948 = vmatprep.subr.bf16.mxu0 0
        %1949 = vmatpush1.bf16.msra.mxu0 0
        %1950 = vmatprep.subr.bf16.mxu0 0
        %1951 = vmatpush1.bf16.msra.mxu0 0
        %1952 = vmatprep.subr.bf16.mxu0 0
        %1953 = vmatpush1.bf16.msra.mxu0 0
        %1954 = vmatprep.subr.bf16.mxu0 0
        %1955 = vmatpush1.bf16.msra.mxu0 0
        %1956 = vmatprep.subr.bf16.mxu0 0
        %1957 = vmatpush1.bf16.msra.mxu0 0
        %1958 = vmatprep.subr.bf16.mxu0 0
        %1959 = vmatpush1.bf16.msra.mxu0 0
        %1960 = vmatprep.mubr.bf16.mxu0 0
        %1961 = vmatmul.mubr.bf16.gmra.mrb[0].mxu0 %v1899
        %v1962 = vpop.f32.mrb[0].mxu0
        %v1963 = vadd.f32 %v716, %v1962
        %v1964 = vpop.f32.mrb[0].mxu0
        %v1965 = vpop.f32.mrb[0].mxu0
        %v1966 = vadd.f32 %v716, %v1965
        %v1967 = vpop.f32.mrb[0].mxu0
        %1968 = vmatprep.mubr.bf16.mxu0 0
        %1969 = vmatmul.mubr.bf16.gmra.mrb[0].mxu0 %v1902
        %v1970 = vpop.f32.mrb[0].mxu0
        %v1971 = vadd.f32 %v716, %v1970
        %v1972 = vpop.f32.mrb[0].mxu0
        %v1973 = vpop.f32.mrb[0].mxu0
        %v1974 = vadd.f32 %v716, %v1973
        %v1975 = vpop.f32.mrb[0].mxu0
        %1976 = vmatprep.mubr.bf16.mxu0 0
        %1977 = vmatmul.mubr.bf16.gmra.mrb[0].mxu0 %v1905
        %v1978 = vpop.f32.mrb[0].mxu0
        %v1979 = vadd.f32 %v716, %v1978
        %v1980 = vpop.f32.mrb[0].mxu0
        %v1981 = vpop.f32.mrb[0].mxu0
        %v1982 = vadd.f32 %v716, %v1981
        %v1983 = vpop.f32.mrb[0].mxu0
        %1984 = vmatprep.mubr.bf16.mxu0 0
        %1985 = vmatmul.mubr.bf16.gmra.mrb[0].mxu0 %v1908
        %v1986 = vpop.f32.mrb[0].mxu0
        %v1987 = vadd.f32 %v716, %v1986
        %v1988 = vpop.f32.mrb[0].mxu0
        %v1989 = vpop.f32.mrb[0].mxu0
        %v1990 = vadd.f32 %v716, %v1989
        %v1991 = vpop.f32.mrb[0].mxu0
        %1992 = vmatprep.mubr.bf16.mxu0 0
        %1993 = vmatmul.mubr.bf16.gmra.mrb[0].mxu0 %v1911
        %v1994 = vpop.f32.mrb[0].mxu0
        %v1995 = vadd.f32 %v716, %v1994
        %v1996 = vpop.f32.mrb[0].mxu0
        %v1997 = vpop.f32.mrb[0].mxu0
        %v1998 = vadd.f32 %v716, %v1997
        %v1999 = vpop.f32.mrb[0].mxu0
        %2000 = vmatprep.mubr.bf16.mxu0 0
        %2001 = vmatmul.mubr.bf16.gmra.mrb[0].mxu0 %v1914
        %v2002 = vpop.f32.mrb[0].mxu0
        %v2003 = vadd.f32 %v716, %v2002
        %v2004 = vpop.f32.mrb[0].mxu0
        %v2005 = vpop.f32.mrb[0].mxu0
        %v2006 = vadd.f32 %v716, %v2005
        %v2007 = vpop.f32.mrb[0].mxu0
        %2008 = vmatprep.mubr.bf16.mxu0 0
        %2009 = vmatmul.mubr.bf16.gmra.mrb[0].mxu0 %v1917
        %v2010 = vpop.f32.mrb[0].mxu0
        %v2011 = vadd.f32 %v716, %v2010
        %v2012 = vpop.f32.mrb[0].mxu0
        %v2013 = vpop.f32.mrb[0].mxu0
        %v2014 = vadd.f32 %v716, %v2013
        %v2015 = vpop.f32.mrb[0].mxu0
        %2016 = vmatprep.mubr.bf16.mxu0 0
        %2017 = vmatmul.mubr.bf16.gmra.mrb[0].mxu0 %v1920
        %v2018 = vpop.f32.mrb[0].mxu0
        %v2019 = vadd.f32 %v716, %v2018
        %v2020 = vpop.f32.mrb[0].mxu0
        %v2021 = vpop.f32.mrb[0].mxu0
        %v2022 = vadd.f32 %v716, %v2021
        %v2023 = vpop.f32.mrb[0].mxu0
        %2024 = vmatprep.mubr.bf16.mxu0 0
        %2025 = vmatmul.mubr.bf16.gmra.mrb[0].mxu0 %v1923
        %v2026 = vpop.f32.mrb[0].mxu0
        %v2027 = vadd.f32 %v716, %v2026
        %v2028 = vpop.f32.mrb[0].mxu0
        %v2029 = vpop.f32.mrb[0].mxu0
        %v2030 = vadd.f32 %v716, %v2029
        %v2031 = vpop.f32.mrb[0].mxu0
        %2032 = vmatprep.mubr.bf16.mxu0 0
        %2033 = vmatmul.mubr.bf16.gmra.mrb[0].mxu0 %v1926
        %v2034 = vpop.f32.mrb[0].mxu0
        %v2035 = vadd.f32 %v716, %v2034
        %v2036 = vpop.f32.mrb[0].mxu0
        %v2037 = vpop.f32.mrb[0].mxu0
        %v2038 = vadd.f32 %v716, %v2037
        %v2039 = vpop.f32.mrb[0].mxu0
        %2040 = vdwg.mxu0
        %v2041 = vtanh.pop %v1963
        %v2042 = vtanh.pop %v1966
        %v2043 = vtanh.pop %v1971
        %v2044 = vtanh.pop %v1974
        %v2045 = vtanh.pop %v1979
        %v2046 = vtanh.pop %v1982
        %v2047 = vtanh.pop %v1987
        %v2048 = vtanh.pop %v1990
        %v2049 = vtanh.pop %v1995
        %v2050 = vtanh.pop %v1998
        %v2051 = vtanh.pop %v2003
        %v2052 = vtanh.pop %v2006
        %v2053 = vtanh.pop %v2011
        %v2054 = vtanh.pop %v2014
        %v2055 = vtanh.pop %v2019
        %v2056 = vtanh.pop %v2022
        %v2057 = vtanh.pop %v2027
        %v2058 = vtanh.pop %v2030
        %v2059 = vtanh.pop %v2035
        %v2060 = vtanh.pop %v2038
        %v2061 = vmul.f32 %v2041, %v960
        %v2062 = vmul.f32 %v2042, %v960
        %v2063 = vmul.f32 %v2043, %v960
        %v2064 = vmul.f32 %v2044, %v960
        %v2065 = vmul.f32 %v2045, %v960
        %v2066 = vmul.f32 %v2046, %v960
        %v2067 = vmul.f32 %v2047, %v960
        %v2068 = vmul.f32 %v2048, %v960
        %v2069 = vmul.f32 %v2049, %v960
        %v2070 = vmul.f32 %v2050, %v960
        %v2071 = vmul.f32 %v2051, %v960
        %v2072 = vmul.f32 %v2052, %v960
        %v2073 = vmul.f32 %v2053, %v960
        %v2074 = vmul.f32 %v2054, %v960
        %v2075 = vmul.f32 %v2055, %v960
        %v2076 = vmul.f32 %v2056, %v960
        %v2077 = vmul.f32 %v2057, %v960
        %v2078 = vmul.f32 %v2058, %v960
        %v2079 = vmul.f32 %v2059, %v960
        %v2080 = vmul.f32 %v2060, %v960
        %2081 = vadd.xlane.f32.xlu0 %v2061
        %v2082 = vpop.xlane.xlu0 %2081
        %2083 = vadd.xlane.f32.xlu0 %v2062
        %v2084 = vpop.xlane.xlu0 %2083
        %2085 = vadd.xlane.f32.xlu0 %v2063
        %v2086 = vpop.xlane.xlu0 %2085
        %2087 = vadd.xlane.f32.xlu0 %v2064
        %v2088 = vpop.xlane.xlu0 %2087
        %2089 = vadd.xlane.f32.xlu0 %v2065
        %v2090 = vpop.xlane.xlu0 %2089
        %2091 = vadd.xlane.f32.xlu0 %v2066
        %v2092 = vpop.xlane.xlu0 %2091
        %2093 = vadd.xlane.f32.xlu0 %v2067
        %v2094 = vpop.xlane.xlu0 %2093
        %2095 = vadd.xlane.f32.xlu0 %v2068
        %v2096 = vpop.xlane.xlu0 %2095
        %2097 = vadd.xlane.f32.xlu0 %v2069
        %v2098 = vpop.xlane.xlu0 %2097
        %2099 = vadd.xlane.f32.xlu0 %v2070
        %v2100 = vpop.xlane.xlu0 %2099
        %2101 = vadd.xlane.f32.xlu0 %v2071
        %v2102 = vpop.xlane.xlu0 %2101
        %2103 = vadd.xlane.f32.xlu0 %v2072
        %v2104 = vpop.xlane.xlu0 %2103
        %2105 = vadd.xlane.f32.xlu0 %v2073
        %v2106 = vpop.xlane.xlu0 %2105
        %2107 = vadd.xlane.f32.xlu0 %v2074
        %v2108 = vpop.xlane.xlu0 %2107
        %2109 = vadd.xlane.f32.xlu0 %v2075
        %v2110 = vpop.xlane.xlu0 %2109
        %2111 = vadd.xlane.f32.xlu0 %v2076
        %v2112 = vpop.xlane.xlu0 %2111
        %2113 = vadd.xlane.f32.xlu0 %v2077
        %v2114 = vpop.xlane.xlu0 %2113
        %2115 = vadd.xlane.f32.xlu0 %v2078
        %v2116 = vpop.xlane.xlu0 %2115
        %2117 = vadd.xlane.f32.xlu0 %v2079
        %v2118 = vpop.xlane.xlu0 %2117
        %2119 = vadd.xlane.f32.xlu0 %v2080
        %v2120 = vpop.xlane.xlu0 %2119
        %v2121 = vmul.f32 %v2082, %v670
        %v2122 = vmul.f32 %v2084, %v671
        %v2123 = vmul.f32 %v2086, %v672
        %v2124 = vmul.f32 %v2088, %v673
        %v2125 = vmul.f32 %v2090, %v674
        %v2126 = vmul.f32 %v2092, %v675
        %v2127 = vmul.f32 %v2094, %v676
        %v2128 = vmul.f32 %v2096, %v677
        %v2129 = vmul.f32 %v2098, %v678
        %v2130 = vmul.f32 %v2100, %v679
        %v2131 = vmul.f32 %v2102, %v680
        %v2132 = vmul.f32 %v2104, %v681
        %v2133 = vmul.f32 %v2106, %v682
        %v2134 = vmul.f32 %v2108, %v683
        %v2135 = vmul.f32 %v2110, %v684
        %v2136 = vmul.f32 %v2112, %v685
        %v2137 = vmul.f32 %v2114, %v686
        %v2138 = vmul.f32 %v2116, %v687
        %v2139 = vmul.f32 %v2118, %v688
        %v2140 = vmul.f32 %v2120, %v689
        %v2141 = vsel %vm1042, %v2121, 0.0
        %v2142 = vsel %vm1042, %v2122, 0.0
        %v2143 = vadd.f32 %v2141, %v2142
        %v2144 = vsel %vm1042, %v2123, 0.0
        %v2145 = vadd.f32 %v2143, %v2144
        %v2146 = vsel %vm1042, %v2124, 0.0
        %v2147 = vadd.f32 %v2145, %v2146
        %v2148 = vsel %vm1042, %v2125, 0.0
        %v2149 = vadd.f32 %v2147, %v2148
        %v2150 = vsel %vm1042, %v2126, 0.0
        %v2151 = vadd.f32 %v2149, %v2150
        %v2152 = vsel %vm1042, %v2127, 0.0
        %v2153 = vadd.f32 %v2151, %v2152
        %v2154 = vsel %vm1042, %v2128, 0.0
        %v2155 = vadd.f32 %v2153, %v2154
        %v2156 = vsel %vm1042, %v2129, 0.0
        %v2157 = vadd.f32 %v2155, %v2156
        %v2158 = vsel %vm1042, %v2130, 0.0
        %v2159 = vadd.f32 %v2157, %v2158
        %v2160 = vsel %vm1042, %v2131, 0.0
        %v2161 = vadd.f32 %v2159, %v2160
        %v2162 = vsel %vm1042, %v2132, 0.0
        %v2163 = vadd.f32 %v2161, %v2162
        %v2164 = vsel %vm1042, %v2133, 0.0
        %v2165 = vadd.f32 %v2163, %v2164
        %v2166 = vsel %vm1042, %v2134, 0.0
        %v2167 = vadd.f32 %v2165, %v2166
        %v2168 = vsel %vm1042, %v2135, 0.0
        %v2169 = vadd.f32 %v2167, %v2168
        %v2170 = vsel %vm1042, %v2136, 0.0
        %v2171 = vadd.f32 %v2169, %v2170
        %v2172 = vsel %vm1042, %v2137, 0.0
        %v2173 = vadd.f32 %v2171, %v2172
        %v2174 = vsel %vm1042, %v2138, 0.0
        %v2175 = vadd.f32 %v2173, %v2174
        %v2176 = vsel %vm1042, %v2139, 0.0
        %v2177 = vadd.f32 %v2175, %v2176
        %v2178 = vsel %vm1042, %v2140, 0.0
        %v2179 = vadd.f32 %v2177, %v2178
        %2180 = vadd.xlane.f32.xlu0 %v2179
        %v2181 = vpop.xlane.xlu0 %2180
        %v2182 = vrot.slane %v2181, 4
        %v2183 = vadd.f32 %v2181, %v2182
        %v2184 = vrot.slane %v2183, 2
        %v2185 = vadd.f32 %v2183, %v2184
        %v2186 = vrot.slane %v2185, 1
        %v2187 = vadd.f32 %v2185, %v2186
        %s2188 = vtos %v2187
        %vm2189 = vcmp.eq.s32.totalorder %v691, 3
        %v2190 = vstv %s2188
        %v2191 = vsel %vm2189, %v2190, 0.0
        %v2192 = vadd.f32 %v1826, %v2191
        %v2193 = vld [vmem:[%s568] sm:$0x1]
        %v2194 = vadd.f32 %v2193, %v2192
        %vm2195 = vcmask 24576
        %2196 = vst.msk [vmem:[%s568] sm:$0x1] %vm2195, %v2194
        %p2197 = scmp.lt.s32.totalorder %s19, 1
        %s2198 = scalar_select %p2197, %s19, 1
        %s2199 = scalar_lea.vmem %s4, %s2198
        // Predicated region
        $region82: #{semantic_attention.2} parent=72 // pred_check
          %p2200 = pneg %p136
        $region83: #{semantic_attention.2} parent=72 // pred_check_branch
          %2202 = sbr.rel (%p2200) target = $region85
        $region84: #{semantic_attention.2} parent=72 // pred_region
          _
        $region85: #{semantic_attention.2} parent=72 // pred_fallthru
          _
      $region73: #{semantic_attention.2} parent=5 // pred_fallthru
        _
      %p2203 = scmp.le.s32.totalorder 2, %s10
      // Predicated region
      $region86: #{semantic_attention.2} parent=5 // pred_check
        %p2204 = pneg %p2203
      $region87: #{semantic_attention.2} parent=5 // pred_check_branch
        %2206 = sbr.rel (%p2204) target = $region89
      $region88: #{semantic_attention.2} parent=5 // pred_region
        %s2207 = ssub.s32 %s10, 2
        // Predicated region
        $region90: #{semantic_attention.2} parent=88 // pred_check
          %p2208 = pneg %p142
        $region91: #{semantic_attention.2} parent=88 // pred_check_branch
          %2210 = sbr.rel (%p2208) target = $region93
        $region92: #{semantic_attention.2} parent=88 // pred_region
          %p2211 = scmp.lt.s32.totalorder %s21, 1
          %s2212 = scalar_select %p2211, %s21, 1
          %s2213 = scalar_lea.vmem %s4, %s2212
        $region93: #{semantic_attention.2} parent=88 // pred_fallthru
          _
      $region89: #{semantic_attention.2} parent=5 // pred_fallthru
        _
    $region6: #{semantic_attention.2} parent=1 // loop_footer
      %s14 = sadd.s32 1, %s10
    $region7: #{semantic_attention.2} parent=1 // loop_footer_branch
      %9 = sbr.rel target = $region3
    $region8: #{semantic_attention.2} parent=1 // loop_exit
      _

</llo_original>
